<compile_context>
chip_gen: v6e
topology: v6e:2x2x1
jax: 0.10.0
libtpu: 0.0.40
codegen_flags: <defaults>
</compile_context>

<pallas_src>
import functools

import jax
import jax.numpy as jnp
from jax.experimental import pallas as pl
from jax.experimental.pallas import tpu as pltpu

MATMUL_DTYPE = jnp.bfloat16   # MXU operand dtype (accumulate in f32)
STORE_DTYPE = jnp.bfloat16    # activation / weight storage dtype

LANE = 128


def _round_up(x, m=LANE):
    return ((x + m - 1) // m) * m


def _pad_to(a, shape):
    pads = [(0, t - s) for s, t in zip(a.shape, shape)]
    if all(p == (0, 0) for p in pads):
        return a
    return jnp.pad(a, pads)


def _vmem_limit_bytes():
    # Generation-aware scoped-VMEM limit (v5e/v6e: 128 MiB phys, v7x: 64 MiB).
    try:
        cap = int(getattr(pltpu.get_tpu_info(), "vmem_capacity_bytes", 64 << 20))
    except Exception:
        cap = 64 << 20
    return int(min(cap * 3 // 4, 96 << 20))


_VMEM_LIMIT = _vmem_limit_bytes()


def _pick_band(H, W, C, budget_bytes):
    """Largest divisor of H whose per-band f32 accumulator (~band*W*C*4 B) fits."""
    best = 1
    for b in range(1, H + 1):
        if H % b == 0 and b * W * C * 4 <= budget_bytes:
            best = b
    return best


# ----------------------------- Pallas kernels -----------------------------

def _matmul_bias_kernel(x_ref, w_ref, b_ref, o_ref):
    # x: (tM, K), w: (K, Cout), b: (1, Cout) f32 -> o: (tM, Cout)
    acc = jnp.dot(x_ref[...].astype(MATMUL_DTYPE),
                  w_ref[...].astype(MATMUL_DTYPE),
                  preferred_element_type=jnp.float32)
    o_ref[...] = (acc + b_ref[...]).astype(o_ref.dtype)


def _resblock_kernel(H, W, C, band,
                     xp_ref, w1_ref, b1_ref, w2_ref, b2_ref, o_ref, h_ref):
    """Fused ResnetBlock_light on one zero-halo-padded image.

    xp_ref : (H+2, Wp, C)   input; zero halo row 0 / row H+1, zero cols 0 and
                            >= W+1 (Wp may exceed W+2 for sublane alignment)
    w*_ref : (9*C, C)       3x3 weights flattened (dy, dx, cin) -> row
    b*_ref : (1, C) f32
    o_ref  : (H+2, Wp, C)   output, same padded layout (halo rewritten to 0)
    h_ref  : VMEM scratch   (H+2, Wp, C) holding the padded intermediate h
    """
    f32 = jnp.float32
    Hp = H + 2
    Wp = xp_ref.shape[1]
    nb = H // band

    def conv_band(src_ref, w_ref, r0):
        # 3x3 conv for `band` output rows as 9 accumulated K=C MXU dots
        # (no im2col temp, no 9x VMEM copy traffic).
        acc = jnp.zeros((band * W, C), f32)
        for dy in range(3):
            for dx in range(3):
                tap = src_ref[pl.ds(r0 + dy, band), dx:dx + W, :]
                tap = tap.reshape(band * W, C).astype(MATMUL_DTYPE)
                k0 = (dy * 3 + dx) * C
                acc = acc + jnp.dot(tap, w_ref[k0:k0 + C, :].astype(MATMUL_DTYPE),
                                    preferred_element_type=f32)
        return acc

    b1 = b1_ref[...].astype(f32)
    b2 = b2_ref[...].astype(f32)

    # Zero only the thin halos (interiors are fully overwritten below).
    for ref in (h_ref, o_ref):
        ref[0:1, :, :] = jnp.zeros((1, Wp, C), ref.dtype)
        ref[H + 1:H + 2, :, :] = jnp.zeros((1, Wp, C), ref.dtype)
        ref[:, 0:1, :] = jnp.zeros((Hp, 1, C), ref.dtype)
        ref[:, W + 1:Wp, :] = jnp.zeros((Hp, Wp - W - 1, C), ref.dtype)

    # Pass 1: h = relu(conv3x3(x) + b1), kept padded in VMEM scratch.
    def p1(i, carry):
        r0 = pl.multiple_of(i * band, band)
        hb = jnp.maximum(conv_band(xp_ref, w1_ref, r0) + b1, 0.0)
        h_ref[pl.ds(1 + r0, band), 1:W + 1, :] = (
            hb.reshape(band, W, C).astype(h_ref.dtype))
        return carry

    jax.lax.fori_loop(0, nb, p1, 0, unroll=nb <= 4)

    # Pass 2: y = conv3x3(h) + b2 + x   (residual from the input interior).
    def p2(i, carry):
        r0 = pl.multiple_of(i * band, band)
        res = xp_ref[pl.ds(1 + r0, band), 1:W + 1, :]
        res = res.reshape(band * W, C).astype(f32)
        yb = conv_band(h_ref, w2_ref, r0) + b2 + res
        o_ref[pl.ds(1 + r0, band), 1:W + 1, :] = (
            yb.reshape(band, W, C).astype(o_ref.dtype))
        return carry

    jax.lax.fori_loop(0, nb, p2, 0, unroll=nb <= 4)


# ----------------------------- wrappers -----------------------------

def matmul_bias(x2d, w, b, *, out_dtype=None):
    """x2d: (M, K), w: (K, Cout), b: (Cout,) -> (M, Cout)."""
    M, K = x2d.shape
    Cout = w.shape[1]
    out_dtype = out_dtype if out_dtype is not None else x2d.dtype
    b2 = b.reshape(1, Cout).astype(jnp.float32)

    # Row tiling robust to awkward M: pad M up to a multiple of the tile so
    # DMA stays pipelined (extra zero rows are sliced away below).
    tM = 512 if M >= 512 else _round_up(M, 8)
    Mp = _round_up(M, tM)
    if Mp != M:
        x2d = jnp.pad(x2d, ((0, Mp - M), (0, 0)))

    cost = pl.CostEstimate(
        flops=2 * Mp * K * Cout,
        transcendentals=0,
        bytes_accessed=int(Mp * K * x2d.dtype.itemsize
                           + K * Cout * w.dtype.itemsize
                           + Mp * Cout * jnp.dtype(out_dtype).itemsize))
    y = pl.pallas_call(
        _matmul_bias_kernel,
        out_shape=jax.ShapeDtypeStruct((Mp, Cout), out_dtype),
        grid=(Mp // tM,),
        in_specs=[
            pl.BlockSpec((tM, K), lambda i: (i, 0)),
            pl.BlockSpec((K, Cout), lambda i: (0, 0)),
            pl.BlockSpec((1, Cout), lambda i: (0, 0)),
        ],
        out_specs=pl.BlockSpec((tM, Cout), lambda i: (i, 0)),
        compiler_params=pltpu.CompilerParams(
            dimension_semantics=("parallel",),
            vmem_limit_bytes=_VMEM_LIMIT),
        cost_estimate=cost,
    )(x2d, w, b2)
    return y[:M] if Mp != M else y


def resnet_block(xpad, w1, b1, w2, b2, *, H, W):
    """Fused ResnetBlock_light on padded NHWC activations (N, H+2, Wp, C)."""
    N, Hp, Wp, C = xpad.shape
    band = _pick_band(H, W, C, budget_bytes=max(2 << 20, _VMEM_LIMIT // 8))
    kern = functools.partial(_resblock_kernel, H, W, C, band)
    cost = pl.CostEstimate(
        flops=2 * 2 * N * H * W * 9 * C * C,
        transcendentals=0,
        bytes_accessed=int(2 * N * Hp * Wp * C * xpad.dtype.itemsize
                           + 2 * 9 * C * C * w1.dtype.itemsize + 2 * C * 4))
    return pl.pallas_call(
        kern,
        out_shape=jax.ShapeDtypeStruct((N, Hp, Wp, C), xpad.dtype),
        grid=(N,),
        in_specs=[
            pl.BlockSpec((None, Hp, Wp, C), lambda n: (n, 0, 0, 0)),
            pl.BlockSpec((9 * C, C), lambda n: (0, 0)),
            pl.BlockSpec((1, C), lambda n: (0, 0)),
            pl.BlockSpec((9 * C, C), lambda n: (0, 0)),
            pl.BlockSpec((1, C), lambda n: (0, 0)),
        ],
        out_specs=pl.BlockSpec((None, Hp, Wp, C), lambda n: (n, 0, 0, 0)),
        scratch_shapes=[pltpu.VMEM((Hp, Wp, C), STORE_DTYPE)],
        input_output_aliases={0: 0},
        compiler_params=pltpu.CompilerParams(
            dimension_semantics=("parallel",),
            vmem_limit_bytes=_VMEM_LIMIT),
        cost_estimate=cost,
    )(xpad, w1, b1.reshape(1, C), w2, b2.reshape(1, C))


# ----------------------------- extractor module -----------------------------

def init_extractor_params(key, in_c, inter_c, out_c, nums_rb):
    keys = iter(jax.random.split(key, 4 + 4 * nums_rb))

    def w(shape, scale=0.1):
        return jax.random.normal(next(keys), shape, jnp.float32) * scale

    params = {
        "in_conv_w": w((in_c, inter_c)),          # 1x1 conv as (Cin, Cout)
        "in_conv_b": w((inter_c,)),
        "out_conv_w": w((inter_c, out_c)),
        "out_conv_b": w((out_c,)),
        "body": [],
    }
    for _ in range(nums_rb):
        params["body"].append({
            "w1": w((3, 3, inter_c, inter_c)),    # HWIO
            "b1": w((inter_c,)),
            "w2": w((3, 3, inter_c, inter_c)),
            "b2": w((inter_c,)),
        })
    return params


def extractor_forward(params, x_nchw, *, down):
    in_c, inter_c = params["in_conv_w"].shape
    out_c = params["out_conv_w"].shape[1]
    Ci, Cm, Co = _round_up(in_c), _round_up(inter_c), _round_up(out_c)

    # NCHW -> NHWC, zero-pad channels to a lane-dense multiple of 128 (padded
    # channels stay exactly zero through the whole network).
    x = jnp.transpose(x_nchw, (0, 2, 3, 1)).astype(jnp.float32)
    x = _pad_to(x, x.shape[:3] + (Ci,))
    N = x.shape[0]

    w_in = _pad_to(params["in_conv_w"], (Ci, Cm))
    b_in = _pad_to(params["in_conv_b"], (Cm,)).astype(jnp.float32)

    if down:
        # Fuse AvgPool2d(2,2) into in_conv: flatten the 2x2 window into K and
        # fold the 0.25 into the (tiled) weight.
        _, H, W, _ = x.shape
        Ho, Wo = H // 2, W // 2
        x = x[:, :2 * Ho, :2 * Wo, :]
        x = x.reshape(N, Ho, 2, Wo, 2, Ci).transpose(0, 1, 3, 2, 4, 5)
        x = x.reshape(N * Ho * Wo, 4 * Ci)
        w0 = 0.25 * jnp.concatenate([w_in] * 4, axis=0)        # (4*Ci, Cm)
    else:
        _, Ho, Wo, _ = x.shape
        x = x.reshape(N * Ho * Wo, Ci)
        w0 = w_in

    x = matmul_bias(x.astype(STORE_DTYPE), w0.astype(STORE_DTYPE), b_in,
                    out_dtype=STORE_DTYPE)                      # (N*Ho*Wo, Cm)

    # Keep activations in zero-halo-padded form through the whole body; pad the
    # right side so Wp is a multiple of the sublane packing (padded cols stay 0).
    sub = 16 if jnp.dtype(STORE_DTYPE).itemsize == 2 else 8
    Hp = Ho + 2
    Wp = _round_up(Wo + 2, sub)
    xpad = jnp.pad(x.reshape(N, Ho, Wo, Cm),
                   ((0, 0), (1, 1), (1, Wp - Wo - 1), (0, 0)))

    for blk in params["body"]:                                  # ResnetBlock_light
        w1 = _pad_to(blk["w1"], (3, 3, Cm, Cm)).reshape(9 * Cm, Cm).astype(STORE_DTYPE)
        b1 = _pad_to(blk["b1"], (Cm,)).astype(jnp.float32)
        w2 = _pad_to(blk["w2"], (3, 3, Cm, Cm)).reshape(9 * Cm, Cm).astype(STORE_DTYPE)
        b2 = _pad_to(blk["b2"], (Cm,)).astype(jnp.float32)
        xpad = resnet_block(xpad, w1, b1, w2, b2, H=Ho, W=Wo)

    # out_conv (1x1) runs over the padded slab (halo rows produce just `bias`
    # and are sliced away below) -> lane-dense M-tiled matmul, no pre-slice copy.
    w_out = _pad_to(params["out_conv_w"], (Cm, Co)).astype(STORE_DTYPE)
    b_out = _pad_to(params["out_conv_b"], (Co,)).astype(jnp.float32)
    y = matmul_bias(xpad.reshape(N * Hp * Wp, Cm), w_out, b_out,
                    out_dtype=jnp.float32)
    y = y.reshape(N, Hp, Wp, Co)[:, 1:Ho + 1, 1:Wo + 1, :out_c]
    return jnp.transpose(y, (0, 3, 1, 2))                       # NHWC -> NCHW


# ----------------------------- pure-JAX reference -----------------------------

def _ref_forward(params, x_nchw, *, down):
    x = jnp.transpose(x_nchw, (0, 2, 3, 1))
    if down:
        x = 0.25 * (x[:, 0::2, 0::2] + x[:, 0::2, 1::2]
                    + x[:, 1::2, 0::2] + x[:, 1::2, 1::2])

    def conv(x, w, b, pad):
        y = jax.lax.conv_general_dilated(
            x, w, (1, 1), [(pad, pad), (pad, pad)],
            dimension_numbers=("NHWC", "HWIO", "NHWC"))
        return y + b

    iw = params["in_conv_w"]
    ow = params["out_conv_w"]
    x = conv(x, iw.reshape(1, 1, *iw.shape), params["in_conv_b"], 0)
    for blk in params["body"]:
        h = jax.nn.relu(conv(x, blk["w1"], blk["b1"], 1))
        x = conv(h, blk["w2"], blk["b2"], 1) + x
    x = conv(x, ow.reshape(1, 1, *ow.shape), params["out_conv_b"], 0)
    return jnp.transpose(x, (0, 3, 1, 2))


# ----------------------------- main -----------------------------

if __name__ == "__main__":
    key = jax.random.PRNGKey(0)
    kx, kp = jax.random.split(key)

    in_c, inter_c, out_c, nums_rb = 4, 8, 8, 2
    down = True

    x = jax.random.normal(kx, (2, in_c, 16, 16), jnp.float32)   # NCHW, like PyTorch
    params = init_extractor_params(kp, in_c, inter_c, out_c, nums_rb)

    fwd = jax.jit(functools.partial(extractor_forward, down=down))
    out = jax.block_until_ready(fwd(params, x))

    ref = _ref_forward(params, x, down=down)
    assert out.shape == (2, out_c, 8, 8), out.shape
    max_err = float(jnp.max(jnp.abs(out - ref)))
    # bf16 MXU operands / bf16 storage vs. f32 reference: bf16-level tolerance.
    assert max_err < 5e-2, f"max_err={max_err}"

    print("KERNEL_OK")
</pallas_src>

<mosaic_0001>
module attributes {stable_mosaic.version = 11 : i64} {
  func.func @_matmul_bias_kernel(%arg0: i32, %arg1: memref<128x512xbf16, #tpu.memory_space<vmem>>, %arg2: memref<512x128xbf16, #tpu.memory_space<vmem>>, %arg3: memref<1x128xf32, #tpu.memory_space<vmem>>, %arg4: memref<128x128xbf16, #tpu.memory_space<vmem>>) attributes {dimension_semantics = [#tpu.dimension_semantics<parallel>], iteration_bounds = array<i64: 1>, scalar_prefetch = 0 : i64, scratch_operands = 0 : i64, tpu.core_type = #tpu.core_type<tc>, window_params = [{transform_indices = @transform_0, window_bounds = array<i64: 128, 512>}, {pipeline_mode = #tpu.pipeline_mode<synchronous>, transform_indices = @transform_1, window_bounds = array<i64: 512, 128>}, {pipeline_mode = #tpu.pipeline_mode<synchronous>, transform_indices = @transform_2, window_bounds = array<i64: 1, 128>}, {transform_indices = @transform_3, window_bounds = array<i64: 128, 128>}]} {
    %c0 = arith.constant 0 : index
    %c0_0 = arith.constant 0 : index
    %0 = vector.load %arg1[%c0, %c0_0] : memref<128x512xbf16, #tpu.memory_space<vmem>>, vector<128x512xbf16>
    %c0_1 = arith.constant 0 : index
    %c0_2 = arith.constant 0 : index
    %1 = vector.load %arg2[%c0_1, %c0_2] : memref<512x128xbf16, #tpu.memory_space<vmem>>, vector<512x128xbf16>
    %cst = arith.constant dense<0.000000e+00> : vector<128x128xf32>
    %2 = tpu.matmul %0, %1, %cst {dimension_numbers = #tpu.dot_dimension_numbers<[1], [0], [0], [1], [0, 0, 1, 1], [], []>} : vector<128x512xbf16>, vector<512x128xbf16>, vector<128x128xf32> -> vector<128x128xf32>
    %c0_3 = arith.constant 0 : index
    %c0_4 = arith.constant 0 : index
    %3 = vector.load %arg3[%c0_3, %c0_4] : memref<1x128xf32, #tpu.memory_space<vmem>>, vector<1x128xf32>
    %4 = vector.broadcast %3 : vector<1x128xf32> to vector<128x128xf32>
    %5 = arith.addf %2, %4 : vector<128x128xf32>
    %6 = arith.truncf %5 : vector<128x128xf32> to vector<128x128xbf16>
    %c0_5 = arith.constant 0 : index
    %c0_6 = arith.constant 0 : index
    %7 = vector.load %arg4[%c0_5, %c0_6] : memref<128x128xbf16, #tpu.memory_space<vmem>>, vector<128x128xbf16>
    tpu.vector_store %arg4[%c0_5, %c0_6], %6 {strides = array<i32>} : memref<128x128xbf16, #tpu.memory_space<vmem>>, vector<128x128xbf16>,
    return
  }
  func.func @transform_0(%arg0: i32) -> (i32, i32) {
    %c0_i32 = arith.constant 0 : i32
    %c0_i32_0 = arith.constant 0 : i32
    return %arg0, %c0_i32 : i32, i32
  }
  func.func @transform_1(%arg0: i32) -> (i32, i32) {
    %c0_i32 = arith.constant 0 : i32
    %c0_i32_0 = arith.constant 0 : i32
    %c0_i32_1 = arith.constant 0 : i32
    return %c0_i32, %c0_i32_0 : i32, i32
  }
  func.func @transform_2(%arg0: i32) -> (i32, i32) {
    %c0_i32 = arith.constant 0 : i32
    %c0_i32_0 = arith.constant 0 : i32
    %c0_i32_1 = arith.constant 0 : i32
    return %c0_i32, %c0_i32_0 : i32, i32
  }
  func.func @transform_3(%arg0: i32) -> (i32, i32) {
    %c0_i32 = arith.constant 0 : i32
    %c0_i32_0 = arith.constant 0 : i32
    return %arg0, %c0_i32 : i32, i32
  }
}

module attributes {stable_mosaic.version = 11 : i64} {
  func.func @_resblock_kernel(%arg0: i32, %arg1: memref<1x10x16x128xbf16, #tpu.memory_space<vmem>>, %arg2: memref<1152x128xbf16, #tpu.memory_space<vmem>>, %arg3: memref<1x128xf32, #tpu.memory_space<vmem>>, %arg4: memref<1152x128xbf16, #tpu.memory_space<vmem>>, %arg5: memref<1x128xf32, #tpu.memory_space<vmem>>, %arg6: memref<1x10x16x128xbf16, #tpu.memory_space<vmem>>, %arg7: memref<10x16x128xbf16, #tpu.memory_space<vmem>>) attributes {dimension_semantics = [#tpu.dimension_semantics<parallel>], iteration_bounds = array<i64: 2>, scalar_prefetch = 0 : i64, scratch_operands = 1 : i64, tpu.core_type = #tpu.core_type<tc>, window_params = [{transform_indices = @transform_0, window_bounds = array<i64: 1, 10, 16, 128>}, {pipeline_mode = #tpu.pipeline_mode<synchronous>, transform_indices = @transform_1, window_bounds = array<i64: 1152, 128>}, {pipeline_mode = #tpu.pipeline_mode<synchronous>, transform_indices = @transform_2, window_bounds = array<i64: 1, 128>}, {pipeline_mode = #tpu.pipeline_mode<synchronous>, transform_indices = @transform_3, window_bounds = array<i64: 1152, 128>}, {pipeline_mode = #tpu.pipeline_mode<synchronous>, transform_indices = @transform_4, window_bounds = array<i64: 1, 128>}, {transform_indices = @transform_5, window_bounds = array<i64: 1, 10, 16, 128>}]} {
    %c0 = arith.constant 0 : index
    %c0_0 = arith.constant 0 : index
    %0 = vector.load %arg3[%c0, %c0_0] : memref<1x128xf32, #tpu.memory_space<vmem>>, vector<1x128xf32>
    %c0_1 = arith.constant 0 : index
    %c0_2 = arith.constant 0 : index
    %1 = vector.load %arg5[%c0_1, %c0_2] : memref<1x128xf32, #tpu.memory_space<vmem>>, vector<1x128xf32>
    %cst = arith.constant 0.000000e+00 : bf16
    %2 = vector.broadcast %cst : bf16 to vector<1x16x128xbf16>
    %c0_3 = arith.constant 0 : index
    %c0_4 = arith.constant 0 : index
    %c0_5 = arith.constant 0 : index
    %3 = vector.load %arg7[%c0_3, %c0_4, %c0_5] : memref<10x16x128xbf16, #tpu.memory_space<vmem>>, vector<1x16x128xbf16>
    tpu.vector_store %arg7[%c0_3, %c0_4, %c0_5], %2 {strides = array<i32>} : memref<10x16x128xbf16, #tpu.memory_space<vmem>>, vector<1x16x128xbf16>,
    %cst_6 = arith.constant 0.000000e+00 : bf16
    %4 = vector.broadcast %cst_6 : bf16 to vector<1x16x128xbf16>
    %c9 = arith.constant 9 : index
    %c0_7 = arith.constant 0 : index
    %c0_8 = arith.constant 0 : index
    %5 = vector.load %arg7[%c9, %c0_7, %c0_8] : memref<10x16x128xbf16, #tpu.memory_space<vmem>>, vector<1x16x128xbf16>
    tpu.vector_store %arg7[%c9, %c0_7, %c0_8], %4 {strides = array<i32>} : memref<10x16x128xbf16, #tpu.memory_space<vmem>>, vector<1x16x128xbf16>,
    %cst_9 = arith.constant 0.000000e+00 : bf16
    %6 = vector.broadcast %cst_9 : bf16 to vector<10x1x128xbf16>
    %c0_10 = arith.constant 0 : index
    %c0_11 = arith.constant 0 : index
    %c0_12 = arith.constant 0 : index
    %7 = vector.load %arg7[%c0_10, %c0_11, %c0_12] : memref<10x16x128xbf16, #tpu.memory_space<vmem>>, vector<10x1x128xbf16>
    tpu.vector_store %arg7[%c0_10, %c0_11, %c0_12], %6 {strides = array<i32>} : memref<10x16x128xbf16, #tpu.memory_space<vmem>>, vector<10x1x128xbf16>,
    %cst_13 = arith.constant 0.000000e+00 : bf16
    %8 = vector.broadcast %cst_13 : bf16 to vector<10x7x128xbf16>
    %c0_14 = arith.constant 0 : index
    %c9_15 = arith.constant 9 : index
    %c0_16 = arith.constant 0 : index
    %9 = vector.load %arg7[%c0_14, %c9_15, %c0_16] : memref<10x16x128xbf16, #tpu.memory_space<vmem>>, vector<10x7x128xbf16>
    tpu.vector_store %arg7[%c0_14, %c9_15, %c0_16], %8 {strides = array<i32>} : memref<10x16x128xbf16, #tpu.memory_space<vmem>>, vector<10x7x128xbf16>,
    %cst_17 = arith.constant 0.000000e+00 : bf16
    %10 = vector.broadcast %cst_17 : bf16 to vector<1x16x128xbf16>
    %c0_18 = arith.constant 0 : index
    %c0_19 = arith.constant 0 : index
    %c0_20 = arith.constant 0 : index
    %c0_21 = arith.constant 0 : index
    %11 = vector.load %arg6[%c0_18, %c0_19, %c0_20, %c0_21] : memref<1x10x16x128xbf16, #tpu.memory_space<vmem>>, vector<1x1x16x128xbf16>
    %12 = vector.shape_cast %11 : vector<1x1x16x128xbf16> to vector<1x16x128xbf16>
    %13 = vector.shape_cast %10 : vector<1x16x128xbf16> to vector<1x1x16x128xbf16>
    tpu.vector_store %arg6[%c0_18, %c0_19, %c0_20, %c0_21], %13 {strides = array<i32>} : memref<1x10x16x128xbf16, #tpu.memory_space<vmem>>, vector<1x1x16x128xbf16>,
    %cst_22 = arith.constant 0.000000e+00 : bf16
    %14 = vector.broadcast %cst_22 : bf16 to vector<1x16x128xbf16>
    %c0_23 = arith.constant 0 : index
    %c9_24 = arith.constant 9 : index
    %c0_25 = arith.constant 0 : index
    %c0_26 = arith.constant 0 : index
    %15 = vector.load %arg6[%c0_23, %c9_24, %c0_25, %c0_26] : memref<1x10x16x128xbf16, #tpu.memory_space<vmem>>, vector<1x1x16x128xbf16>
    %16 = vector.shape_cast %15 : vector<1x1x16x128xbf16> to vector<1x16x128xbf16>
    %17 = vector.shape_cast %14 : vector<1x16x128xbf16> to vector<1x1x16x128xbf16>
    tpu.vector_store %arg6[%c0_23, %c9_24, %c0_25, %c0_26], %17 {strides = array<i32>} : memref<1x10x16x128xbf16, #tpu.memory_space<vmem>>, vector<1x1x16x128xbf16>,
    %cst_27 = arith.constant 0.000000e+00 : bf16
    %18 = vector.broadcast %cst_27 : bf16 to vector<10x1x128xbf16>
    %c0_28 = arith.constant 0 : index
    %c0_29 = arith.constant 0 : index
    %c0_30 = arith.constant 0 : index
    %c0_31 = arith.constant 0 : index
    %19 = vector.load %arg6[%c0_28, %c0_29, %c0_30, %c0_31] : memref<1x10x16x128xbf16, #tpu.memory_space<vmem>>, vector<1x10x1x128xbf16>
    %20 = vector.shape_cast %19 : vector<1x10x1x128xbf16> to vector<10x1x128xbf16>
    %21 = vector.shape_cast %18 : vector<10x1x128xbf16> to vector<1x10x1x128xbf16>
    tpu.vector_store %arg6[%c0_28, %c0_29, %c0_30, %c0_31], %21 {strides = array<i32>} : memref<1x10x16x128xbf16, #tpu.memory_space<vmem>>, vector<1x10x1x128xbf16>,
    %cst_32 = arith.constant 0.000000e+00 : bf16
    %22 = vector.broadcast %cst_32 : bf16 to vector<10x7x128xbf16>
    %c0_33 = arith.constant 0 : index
    %c0_34 = arith.constant 0 : index
    %c9_35 = arith.constant 9 : index
    %c0_36 = arith.constant 0 : index
    %23 = vector.load %arg6[%c0_33, %c0_34, %c9_35, %c0_36] : memref<1x10x16x128xbf16, #tpu.memory_space<vmem>>, vector<1x10x7x128xbf16>
    %24 = vector.shape_cast %23 : vector<1x10x7x128xbf16> to vector<10x7x128xbf16>
    %25 = vector.shape_cast %22 : vector<10x7x128xbf16> to vector<1x10x7x128xbf16>
    tpu.vector_store %arg6[%c0_33, %c0_34, %c9_35, %c0_36], %25 {strides = array<i32>} : memref<1x10x16x128xbf16, #tpu.memory_space<vmem>>, vector<1x10x7x128xbf16>,
    %c0_i32 = arith.constant 0 : i32
    %c8_i32 = arith.constant 8 : i32
    %26 = arith.muli %c0_i32, %c8_i32 : i32
    %27 = tpu.assume_multiple %26, 8 : i32
    %cst_37 = arith.constant 0.000000e+00 : f32
    %28 = vector.broadcast %cst_37 : f32 to vector<64x128xf32>
    %c0_i32_38 = arith.constant 0 : i32
    %29 = arith.addi %27, %c0_i32_38 : i32
    %c0_39 = arith.constant 0 : index
    %30 = arith.index_cast %29 : i32 to index
    %c0_40 = arith.constant 0 : index
    %c0_41 = arith.constant 0 : index
    %31 = vector.load %arg1[%c0_39, %30, %c0_40, %c0_41] : memref<1x10x16x128xbf16, #tpu.memory_space<vmem>>, vector<1x8x8x128xbf16>
    %32 = vector.shape_cast %31 : vector<1x8x8x128xbf16> to vector<8x8x128xbf16>
    %33 = vector.shape_cast %32 : vector<8x8x128xbf16> to vector<64x128xbf16>
    %c0_42 = arith.constant 0 : index
    %c0_43 = arith.constant 0 : index
    %34 = vector.load %arg2[%c0_42, %c0_43] : memref<1152x128xbf16, #tpu.memory_space<vmem>>, vector<128x128xbf16>
    %cst_44 = arith.constant dense<0.000000e+00> : vector<64x128xf32>
    %35 = tpu.matmul %33, %34, %cst_44 {dimension_numbers = #tpu.dot_dimension_numbers<[1], [0], [0], [1], [0, 0, 1, 1], [], []>} : vector<64x128xbf16>, vector<128x128xbf16>, vector<64x128xf32> -> vector<64x128xf32>
    %36 = arith.addf %28, %35 : vector<64x128xf32>
    %c0_i32_45 = arith.constant 0 : i32
    %37 = arith.addi %27, %c0_i32_45 : i32
    %c0_46 = arith.constant 0 : index
    %38 = arith.index_cast %37 : i32 to index
    %c1 = arith.constant 1 : index
    %c0_47 = arith.constant 0 : index
    %39 = vector.load %arg1[%c0_46, %38, %c1, %c0_47] : memref<1x10x16x128xbf16, #tpu.memory_space<vmem>>, vector<1x8x8x128xbf16>
    %40 = vector.shape_cast %39 : vector<1x8x8x128xbf16> to vector<8x8x128xbf16>
    %41 = vector.shape_cast %40 : vector<8x8x128xbf16> to vector<64x128xbf16>
    %c128 = arith.constant 128 : index
    %c0_48 = arith.constant 0 : index
    %42 = vector.load %arg2[%c128, %c0_48] : memref<1152x128xbf16, #tpu.memory_space<vmem>>, vector<128x128xbf16>
    %cst_49 = arith.constant dense<0.000000e+00> : vector<64x128xf32>
    %43 = tpu.matmul %41, %42, %cst_49 {dimension_numbers = #tpu.dot_dimension_numbers<[1], [0], [0], [1], [0, 0, 1, 1], [], []>} : vector<64x128xbf16>, vector<128x128xbf16>, vector<64x128xf32> -> vector<64x128xf32>
    %44 = arith.addf %36, %43 : vector<64x128xf32>
    %c0_i32_50 = arith.constant 0 : i32
    %45 = arith.addi %27, %c0_i32_50 : i32
    %c0_51 = arith.constant 0 : index
    %46 = arith.index_cast %45 : i32 to index
    %c2 = arith.constant 2 : index
    %c0_52 = arith.constant 0 : index
    %47 = vector.load %arg1[%c0_51, %46, %c2, %c0_52] : memref<1x10x16x128xbf16, #tpu.memory_space<vmem>>, vector<1x8x8x128xbf16>
    %48 = vector.shape_cast %47 : vector<1x8x8x128xbf16> to vector<8x8x128xbf16>
    %49 = vector.shape_cast %48 : vector<8x8x128xbf16> to vector<64x128xbf16>
    %c256 = arith.constant 256 : index
    %c0_53 = arith.constant 0 : index
    %50 = vector.load %arg2[%c256, %c0_53] : memref<1152x128xbf16, #tpu.memory_space<vmem>>, vector<128x128xbf16>
    %cst_54 = arith.constant dense<0.000000e+00> : vector<64x128xf32>
    %51 = tpu.matmul %49, %50, %cst_54 {dimension_numbers = #tpu.dot_dimension_numbers<[1], [0], [0], [1], [0, 0, 1, 1], [], []>} : vector<64x128xbf16>, vector<128x128xbf16>, vector<64x128xf32> -> vector<64x128xf32>
    %52 = arith.addf %44, %51 : vector<64x128xf32>
    %c1_i32 = arith.constant 1 : i32
    %53 = arith.addi %27, %c1_i32 : i32
    %c0_55 = arith.constant 0 : index
    %54 = arith.index_cast %53 : i32 to index
    %c0_56 = arith.constant 0 : index
    %c0_57 = arith.constant 0 : index
    %55 = vector.load %arg1[%c0_55, %54, %c0_56, %c0_57] : memref<1x10x16x128xbf16, #tpu.memory_space<vmem>>, vector<1x8x8x128xbf16>
    %56 = vector.shape_cast %55 : vector<1x8x8x128xbf16> to vector<8x8x128xbf16>
    %57 = vector.shape_cast %56 : vector<8x8x128xbf16> to vector<64x128xbf16>
    %c384 = arith.constant 384 : index
    %c0_58 = arith.constant 0 : index
    %58 = vector.load %arg2[%c384, %c0_58] : memref<1152x128xbf16, #tpu.memory_space<vmem>>, vector<128x128xbf16>
    %cst_59 = arith.constant dense<0.000000e+00> : vector<64x128xf32>
    %59 = tpu.matmul %57, %58, %cst_59 {dimension_numbers = #tpu.dot_dimension_numbers<[1], [0], [0], [1], [0, 0, 1, 1], [], []>} : vector<64x128xbf16>, vector<128x128xbf16>, vector<64x128xf32> -> vector<64x128xf32>
    %60 = arith.addf %52, %59 : vector<64x128xf32>
    %c1_i32_60 = arith.constant 1 : i32
    %61 = arith.addi %27, %c1_i32_60 : i32
    %c0_61 = arith.constant 0 : index
    %62 = arith.index_cast %61 : i32 to index
    %c1_62 = arith.constant 1 : index
    %c0_63 = arith.constant 0 : index
    %63 = vector.load %arg1[%c0_61, %62, %c1_62, %c0_63] : memref<1x10x16x128xbf16, #tpu.memory_space<vmem>>, vector<1x8x8x128xbf16>
    %64 = vector.shape_cast %63 : vector<1x8x8x128xbf16> to vector<8x8x128xbf16>
    %65 = vector.shape_cast %64 : vector<8x8x128xbf16> to vector<64x128xbf16>
    %c512 = arith.constant 512 : index
    %c0_64 = arith.constant 0 : index
    %66 = vector.load %arg2[%c512, %c0_64] : memref<1152x128xbf16, #tpu.memory_space<vmem>>, vector<128x128xbf16>
    %cst_65 = arith.constant dense<0.000000e+00> : vector<64x128xf32>
    %67 = tpu.matmul %65, %66, %cst_65 {dimension_numbers = #tpu.dot_dimension_numbers<[1], [0], [0], [1], [0, 0, 1, 1], [], []>} : vector<64x128xbf16>, vector<128x128xbf16>, vector<64x128xf32> -> vector<64x128xf32>
    %68 = arith.addf %60, %67 : vector<64x128xf32>
    %c1_i32_66 = arith.constant 1 : i32
    %69 = arith.addi %27, %c1_i32_66 : i32
    %c0_67 = arith.constant 0 : index
    %70 = arith.index_cast %69 : i32 to index
    %c2_68 = arith.constant 2 : index
    %c0_69 = arith.constant 0 : index
    %71 = vector.load %arg1[%c0_67, %70, %c2_68, %c0_69] : memref<1x10x16x128xbf16, #tpu.memory_space<vmem>>, vector<1x8x8x128xbf16>
    %72 = vector.shape_cast %71 : vector<1x8x8x128xbf16> to vector<8x8x128xbf16>
    %73 = vector.shape_cast %72 : vector<8x8x128xbf16> to vector<64x128xbf16>
    %c640 = arith.constant 640 : index
    %c0_70 = arith.constant 0 : index
    %74 = vector.load %arg2[%c640, %c0_70] : memref<1152x128xbf16, #tpu.memory_space<vmem>>, vector<128x128xbf16>
    %cst_71 = arith.constant dense<0.000000e+00> : vector<64x128xf32>
    %75 = tpu.matmul %73, %74, %cst_71 {dimension_numbers = #tpu.dot_dimension_numbers<[1], [0], [0], [1], [0, 0, 1, 1], [], []>} : vector<64x128xbf16>, vector<128x128xbf16>, vector<64x128xf32> -> vector<64x128xf32>
    %76 = arith.addf %68, %75 : vector<64x128xf32>
    %c2_i32 = arith.constant 2 : i32
    %77 = arith.addi %27, %c2_i32 : i32
    %c0_72 = arith.constant 0 : index
    %78 = arith.index_cast %77 : i32 to index
    %c0_73 = arith.constant 0 : index
    %c0_74 = arith.constant 0 : index
    %79 = vector.load %arg1[%c0_72, %78, %c0_73, %c0_74] : memref<1x10x16x128xbf16, #tpu.memory_space<vmem>>, vector<1x8x8x128xbf16>
    %80 = vector.shape_cast %79 : vector<1x8x8x128xbf16> to vector<8x8x128xbf16>
    %81 = vector.shape_cast %80 : vector<8x8x128xbf16> to vector<64x128xbf16>
    %c768 = arith.constant 768 : index
    %c0_75 = arith.constant 0 : index
    %82 = vector.load %arg2[%c768, %c0_75] : memref<1152x128xbf16, #tpu.memory_space<vmem>>, vector<128x128xbf16>
    %cst_76 = arith.constant dense<0.000000e+00> : vector<64x128xf32>
    %83 = tpu.matmul %81, %82, %cst_76 {dimension_numbers = #tpu.dot_dimension_numbers<[1], [0], [0], [1], [0, 0, 1, 1], [], []>} : vector<64x128xbf16>, vector<128x128xbf16>, vector<64x128xf32> -> vector<64x128xf32>
    %84 = arith.addf %76, %83 : vector<64x128xf32>
    %c2_i32_77 = arith.constant 2 : i32
    %85 = arith.addi %27, %c2_i32_77 : i32
    %c0_78 = arith.constant 0 : index
    %86 = arith.index_cast %85 : i32 to index
    %c1_79 = arith.constant 1 : index
    %c0_80 = arith.constant 0 : index
    %87 = vector.load %arg1[%c0_78, %86, %c1_79, %c0_80] : memref<1x10x16x128xbf16, #tpu.memory_space<vmem>>, vector<1x8x8x128xbf16>
    %88 = vector.shape_cast %87 : vector<1x8x8x128xbf16> to vector<8x8x128xbf16>
    %89 = vector.shape_cast %88 : vector<8x8x128xbf16> to vector<64x128xbf16>
    %c896 = arith.constant 896 : index
    %c0_81 = arith.constant 0 : index
    %90 = vector.load %arg2[%c896, %c0_81] : memref<1152x128xbf16, #tpu.memory_space<vmem>>, vector<128x128xbf16>
    %cst_82 = arith.constant dense<0.000000e+00> : vector<64x128xf32>
    %91 = tpu.matmul %89, %90, %cst_82 {dimension_numbers = #tpu.dot_dimension_numbers<[1], [0], [0], [1], [0, 0, 1, 1], [], []>} : vector<64x128xbf16>, vector<128x128xbf16>, vector<64x128xf32> -> vector<64x128xf32>
    %92 = arith.addf %84, %91 : vector<64x128xf32>
    %c2_i32_83 = arith.constant 2 : i32
    %93 = arith.addi %27, %c2_i32_83 : i32
    %c0_84 = arith.constant 0 : index
    %94 = arith.index_cast %93 : i32 to index
    %c2_85 = arith.constant 2 : index
    %c0_86 = arith.constant 0 : index
    %95 = vector.load %arg1[%c0_84, %94, %c2_85, %c0_86] : memref<1x10x16x128xbf16, #tpu.memory_space<vmem>>, vector<1x8x8x128xbf16>
    %96 = vector.shape_cast %95 : vector<1x8x8x128xbf16> to vector<8x8x128xbf16>
    %97 = vector.shape_cast %96 : vector<8x8x128xbf16> to vector<64x128xbf16>
    %c1024 = arith.constant 1024 : index
    %c0_87 = arith.constant 0 : index
    %98 = vector.load %arg2[%c1024, %c0_87] : memref<1152x128xbf16, #tpu.memory_space<vmem>>, vector<128x128xbf16>
    %cst_88 = arith.constant dense<0.000000e+00> : vector<64x128xf32>
    %99 = tpu.matmul %97, %98, %cst_88 {dimension_numbers = #tpu.dot_dimension_numbers<[1], [0], [0], [1], [0, 0, 1, 1], [], []>} : vector<64x128xbf16>, vector<128x128xbf16>, vector<64x128xf32> -> vector<64x128xf32>
    %100 = arith.addf %92, %99 : vector<64x128xf32>
    %101 = vector.broadcast %0 : vector<1x128xf32> to vector<64x128xf32>
    %102 = arith.addf %100, %101 : vector<64x128xf32>
    %cst_89 = arith.constant 0.000000e+00 : f32
    %103 = vector.broadcast %cst_89 : f32 to vector<64x128xf32>
    %104 = arith.maximumf %102, %103 : vector<64x128xf32>
    %105 = vector.shape_cast %104 : vector<64x128xf32> to vector<8x8x128xf32>
    %106 = arith.truncf %105 : vector<8x8x128xf32> to vector<8x8x128xbf16>
    %c1_i32_90 = arith.constant 1 : i32
    %107 = arith.addi %c1_i32_90, %27 : i32
    %108 = arith.index_cast %107 : i32 to index
    %c1_91 = arith.constant 1 : index
    %c0_92 = arith.constant 0 : index
    %109 = vector.load %arg7[%108, %c1_91, %c0_92] : memref<10x16x128xbf16, #tpu.memory_space<vmem>>, vector<8x8x128xbf16>
    tpu.vector_store %arg7[%108, %c1_91, %c0_92], %106 {strides = array<i32>} : memref<10x16x128xbf16, #tpu.memory_space<vmem>>, vector<8x8x128xbf16>,
    %c1_i32_93 = arith.constant 1 : i32
    %c0_i32_94 = arith.constant 0 : i32
    %c8_i32_95 = arith.constant 8 : i32
    %110 = arith.muli %c0_i32_94, %c8_i32_95 : i32
    %111 = tpu.assume_multiple %110, 8 : i32
    %c1_i32_96 = arith.constant 1 : i32
    %112 = arith.addi %c1_i32_96, %111 : i32
    %c0_97 = arith.constant 0 : index
    %113 = arith.index_cast %112 : i32 to index
    %c1_98 = arith.constant 1 : index
    %c0_99 = arith.constant 0 : index
    %114 = vector.load %arg1[%c0_97, %113, %c1_98, %c0_99] : memref<1x10x16x128xbf16, #tpu.memory_space<vmem>>, vector<1x8x8x128xbf16>
    %115 = vector.shape_cast %114 : vector<1x8x8x128xbf16> to vector<8x8x128xbf16>
    %116 = vector.shape_cast %115 : vector<8x8x128xbf16> to vector<64x128xbf16>
    %117 = arith.extf %116 : vector<64x128xbf16> to vector<64x128xf32>
    %cst_100 = arith.constant 0.000000e+00 : f32
    %118 = vector.broadcast %cst_100 : f32 to vector<64x128xf32>
    %c0_i32_101 = arith.constant 0 : i32
    %119 = arith.addi %111, %c0_i32_101 : i32
    %120 = arith.index_cast %119 : i32 to index
    %c0_102 = arith.constant 0 : index
    %c0_103 = arith.constant 0 : index
    %121 = vector.load %arg7[%120, %c0_102, %c0_103] : memref<10x16x128xbf16, #tpu.memory_space<vmem>>, vector<8x8x128xbf16>
    %122 = vector.shape_cast %121 : vector<8x8x128xbf16> to vector<64x128xbf16>
    %c0_104 = arith.constant 0 : index
    %c0_105 = arith.constant 0 : index
    %123 = vector.load %arg4[%c0_104, %c0_105] : memref<1152x128xbf16, #tpu.memory_space<vmem>>, vector<128x128xbf16>
    %cst_106 = arith.constant dense<0.000000e+00> : vector<64x128xf32>
    %124 = tpu.matmul %122, %123, %cst_106 {dimension_numbers = #tpu.dot_dimension_numbers<[1], [0], [0], [1], [0, 0, 1, 1], [], []>} : vector<64x128xbf16>, vector<128x128xbf16>, vector<64x128xf32> -> vector<64x128xf32>
    %125 = arith.addf %118, %124 : vector<64x128xf32>
    %c0_i32_107 = arith.constant 0 : i32
    %126 = arith.addi %111, %c0_i32_107 : i32
    %127 = arith.index_cast %126 : i32 to index
    %c1_108 = arith.constant 1 : index
    %c0_109 = arith.constant 0 : index
    %128 = vector.load %arg7[%127, %c1_108, %c0_109] : memref<10x16x128xbf16, #tpu.memory_space<vmem>>, vector<8x8x128xbf16>
    %129 = vector.shape_cast %128 : vector<8x8x128xbf16> to vector<64x128xbf16>
    %c128_110 = arith.constant 128 : index
    %c0_111 = arith.constant 0 : index
    %130 = vector.load %arg4[%c128_110, %c0_111] : memref<1152x128xbf16, #tpu.memory_space<vmem>>, vector<128x128xbf16>
    %cst_112 = arith.constant dense<0.000000e+00> : vector<64x128xf32>
    %131 = tpu.matmul %129, %130, %cst_112 {dimension_numbers = #tpu.dot_dimension_numbers<[1], [0], [0], [1], [0, 0, 1, 1], [], []>} : vector<64x128xbf16>, vector<128x128xbf16>, vector<64x128xf32> -> vector<64x128xf32>
    %132 = arith.addf %125, %131 : vector<64x128xf32>
    %c0_i32_113 = arith.constant 0 : i32
    %133 = arith.addi %111, %c0_i32_113 : i32
    %134 = arith.index_cast %133 : i32 to index
    %c2_114 = arith.constant 2 : index
    %c0_115 = arith.constant 0 : index
    %135 = vector.load %arg7[%134, %c2_114, %c0_115] : memref<10x16x128xbf16, #tpu.memory_space<vmem>>, vector<8x8x128xbf16>
    %136 = vector.shape_cast %135 : vector<8x8x128xbf16> to vector<64x128xbf16>
    %c256_116 = arith.constant 256 : index
    %c0_117 = arith.constant 0 : index
    %137 = vector.load %arg4[%c256_116, %c0_117] : memref<1152x128xbf16, #tpu.memory_space<vmem>>, vector<128x128xbf16>
    %cst_118 = arith.constant dense<0.000000e+00> : vector<64x128xf32>
    %138 = tpu.matmul %136, %137, %cst_118 {dimension_numbers = #tpu.dot_dimension_numbers<[1], [0], [0], [1], [0, 0, 1, 1], [], []>} : vector<64x128xbf16>, vector<128x128xbf16>, vector<64x128xf32> -> vector<64x128xf32>
    %139 = arith.addf %132, %138 : vector<64x128xf32>
    %c1_i32_119 = arith.constant 1 : i32
    %140 = arith.addi %111, %c1_i32_119 : i32
    %141 = arith.index_cast %140 : i32 to index
    %c0_120 = arith.constant 0 : index
    %c0_121 = arith.constant 0 : index
    %142 = vector.load %arg7[%141, %c0_120, %c0_121] : memref<10x16x128xbf16, #tpu.memory_space<vmem>>, vector<8x8x128xbf16>
    %143 = vector.shape_cast %142 : vector<8x8x128xbf16> to vector<64x128xbf16>
    %c384_122 = arith.constant 384 : index
    %c0_123 = arith.constant 0 : index
    %144 = vector.load %arg4[%c384_122, %c0_123] : memref<1152x128xbf16, #tpu.memory_space<vmem>>, vector<128x128xbf16>
    %cst_124 = arith.constant dense<0.000000e+00> : vector<64x128xf32>
    %145 = tpu.matmul %143, %144, %cst_124 {dimension_numbers = #tpu.dot_dimension_numbers<[1], [0], [0], [1], [0, 0, 1, 1], [], []>} : vector<64x128xbf16>, vector<128x128xbf16>, vector<64x128xf32> -> vector<64x128xf32>
    %146 = arith.addf %139, %145 : vector<64x128xf32>
    %c1_i32_125 = arith.constant 1 : i32
    %147 = arith.addi %111, %c1_i32_125 : i32
    %148 = arith.index_cast %147 : i32 to index
    %c1_126 = arith.constant 1 : index
    %c0_127 = arith.constant 0 : index
    %149 = vector.load %arg7[%148, %c1_126, %c0_127] : memref<10x16x128xbf16, #tpu.memory_space<vmem>>, vector<8x8x128xbf16>
    %150 = vector.shape_cast %149 : vector<8x8x128xbf16> to vector<64x128xbf16>
    %c512_128 = arith.constant 512 : index
    %c0_129 = arith.constant 0 : index
    %151 = vector.load %arg4[%c512_128, %c0_129] : memref<1152x128xbf16, #tpu.memory_space<vmem>>, vector<128x128xbf16>
    %cst_130 = arith.constant dense<0.000000e+00> : vector<64x128xf32>
    %152 = tpu.matmul %150, %151, %cst_130 {dimension_numbers = #tpu.dot_dimension_numbers<[1], [0], [0], [1], [0, 0, 1, 1], [], []>} : vector<64x128xbf16>, vector<128x128xbf16>, vector<64x128xf32> -> vector<64x128xf32>
    %153 = arith.addf %146, %152 : vector<64x128xf32>
    %c1_i32_131 = arith.constant 1 : i32
    %154 = arith.addi %111, %c1_i32_131 : i32
    %155 = arith.index_cast %154 : i32 to index
    %c2_132 = arith.constant 2 : index
    %c0_133 = arith.constant 0 : index
    %156 = vector.load %arg7[%155, %c2_132, %c0_133] : memref<10x16x128xbf16, #tpu.memory_space<vmem>>, vector<8x8x128xbf16>
    %157 = vector.shape_cast %156 : vector<8x8x128xbf16> to vector<64x128xbf16>
    %c640_134 = arith.constant 640 : index
    %c0_135 = arith.constant 0 : index
    %158 = vector.load %arg4[%c640_134, %c0_135] : memref<1152x128xbf16, #tpu.memory_space<vmem>>, vector<128x128xbf16>
    %cst_136 = arith.constant dense<0.000000e+00> : vector<64x128xf32>
    %159 = tpu.matmul %157, %158, %cst_136 {dimension_numbers = #tpu.dot_dimension_numbers<[1], [0], [0], [1], [0, 0, 1, 1], [], []>} : vector<64x128xbf16>, vector<128x128xbf16>, vector<64x128xf32> -> vector<64x128xf32>
    %160 = arith.addf %153, %159 : vector<64x128xf32>
    %c2_i32_137 = arith.constant 2 : i32
    %161 = arith.addi %111, %c2_i32_137 : i32
    %162 = arith.index_cast %161 : i32 to index
    %c0_138 = arith.constant 0 : index
    %c0_139 = arith.constant 0 : index
    %163 = vector.load %arg7[%162, %c0_138, %c0_139] : memref<10x16x128xbf16, #tpu.memory_space<vmem>>, vector<8x8x128xbf16>
    %164 = vector.shape_cast %163 : vector<8x8x128xbf16> to vector<64x128xbf16>
    %c768_140 = arith.constant 768 : index
    %c0_141 = arith.constant 0 : index
    %165 = vector.load %arg4[%c768_140, %c0_141] : memref<1152x128xbf16, #tpu.memory_space<vmem>>, vector<128x128xbf16>
    %cst_142 = arith.constant dense<0.000000e+00> : vector<64x128xf32>
    %166 = tpu.matmul %164, %165, %cst_142 {dimension_numbers = #tpu.dot_dimension_numbers<[1], [0], [0], [1], [0, 0, 1, 1], [], []>} : vector<64x128xbf16>, vector<128x128xbf16>, vector<64x128xf32> -> vector<64x128xf32>
    %167 = arith.addf %160, %166 : vector<64x128xf32>
    %c2_i32_143 = arith.constant 2 : i32
    %168 = arith.addi %111, %c2_i32_143 : i32
    %169 = arith.index_cast %168 : i32 to index
    %c1_144 = arith.constant 1 : index
    %c0_145 = arith.constant 0 : index
    %170 = vector.load %arg7[%169, %c1_144, %c0_145] : memref<10x16x128xbf16, #tpu.memory_space<vmem>>, vector<8x8x128xbf16>
    %171 = vector.shape_cast %170 : vector<8x8x128xbf16> to vector<64x128xbf16>
    %c896_146 = arith.constant 896 : index
    %c0_147 = arith.constant 0 : index
    %172 = vector.load %arg4[%c896_146, %c0_147] : memref<1152x128xbf16, #tpu.memory_space<vmem>>, vector<128x128xbf16>
    %cst_148 = arith.constant dense<0.000000e+00> : vector<64x128xf32>
    %173 = tpu.matmul %171, %172, %cst_148 {dimension_numbers = #tpu.dot_dimension_numbers<[1], [0], [0], [1], [0, 0, 1, 1], [], []>} : vector<64x128xbf16>, vector<128x128xbf16>, vector<64x128xf32> -> vector<64x128xf32>
    %174 = arith.addf %167, %173 : vector<64x128xf32>
    %c2_i32_149 = arith.constant 2 : i32
    %175 = arith.addi %111, %c2_i32_149 : i32
    %176 = arith.index_cast %175 : i32 to index
    %c2_150 = arith.constant 2 : index
    %c0_151 = arith.constant 0 : index
    %177 = vector.load %arg7[%176, %c2_150, %c0_151] : memref<10x16x128xbf16, #tpu.memory_space<vmem>>, vector<8x8x128xbf16>
    %178 = vector.shape_cast %177 : vector<8x8x128xbf16> to vector<64x128xbf16>
    %c1024_152 = arith.constant 1024 : index
    %c0_153 = arith.constant 0 : index
    %179 = vector.load %arg4[%c1024_152, %c0_153] : memref<1152x128xbf16, #tpu.memory_space<vmem>>, vector<128x128xbf16>
    %cst_154 = arith.constant dense<0.000000e+00> : vector<64x128xf32>
    %180 = tpu.matmul %178, %179, %cst_154 {dimension_numbers = #tpu.dot_dimension_numbers<[1], [0], [0], [1], [0, 0, 1, 1], [], []>} : vector<64x128xbf16>, vector<128x128xbf16>, vector<64x128xf32> -> vector<64x128xf32>
    %181 = arith.addf %174, %180 : vector<64x128xf32>
    %182 = vector.broadcast %1 : vector<1x128xf32> to vector<64x128xf32>
    %183 = arith.addf %181, %182 : vector<64x128xf32>
    %184 = arith.addf %183, %117 : vector<64x128xf32>
    %185 = vector.shape_cast %184 : vector<64x128xf32> to vector<8x8x128xf32>
    %186 = arith.truncf %185 : vector<8x8x128xf32> to vector<8x8x128xbf16>
    %c1_i32_155 = arith.constant 1 : i32
    %187 = arith.addi %c1_i32_155, %111 : i32
    %c0_156 = arith.constant 0 : index
    %188 = arith.index_cast %187 : i32 to index
    %c1_157 = arith.constant 1 : index
    %c0_158 = arith.constant 0 : index
    %189 = vector.load %arg6[%c0_156, %188, %c1_157, %c0_158] : memref<1x10x16x128xbf16, #tpu.memory_space<vmem>>, vector<1x8x8x128xbf16>
    %190 = vector.shape_cast %189 : vector<1x8x8x128xbf16> to vector<8x8x128xbf16>
    %191 = vector.shape_cast %186 : vector<8x8x128xbf16> to vector<1x8x8x128xbf16>
    tpu.vector_store %arg6[%c0_156, %188, %c1_157, %c0_158], %191 {strides = array<i32>} : memref<1x10x16x128xbf16, #tpu.memory_space<vmem>>, vector<1x8x8x128xbf16>,
    %c1_i32_159 = arith.constant 1 : i32
    return
  }
  func.func @transform_0(%arg0: i32) -> (i32, i32, i32, i32) {
    %c0_i32 = arith.constant 0 : i32
    %c0_i32_0 = arith.constant 0 : i32
    %c0_i32_1 = arith.constant 0 : i32
    %c0_i32_2 = arith.constant 0 : i32
    return %arg0, %c0_i32, %c0_i32_0, %c0_i32_1 : i32, i32, i32, i32
  }
  func.func @transform_1(%arg0: i32) -> (i32, i32) {
    %c0_i32 = arith.constant 0 : i32
    %c0_i32_0 = arith.constant 0 : i32
    %c0_i32_1 = arith.constant 0 : i32
    return %c0_i32, %c0_i32_0 : i32, i32
  }
  func.func @transform_2(%arg0: i32) -> (i32, i32) {
    %c0_i32 = arith.constant 0 : i32
    %c0_i32_0 = arith.constant 0 : i32
    %c0_i32_1 = arith.constant 0 : i32
    return %c0_i32, %c0_i32_0 : i32, i32
  }
  func.func @transform_3(%arg0: i32) -> (i32, i32) {
    %c0_i32 = arith.constant 0 : i32
    %c0_i32_0 = arith.constant 0 : i32
    %c0_i32_1 = arith.constant 0 : i32
    return %c0_i32, %c0_i32_0 : i32, i32
  }
  func.func @transform_4(%arg0: i32) -> (i32, i32) {
    %c0_i32 = arith.constant 0 : i32
    %c0_i32_0 = arith.constant 0 : i32
    %c0_i32_1 = arith.constant 0 : i32
    return %c0_i32, %c0_i32_0 : i32, i32
  }
  func.func @transform_5(%arg0: i32) -> (i32, i32, i32, i32) {
    %c0_i32 = arith.constant 0 : i32
    %c0_i32_0 = arith.constant 0 : i32
    %c0_i32_1 = arith.constant 0 : i32
    %c0_i32_2 = arith.constant 0 : i32
    return %arg0, %c0_i32, %c0_i32_0, %c0_i32_1 : i32, i32, i32, i32
  }
}

module attributes {stable_mosaic.version = 11 : i64} {
  func.func @_matmul_bias_kernel(%arg0: i32, %arg1: memref<320x128xbf16, #tpu.memory_space<vmem>>, %arg2: memref<128x128xbf16, #tpu.memory_space<vmem>>, %arg3: memref<1x128xf32, #tpu.memory_space<vmem>>, %arg4: memref<320x128xf32, #tpu.memory_space<vmem>>) attributes {dimension_semantics = [#tpu.dimension_semantics<parallel>], iteration_bounds = array<i64: 1>, scalar_prefetch = 0 : i64, scratch_operands = 0 : i64, tpu.core_type = #tpu.core_type<tc>, window_params = [{transform_indices = @transform_0, window_bounds = array<i64: 320, 128>}, {pipeline_mode = #tpu.pipeline_mode<synchronous>, transform_indices = @transform_1, window_bounds = array<i64: 128, 128>}, {pipeline_mode = #tpu.pipeline_mode<synchronous>, transform_indices = @transform_2, window_bounds = array<i64: 1, 128>}, {transform_indices = @transform_3, window_bounds = array<i64: 320, 128>}]} {
    %c0 = arith.constant 0 : index
    %c0_0 = arith.constant 0 : index
    %0 = vector.load %arg1[%c0, %c0_0] : memref<320x128xbf16, #tpu.memory_space<vmem>>, vector<320x128xbf16>
    %c0_1 = arith.constant 0 : index
    %c0_2 = arith.constant 0 : index
    %1 = vector.load %arg2[%c0_1, %c0_2] : memref<128x128xbf16, #tpu.memory_space<vmem>>, vector<128x128xbf16>
    %cst = arith.constant dense<0.000000e+00> : vector<320x128xf32>
    %2 = tpu.matmul %0, %1, %cst {dimension_numbers = #tpu.dot_dimension_numbers<[1], [0], [0], [1], [0, 0, 1, 1], [], []>} : vector<320x128xbf16>, vector<128x128xbf16>, vector<320x128xf32> -> vector<320x128xf32>
    %c0_3 = arith.constant 0 : index
    %c0_4 = arith.constant 0 : index
    %3 = vector.load %arg3[%c0_3, %c0_4] : memref<1x128xf32, #tpu.memory_space<vmem>>, vector<1x128xf32>
    %4 = vector.broadcast %3 : vector<1x128xf32> to vector<320x128xf32>
    %5 = arith.addf %2, %4 : vector<320x128xf32>
    %c0_5 = arith.constant 0 : index
    %c0_6 = arith.constant 0 : index
    %6 = vector.load %arg4[%c0_5, %c0_6] : memref<320x128xf32, #tpu.memory_space<vmem>>, vector<320x128xf32>
    tpu.vector_store %arg4[%c0_5, %c0_6], %5 {strides = array<i32>} : memref<320x128xf32, #tpu.memory_space<vmem>>, vector<320x128xf32>,
    return
  }
  func.func @transform_0(%arg0: i32) -> (i32, i32) {
    %c0_i32 = arith.constant 0 : i32
    %c0_i32_0 = arith.constant 0 : i32
    return %arg0, %c0_i32 : i32, i32
  }
  func.func @transform_1(%arg0: i32) -> (i32, i32) {
    %c0_i32 = arith.constant 0 : i32
    %c0_i32_0 = arith.constant 0 : i32
    %c0_i32_1 = arith.constant 0 : i32
    return %c0_i32, %c0_i32_0 : i32, i32
  }
  func.func @transform_2(%arg0: i32) -> (i32, i32) {
    %c0_i32 = arith.constant 0 : i32
    %c0_i32_0 = arith.constant 0 : i32
    %c0_i32_1 = arith.constant 0 : i32
    return %c0_i32, %c0_i32_0 : i32, i32
  }
  func.func @transform_3(%arg0: i32) -> (i32, i32) {
    %c0_i32 = arith.constant 0 : i32
    %c0_i32_0 = arith.constant 0 : i32
    return %arg0, %c0_i32 : i32, i32
  }
}

</mosaic_0001>

<llo_original>
// kernel: extractor_forward.7
$region0: #{extractor_forward.7}
  #allocation0 [shape = 'u32[]', space=smem, size = 0x4, offset = 0x4, fixed_abs, tag = 'smem constant byte address 0x4 - core index']
  #allocation1 [shape = 'u32[144,128]{1,0:T(1,128)}', space=vmem, size = 0x12000, scoped, tag = 'internal scratch']
  %s0 = inlined_call_operand.vmem [shape: bf16[320,128], index: 0, kind: input, shape index: {}]
  %s1 = inlined_call_operand.vmem [shape: bf16[128,128], index: 1, kind: input, shape index: {}]
  %s2 = inlined_call_operand.vmem [shape: f32[1,128], index: 2, kind: input, shape index: {}]
  %s3 = inlined_call_operand.vmem [shape: f32[320,128], index: 3, kind: output, shape index: {}]
  %s4 = sld [smem:[#allocation0]]
  $region22: #{extractor_forward.7} parent=0
    _
  %s6 = ssub.s32 1, %s4
  %s7 = scalar_select 0, %s6, %s4
  // Predicated region
  $region2: #{extractor_forward.7} parent=0 // pred_check
    _
  $region3: #{extractor_forward.7} parent=0 // pred_check_branch
    %9 = sbr.rel (0) target = $region5
  $region4: #{extractor_forward.7} parent=0 // pred_region
    _
  $region5: #{extractor_forward.7} parent=0 // pred_fallthru
    _
  // Predicated region
  $region6: #{extractor_forward.7} parent=0 // pred_check
    _
  $region7: #{extractor_forward.7} parent=0 // pred_check_branch
    %11 = sbr.rel (0) target = $region9
  $region8: #{extractor_forward.7} parent=0 // pred_region
    _
  $region9: #{extractor_forward.7} parent=0 // pred_fallthru
    _
  // Predicated region
  $region10: #{extractor_forward.7} parent=0 // pred_check
    _
  $region11: #{extractor_forward.7} parent=0 // pred_check_branch
    %13 = sbr.rel (0) target = $region13
  $region12: #{extractor_forward.7} parent=0 // pred_region
    _
  $region13: #{extractor_forward.7} parent=0 // pred_fallthru
    _
  %v15 = vld [vmem:[%s0] sm:$0xf]
  %v16 = vld [vmem:[%s0 + $0x4] sm:$0xf]
  %v17 = vld [vmem:[%s0 + $0x8] sm:$0xf]
  %v18 = vld [vmem:[%s0 + $0xc] sm:$0xf]
  %v19 = vld [vmem:[%s0 + $0x10] sm:$0xf]
  %v20 = vld [vmem:[%s0 + $0x14] sm:$0xf]
  %v21 = vld [vmem:[%s0 + $0x18] sm:$0xf]
  %v22 = vld [vmem:[%s0 + $0x1c] sm:$0xf]
  %v23 = vld [vmem:[%s0 + $0x20] sm:$0xf]
  %v24 = vld [vmem:[%s0 + $0x24] sm:$0xf]
  %v25 = vld [vmem:[%s0 + $0x28] sm:$0xf]
  %v26 = vld [vmem:[%s0 + $0x2c] sm:$0xf]
  %v27 = vld [vmem:[%s0 + $0x30] sm:$0xf]
  %v28 = vld [vmem:[%s0 + $0x34] sm:$0xf]
  %v29 = vld [vmem:[%s0 + $0x38] sm:$0xf]
  %v30 = vld [vmem:[%s0 + $0x3c] sm:$0xf]
  %v31 = vld [vmem:[%s0 + $0x40] sm:$0xf]
  %v32 = vld [vmem:[%s0 + $0x44] sm:$0xf]
  %v33 = vld [vmem:[%s0 + $0x48] sm:$0xf]
  %v34 = vld [vmem:[%s0 + $0x4c] sm:$0xf]
  %v35 = vld [vmem:[%s0 + $0x50] sm:$0xf]
  %v36 = vld [vmem:[%s0 + $0x54] sm:$0xf]
  %v37 = vld [vmem:[%s0 + $0x58] sm:$0xf]
  %v38 = vld [vmem:[%s0 + $0x5c] sm:$0xf]
  %v39 = vld [vmem:[%s0 + $0x60] sm:$0xf]
  %v40 = vld [vmem:[%s0 + $0x64] sm:$0xf]
  %v41 = vld [vmem:[%s0 + $0x68] sm:$0xf]
  %v42 = vld [vmem:[%s0 + $0x6c] sm:$0xf]
  %v43 = vld [vmem:[%s0 + $0x70] sm:$0xf]
  %v44 = vld [vmem:[%s0 + $0x74] sm:$0xf]
  %v45 = vld [vmem:[%s0 + $0x78] sm:$0xf]
  %v46 = vld [vmem:[%s0 + $0x7c] sm:$0xf]
  %v47 = vld [vmem:[%s0 + $0x80] sm:$0xf]
  %v48 = vld [vmem:[%s0 + $0x84] sm:$0xf]
  %v49 = vld [vmem:[%s0 + $0x88] sm:$0xf]
  %v50 = vld [vmem:[%s0 + $0x8c] sm:$0xf]
  %v51 = vld [vmem:[%s0 + $0x90] sm:$0xf]
  %v52 = vld [vmem:[%s0 + $0x94] sm:$0xf]
  %v53 = vld [vmem:[%s0 + $0x98] sm:$0xf]
  %v54 = vld [vmem:[%s0 + $0x9c] sm:$0xf]
  %v55 = vld [vmem:[%s1] sm:$0xf]
  %v56 = vld [vmem:[%s1 + $0x4] sm:$0xf]
  %v57 = vld [vmem:[%s1 + $0x8] sm:$0xf]
  %v58 = vld [vmem:[%s1 + $0xc] sm:$0xf]
  %v59 = vld [vmem:[%s1 + $0x10] sm:$0xf]
  %v60 = vld [vmem:[%s1 + $0x14] sm:$0xf]
  %v61 = vld [vmem:[%s1 + $0x18] sm:$0xf]
  %v62 = vld [vmem:[%s1 + $0x1c] sm:$0xf]
  %v63 = vld [vmem:[%s1 + $0x20] sm:$0xf]
  %v64 = vld [vmem:[%s1 + $0x24] sm:$0xf]
  %v65 = vld [vmem:[%s1 + $0x28] sm:$0xf]
  %v66 = vld [vmem:[%s1 + $0x2c] sm:$0xf]
  %v67 = vld [vmem:[%s1 + $0x30] sm:$0xf]
  %v68 = vld [vmem:[%s1 + $0x34] sm:$0xf]
  %v69 = vld [vmem:[%s1 + $0x38] sm:$0xf]
  %v70 = vld [vmem:[%s1 + $0x3c] sm:$0xf]
  %v71 = vld [vmem:[%s2] sm:$0x1]
  %v73 = vlaneseq
  %v74 = vshrl.u32 %v73, 7
  %v75 = vsub.s32 0, %v74
  %v76 = vrot.slane %v71, %v75
  %v118 = vunpack.c.l.b16 %v15
  %v119 = vunpack.c.l.b16 %v16
  %v120 = vunpack.c.l.b16 %v17
  %v121 = vunpack.c.l.b16 %v18
  %v122 = vunpack.c.l.b16 %v19
  %v123 = vunpack.c.l.b16 %v20
  %v124 = vunpack.c.l.b16 %v21
  %v125 = vunpack.c.l.b16 %v22
  %v126 = vunpack.c.l.b16 %v23
  %v127 = vunpack.c.l.b16 %v24
  %v128 = vunpack.c.l.b16 %v25
  %v129 = vunpack.c.l.b16 %v26
  %v130 = vunpack.c.l.b16 %v27
  %v131 = vunpack.c.l.b16 %v28
  %v132 = vunpack.c.l.b16 %v29
  %v133 = vunpack.c.l.b16 %v30
  %v134 = vunpack.c.l.b16 %v31
  %v135 = vunpack.c.l.b16 %v32
  %v136 = vunpack.c.l.b16 %v33
  %v137 = vunpack.c.l.b16 %v34
  %v138 = vunpack.c.l.b16 %v35
  %v139 = vunpack.c.l.b16 %v36
  %v140 = vunpack.c.l.b16 %v37
  %v141 = vunpack.c.l.b16 %v38
  %v142 = vunpack.c.l.b16 %v39
  %v143 = vunpack.c.l.b16 %v40
  %v144 = vunpack.c.l.b16 %v41
  %v145 = vunpack.c.l.b16 %v42
  %v146 = vunpack.c.l.b16 %v43
  %v147 = vunpack.c.l.b16 %v44
  %v148 = vunpack.c.l.b16 %v45
  %v149 = vunpack.c.l.b16 %v46
  %v150 = vunpack.c.l.b16 %v47
  %v151 = vunpack.c.l.b16 %v48
  %v152 = vunpack.c.l.b16 %v49
  %v153 = vunpack.c.l.b16 %v50
  %v154 = vunpack.c.l.b16 %v51
  %v155 = vunpack.c.l.b16 %v52
  %v156 = vunpack.c.l.b16 %v53
  %v157 = vunpack.c.l.b16 %v54
  %v158 = vpack.c.b16 %v119, %v118
  %v159 = vpack.c.b16 %v121, %v120
  %v160 = vpack.c.b16 %v123, %v122
  %v161 = vpack.c.b16 %v125, %v124
  %v162 = vpack.c.b16 %v127, %v126
  %v163 = vpack.c.b16 %v129, %v128
  %v164 = vpack.c.b16 %v131, %v130
  %v165 = vpack.c.b16 %v133, %v132
  %v166 = vpack.c.b16 %v135, %v134
  %v167 = vpack.c.b16 %v137, %v136
  %v168 = vpack.c.b16 %v139, %v138
  %v169 = vpack.c.b16 %v141, %v140
  %v170 = vpack.c.b16 %v143, %v142
  %v171 = vpack.c.b16 %v145, %v144
  %v172 = vpack.c.b16 %v147, %v146
  %v173 = vpack.c.b16 %v149, %v148
  %v174 = vpack.c.b16 %v151, %v150
  %v175 = vpack.c.b16 %v153, %v152
  %v176 = vpack.c.b16 %v155, %v154
  %v177 = vpack.c.b16 %v157, %v156
  %v214 = vunpack.c.l.b16 %v55
  %v215 = vunpack.c.l.b16 %v56
  %v216 = vunpack.c.l.b16 %v57
  %v217 = vunpack.c.l.b16 %v58
  %v218 = vunpack.c.l.b16 %v59
  %v219 = vunpack.c.l.b16 %v60
  %v220 = vunpack.c.l.b16 %v61
  %v221 = vunpack.c.l.b16 %v62
  %v222 = vunpack.c.l.b16 %v63
  %v223 = vunpack.c.l.b16 %v64
  %v224 = vunpack.c.l.b16 %v65
  %v225 = vunpack.c.l.b16 %v66
  %v226 = vunpack.c.l.b16 %v67
  %v227 = vunpack.c.l.b16 %v68
  %v228 = vunpack.c.l.b16 %v69
  %v229 = vunpack.c.l.b16 %v70
  %v230 = vpack.c.b16 %v215, %v214
  %v231 = vpack.c.b16 %v217, %v216
  %v232 = vpack.c.b16 %v219, %v218
  %v233 = vpack.c.b16 %v221, %v220
  %v234 = vpack.c.b16 %v223, %v222
  %v235 = vpack.c.b16 %v225, %v224
  %v236 = vpack.c.b16 %v227, %v226
  %v237 = vpack.c.b16 %v229, %v228
  %246 = vmatprep.subr.bf16.mxu0 0
  %247 = vmatpush1.bf16.msra.mxu0 %v237
  %248 = vmatprep.subr.bf16.mxu0 0
  %249 = vmatpush1.bf16.msra.mxu0 %v236
  %250 = vmatprep.subr.bf16.mxu0 0
  %251 = vmatpush1.bf16.msra.mxu0 %v235
  %252 = vmatprep.subr.bf16.mxu0 0
  %253 = vmatpush1.bf16.msra.mxu0 %v234
  %254 = vmatprep.subr.bf16.mxu0 0
  %255 = vmatpush1.bf16.msra.mxu0 %v233
  %256 = vmatprep.subr.bf16.mxu0 0
  %257 = vmatpush1.bf16.msra.mxu0 %v232
  %258 = vmatprep.subr.bf16.mxu0 0
  %259 = vmatpush1.bf16.msra.mxu0 %v231
  %260 = vmatprep.subr.bf16.mxu0 0
  %261 = vmatpush1.bf16.msra.mxu0 %v230
  %262 = vmatprep.subr.bf16.mxu0 0
  %263 = vmatpush2.bf16.msra.mxu0 0
  %264 = vmatprep.subr.bf16.mxu0 0
  %265 = vmatpush2.bf16.msra.mxu0 0
  %266 = vmatprep.subr.bf16.mxu0 0
  %267 = vmatpush2.bf16.msra.mxu0 0
  %268 = vmatprep.subr.bf16.mxu0 0
  %269 = vmatpush2.bf16.msra.mxu0 0
  %270 = vmatprep.subr.bf16.mxu0 0
  %271 = vmatpush2.bf16.msra.mxu0 0
  %272 = vmatprep.subr.bf16.mxu0 0
  %273 = vmatpush2.bf16.msra.mxu0 0
  %274 = vmatprep.subr.bf16.mxu0 0
  %275 = vmatpush2.bf16.msra.mxu0 0
  %276 = vmatprep.subr.bf16.mxu0 0
  %277 = vmatpush2.bf16.msra.mxu0 0
  %278 = vmatprep.mubr.bf16.mxu0 0
  %279 = vmatmul.mubr.bf16.gmra.mxu0 %v158
  %v280 = vpop.f32.mrf.mxu0
  %v281 = vadd.f32 %v76, %v280
  %v282 = vpop.f32.mrf.mxu0
  %v283 = vpop.f32.mrf.mxu0
  %v284 = vadd.f32 %v76, %v283
  %v285 = vpop.f32.mrf.mxu0
  %286 = vmatprep.mubr.bf16.mxu0 0
  %287 = vmatmul.mubr.bf16.gmra.mxu0 %v159
  %v288 = vpop.f32.mrf.mxu0
  %v289 = vadd.f32 %v76, %v288
  %v290 = vpop.f32.mrf.mxu0
  %v291 = vpop.f32.mrf.mxu0
  %v292 = vadd.f32 %v76, %v291
  %v293 = vpop.f32.mrf.mxu0
  %294 = vmatprep.mubr.bf16.mxu0 0
  %295 = vmatmul.mubr.bf16.gmra.mxu0 %v160
  %v296 = vpop.f32.mrf.mxu0
  %v297 = vadd.f32 %v76, %v296
  %v298 = vpop.f32.mrf.mxu0
  %v299 = vpop.f32.mrf.mxu0
  %v300 = vadd.f32 %v76, %v299
  %v301 = vpop.f32.mrf.mxu0
  %302 = vmatprep.mubr.bf16.mxu0 0
  %303 = vmatmul.mubr.bf16.gmra.mxu0 %v161
  %v304 = vpop.f32.mrf.mxu0
  %v305 = vadd.f32 %v76, %v304
  %v306 = vpop.f32.mrf.mxu0
  %v307 = vpop.f32.mrf.mxu0
  %v308 = vadd.f32 %v76, %v307
  %v309 = vpop.f32.mrf.mxu0
  %310 = vmatprep.mubr.bf16.mxu0 0
  %311 = vmatmul.mubr.bf16.gmra.mxu0 %v162
  %v312 = vpop.f32.mrf.mxu0
  %v313 = vadd.f32 %v76, %v312
  %v314 = vpop.f32.mrf.mxu0
  %v315 = vpop.f32.mrf.mxu0
  %v316 = vadd.f32 %v76, %v315
  %v317 = vpop.f32.mrf.mxu0
  %318 = vmatprep.mubr.bf16.mxu0 0
  %319 = vmatmul.mubr.bf16.gmra.mxu0 %v163
  %v320 = vpop.f32.mrf.mxu0
  %v321 = vadd.f32 %v76, %v320
  %v322 = vpop.f32.mrf.mxu0
  %v323 = vpop.f32.mrf.mxu0
  %v324 = vadd.f32 %v76, %v323
  %v325 = vpop.f32.mrf.mxu0
  %326 = vmatprep.mubr.bf16.mxu0 0
  %327 = vmatmul.mubr.bf16.gmra.mxu0 %v164
  %v328 = vpop.f32.mrf.mxu0
  %v329 = vadd.f32 %v76, %v328
  %v330 = vpop.f32.mrf.mxu0
  %v331 = vpop.f32.mrf.mxu0
  %v332 = vadd.f32 %v76, %v331
  %v333 = vpop.f32.mrf.mxu0
  %334 = vmatprep.mubr.bf16.mxu0 0
  %335 = vmatmul.mubr.bf16.gmra.mxu0 %v165
  %v336 = vpop.f32.mrf.mxu0
  %v337 = vadd.f32 %v76, %v336
  %v338 = vpop.f32.mrf.mxu0
  %v339 = vpop.f32.mrf.mxu0
  %v340 = vadd.f32 %v76, %v339
  %v341 = vpop.f32.mrf.mxu0
  %342 = vmatprep.mubr.bf16.mxu0 0
  %343 = vmatmul.mubr.bf16.gmra.mxu0 %v166
  %v344 = vpop.f32.mrf.mxu0
  %v345 = vadd.f32 %v76, %v344
  %v346 = vpop.f32.mrf.mxu0
  %v347 = vpop.f32.mrf.mxu0
  %v348 = vadd.f32 %v76, %v347
  %v349 = vpop.f32.mrf.mxu0
  %350 = vmatprep.mubr.bf16.mxu0 0
  %351 = vmatmul.mubr.bf16.gmra.mxu0 %v167
  %v352 = vpop.f32.mrf.mxu0
  %v353 = vadd.f32 %v76, %v352
  %v354 = vpop.f32.mrf.mxu0
  %v355 = vpop.f32.mrf.mxu0
  %v356 = vadd.f32 %v76, %v355
  %v357 = vpop.f32.mrf.mxu0
  %358 = vmatprep.mubr.bf16.mxu0 0
  %359 = vmatmul.mubr.bf16.gmra.mxu0 %v168
  %v360 = vpop.f32.mrf.mxu0
  %v361 = vadd.f32 %v76, %v360
  %v362 = vpop.f32.mrf.mxu0
  %v363 = vpop.f32.mrf.mxu0
  %v364 = vadd.f32 %v76, %v363
  %v365 = vpop.f32.mrf.mxu0
  %366 = vmatprep.mubr.bf16.mxu0 0
  %367 = vmatmul.mubr.bf16.gmra.mxu0 %v169
  %v368 = vpop.f32.mrf.mxu0
  %v369 = vadd.f32 %v76, %v368
  %v370 = vpop.f32.mrf.mxu0
  %v371 = vpop.f32.mrf.mxu0
  %v372 = vadd.f32 %v76, %v371
  %v373 = vpop.f32.mrf.mxu0
  %374 = vmatprep.mubr.bf16.mxu0 0
  %375 = vmatmul.mubr.bf16.gmra.mxu0 %v170
  %v376 = vpop.f32.mrf.mxu0
  %v377 = vadd.f32 %v76, %v376
  %v378 = vpop.f32.mrf.mxu0
  %v379 = vpop.f32.mrf.mxu0
  %v380 = vadd.f32 %v76, %v379
  %v381 = vpop.f32.mrf.mxu0
  %382 = vmatprep.mubr.bf16.mxu0 0
  %383 = vmatmul.mubr.bf16.gmra.mxu0 %v171
  %v384 = vpop.f32.mrf.mxu0
  %v385 = vadd.f32 %v76, %v384
  %v386 = vpop.f32.mrf.mxu0
  %v387 = vpop.f32.mrf.mxu0
  %v388 = vadd.f32 %v76, %v387
  %v389 = vpop.f32.mrf.mxu0
  %390 = vmatprep.mubr.bf16.mxu0 0
  %391 = vmatmul.mubr.bf16.gmra.mxu0 %v172
  %v392 = vpop.f32.mrf.mxu0
  %v393 = vadd.f32 %v76, %v392
  %v394 = vpop.f32.mrf.mxu0
  %v395 = vpop.f32.mrf.mxu0
  %v396 = vadd.f32 %v76, %v395
  %v397 = vpop.f32.mrf.mxu0
  %398 = vmatprep.mubr.bf16.mxu0 0
  %399 = vmatmul.mubr.bf16.gmra.mxu0 %v173
  %v400 = vpop.f32.mrf.mxu0
  %v401 = vadd.f32 %v76, %v400
  %v402 = vpop.f32.mrf.mxu0
  %v403 = vpop.f32.mrf.mxu0
  %v404 = vadd.f32 %v76, %v403
  %v405 = vpop.f32.mrf.mxu0
  %406 = vmatprep.mubr.bf16.mxu0 0
  %407 = vmatmul.mubr.bf16.gmra.mxu0 %v174
  %v408 = vpop.f32.mrf.mxu0
  %v409 = vadd.f32 %v76, %v408
  %v410 = vpop.f32.mrf.mxu0
  %v411 = vpop.f32.mrf.mxu0
  %v412 = vadd.f32 %v76, %v411
  %v413 = vpop.f32.mrf.mxu0
  %414 = vmatprep.mubr.bf16.mxu0 0
  %415 = vmatmul.mubr.bf16.gmra.mxu0 %v175
  %v416 = vpop.f32.mrf.mxu0
  %v417 = vadd.f32 %v76, %v416
  %v418 = vpop.f32.mrf.mxu0
  %v419 = vpop.f32.mrf.mxu0
  %v420 = vadd.f32 %v76, %v419
  %v421 = vpop.f32.mrf.mxu0
  %422 = vmatprep.mubr.bf16.mxu0 0
  %423 = vmatmul.mubr.bf16.gmra.mxu0 %v176
  %v424 = vpop.f32.mrf.mxu0
  %v425 = vadd.f32 %v76, %v424
  %v426 = vpop.f32.mrf.mxu0
  %v427 = vpop.f32.mrf.mxu0
  %v428 = vadd.f32 %v76, %v427
  %v429 = vpop.f32.mrf.mxu0
  %430 = vmatprep.mubr.bf16.mxu0 0
  %431 = vmatmul.mubr.bf16.gmra.mxu0 %v177
  %v432 = vpop.f32.mrf.mxu0
  %v433 = vadd.f32 %v76, %v432
  %v434 = vpop.f32.mrf.mxu0
  %v435 = vpop.f32.mrf.mxu0
  %v436 = vadd.f32 %v76, %v435
  %v437 = vpop.f32.mrf.mxu0
  %438 = vdwg.mxu0
  %439 = vst [vmem:[%s3] sm:$0xff] %v281
  %440 = vst [vmem:[%s3 + $0x8] sm:$0xff] %v284
  %441 = vst [vmem:[%s3 + $0x10] sm:$0xff] %v289
  %442 = vst [vmem:[%s3 + $0x18] sm:$0xff] %v292
  %443 = vst [vmem:[%s3 + $0x20] sm:$0xff] %v297
  %444 = vst [vmem:[%s3 + $0x28] sm:$0xff] %v300
  %445 = vst [vmem:[%s3 + $0x30] sm:$0xff] %v305
  %446 = vst [vmem:[%s3 + $0x38] sm:$0xff] %v308
  %447 = vst [vmem:[%s3 + $0x40] sm:$0xff] %v313
  %448 = vst [vmem:[%s3 + $0x48] sm:$0xff] %v316
  %449 = vst [vmem:[%s3 + $0x50] sm:$0xff] %v321
  %450 = vst [vmem:[%s3 + $0x58] sm:$0xff] %v324
  %451 = vst [vmem:[%s3 + $0x60] sm:$0xff] %v329
  %452 = vst [vmem:[%s3 + $0x68] sm:$0xff] %v332
  %453 = vst [vmem:[%s3 + $0x70] sm:$0xff] %v337
  %454 = vst [vmem:[%s3 + $0x78] sm:$0xff] %v340
  %455 = vst [vmem:[%s3 + $0x80] sm:$0xff] %v345
  %456 = vst [vmem:[%s3 + $0x88] sm:$0xff] %v348
  %457 = vst [vmem:[%s3 + $0x90] sm:$0xff] %v353
  %458 = vst [vmem:[%s3 + $0x98] sm:$0xff] %v356
  %459 = vst [vmem:[%s3 + $0xa0] sm:$0xff] %v361
  %460 = vst [vmem:[%s3 + $0xa8] sm:$0xff] %v364
  %461 = vst [vmem:[%s3 + $0xb0] sm:$0xff] %v369
  %462 = vst [vmem:[%s3 + $0xb8] sm:$0xff] %v372
  %463 = vst [vmem:[%s3 + $0xc0] sm:$0xff] %v377
  %464 = vst [vmem:[%s3 + $0xc8] sm:$0xff] %v380
  %465 = vst [vmem:[%s3 + $0xd0] sm:$0xff] %v385
  %466 = vst [vmem:[%s3 + $0xd8] sm:$0xff] %v388
  %467 = vst [vmem:[%s3 + $0xe0] sm:$0xff] %v393
  %468 = vst [vmem:[%s3 + $0xe8] sm:$0xff] %v396
  %469 = vst [vmem:[%s3 + $0xf0] sm:$0xff] %v401
  %470 = vst [vmem:[%s3 + $0xf8] sm:$0xff] %v404
  %471 = vst [vmem:[%s3 + $0x100] sm:$0xff] %v409
  %472 = vst [vmem:[%s3 + $0x108] sm:$0xff] %v412
  %473 = vst [vmem:[%s3 + $0x110] sm:$0xff] %v417
  %474 = vst [vmem:[%s3 + $0x118] sm:$0xff] %v420
  %475 = vst [vmem:[%s3 + $0x120] sm:$0xff] %v425
  %476 = vst [vmem:[%s3 + $0x128] sm:$0xff] %v428
  %477 = vst [vmem:[%s3 + $0x130] sm:$0xff] %v433
  %478 = vst [vmem:[%s3 + $0x138] sm:$0xff] %v436
  // Predicated region
  $region14: #{extractor_forward.7} parent=0 // pred_check
    _
  $region15: #{extractor_forward.7} parent=0 // pred_check_branch
    %480 = sbr.rel (0) target = $region17
  $region16: #{extractor_forward.7} parent=0 // pred_region
    _
  $region17: #{extractor_forward.7} parent=0 // pred_fallthru
    _
  // Predicated region
  $region18: #{extractor_forward.7} parent=0 // pred_check
    _
  $region19: #{extractor_forward.7} parent=0 // pred_check_branch
    %482 = sbr.rel (0) target = $region21
  $region20: #{extractor_forward.7} parent=0 // pred_region
    _
  $region21: #{extractor_forward.7} parent=0 // pred_fallthru
    _

// kernel: extractor_forward.4
$region0: #{extractor_forward.4}
  #allocation0 [shape = 'u32[]', space=smem, size = 0x4, offset = 0x4, fixed_abs, tag = 'smem constant byte address 0x4 - core index']
  #allocation1 [shape = 'u32[144,128]{1,0:T(1,128)}', space=vmem, size = 0x12000, scoped, tag = 'internal scratch']
  %s0 = inlined_call_operand.vmem [shape: bf16[128,512], index: 0, kind: input, shape index: {}]
  %s1 = inlined_call_operand.vmem [shape: bf16[512,128], index: 1, kind: input, shape index: {}]
  %s2 = inlined_call_operand.vmem [shape: f32[1,128], index: 2, kind: input, shape index: {}]
  %s3 = inlined_call_operand.vmem [shape: bf16[128,128], index: 3, kind: output, shape index: {}]
  %s4 = sld [smem:[#allocation0]]
  $region22: #{extractor_forward.4} parent=0
    _
  %s6 = ssub.s32 1, %s4
  %s7 = scalar_select 0, %s6, %s4
  // Predicated region
  $region2: #{extractor_forward.4} parent=0 // pred_check
    _
  $region3: #{extractor_forward.4} parent=0 // pred_check_branch
    %9 = sbr.rel (0) target = $region5
  $region4: #{extractor_forward.4} parent=0 // pred_region
    _
  $region5: #{extractor_forward.4} parent=0 // pred_fallthru
    _
  // Predicated region
  $region6: #{extractor_forward.4} parent=0 // pred_check
    _
  $region7: #{extractor_forward.4} parent=0 // pred_check_branch
    %11 = sbr.rel (0) target = $region9
  $region8: #{extractor_forward.4} parent=0 // pred_region
    _
  $region9: #{extractor_forward.4} parent=0 // pred_fallthru
    _
  // Predicated region
  $region10: #{extractor_forward.4} parent=0 // pred_check
    _
  $region11: #{extractor_forward.4} parent=0 // pred_check_branch
    %13 = sbr.rel (0) target = $region13
  $region12: #{extractor_forward.4} parent=0 // pred_region
    _
  $region13: #{extractor_forward.4} parent=0 // pred_fallthru
    _
  %v15 = vld [vmem:[%s0] sm:$0xff]
  %v16 = vld [vmem:[%s0 + $0x8] sm:$0xff]
  %v17 = vld [vmem:[%s0 + $0x10] sm:$0xff]
  %v18 = vld [vmem:[%s0 + $0x18] sm:$0xff]
  %v19 = vld [vmem:[%s0 + $0x20] sm:$0xff]
  %v20 = vld [vmem:[%s0 + $0x28] sm:$0xff]
  %v21 = vld [vmem:[%s0 + $0x30] sm:$0xff]
  %v22 = vld [vmem:[%s0 + $0x38] sm:$0xff]
  %v23 = vld [vmem:[%s0 + $0x40] sm:$0xff]
  %v24 = vld [vmem:[%s0 + $0x48] sm:$0xff]
  %v25 = vld [vmem:[%s0 + $0x50] sm:$0xff]
  %v26 = vld [vmem:[%s0 + $0x58] sm:$0xff]
  %v27 = vld [vmem:[%s0 + $0x60] sm:$0xff]
  %v28 = vld [vmem:[%s0 + $0x68] sm:$0xff]
  %v29 = vld [vmem:[%s0 + $0x70] sm:$0xff]
  %v30 = vld [vmem:[%s0 + $0x78] sm:$0xff]
  %v31 = vld [vmem:[%s0 + $0x80] sm:$0xff]
  %v32 = vld [vmem:[%s0 + $0x88] sm:$0xff]
  %v33 = vld [vmem:[%s0 + $0x90] sm:$0xff]
  %v34 = vld [vmem:[%s0 + $0x98] sm:$0xff]
  %v35 = vld [vmem:[%s0 + $0xa0] sm:$0xff]
  %v36 = vld [vmem:[%s0 + $0xa8] sm:$0xff]
  %v37 = vld [vmem:[%s0 + $0xb0] sm:$0xff]
  %v38 = vld [vmem:[%s0 + $0xb8] sm:$0xff]
  %v39 = vld [vmem:[%s0 + $0xc0] sm:$0xff]
  %v40 = vld [vmem:[%s0 + $0xc8] sm:$0xff]
  %v41 = vld [vmem:[%s0 + $0xd0] sm:$0xff]
  %v42 = vld [vmem:[%s0 + $0xd8] sm:$0xff]
  %v43 = vld [vmem:[%s0 + $0xe0] sm:$0xff]
  %v44 = vld [vmem:[%s0 + $0xe8] sm:$0xff]
  %v45 = vld [vmem:[%s0 + $0xf0] sm:$0xff]
  %v46 = vld [vmem:[%s0 + $0xf8] sm:$0xff]
  %v47 = vld [vmem:[%s1] sm:$0xf]
  %v48 = vld [vmem:[%s1 + $0x4] sm:$0xf]
  %v49 = vld [vmem:[%s1 + $0x8] sm:$0xf]
  %v50 = vld [vmem:[%s1 + $0xc] sm:$0xf]
  %v51 = vld [vmem:[%s1 + $0x10] sm:$0xf]
  %v52 = vld [vmem:[%s1 + $0x14] sm:$0xf]
  %v53 = vld [vmem:[%s1 + $0x18] sm:$0xf]
  %v54 = vld [vmem:[%s1 + $0x1c] sm:$0xf]
  %v55 = vld [vmem:[%s1 + $0x20] sm:$0xf]
  %v56 = vld [vmem:[%s1 + $0x24] sm:$0xf]
  %v57 = vld [vmem:[%s1 + $0x28] sm:$0xf]
  %v58 = vld [vmem:[%s1 + $0x2c] sm:$0xf]
  %v59 = vld [vmem:[%s1 + $0x30] sm:$0xf]
  %v60 = vld [vmem:[%s1 + $0x34] sm:$0xf]
  %v61 = vld [vmem:[%s1 + $0x38] sm:$0xf]
  %v62 = vld [vmem:[%s1 + $0x3c] sm:$0xf]
  %v63 = vld [vmem:[%s1 + $0x40] sm:$0xf]
  %v64 = vld [vmem:[%s1 + $0x44] sm:$0xf]
  %v65 = vld [vmem:[%s1 + $0x48] sm:$0xf]
  %v66 = vld [vmem:[%s1 + $0x4c] sm:$0xf]
  %v67 = vld [vmem:[%s1 + $0x50] sm:$0xf]
  %v68 = vld [vmem:[%s1 + $0x54] sm:$0xf]
  %v69 = vld [vmem:[%s1 + $0x58] sm:$0xf]
  %v70 = vld [vmem:[%s1 + $0x5c] sm:$0xf]
  %v71 = vld [vmem:[%s1 + $0x60] sm:$0xf]
  %v72 = vld [vmem:[%s1 + $0x64] sm:$0xf]
  %v73 = vld [vmem:[%s1 + $0x68] sm:$0xf]
  %v74 = vld [vmem:[%s1 + $0x6c] sm:$0xf]
  %v75 = vld [vmem:[%s1 + $0x70] sm:$0xf]
  %v76 = vld [vmem:[%s1 + $0x74] sm:$0xf]
  %v77 = vld [vmem:[%s1 + $0x78] sm:$0xf]
  %v78 = vld [vmem:[%s1 + $0x7c] sm:$0xf]
  %v79 = vld [vmem:[%s1 + $0x80] sm:$0xf]
  %v80 = vld [vmem:[%s1 + $0x84] sm:$0xf]
  %v81 = vld [vmem:[%s1 + $0x88] sm:$0xf]
  %v82 = vld [vmem:[%s1 + $0x8c] sm:$0xf]
  %v83 = vld [vmem:[%s1 + $0x90] sm:$0xf]
  %v84 = vld [vmem:[%s1 + $0x94] sm:$0xf]
  %v85 = vld [vmem:[%s1 + $0x98] sm:$0xf]
  %v86 = vld [vmem:[%s1 + $0x9c] sm:$0xf]
  %v87 = vld [vmem:[%s1 + $0xa0] sm:$0xf]
  %v88 = vld [vmem:[%s1 + $0xa4] sm:$0xf]
  %v89 = vld [vmem:[%s1 + $0xa8] sm:$0xf]
  %v90 = vld [vmem:[%s1 + $0xac] sm:$0xf]
  %v91 = vld [vmem:[%s1 + $0xb0] sm:$0xf]
  %v92 = vld [vmem:[%s1 + $0xb4] sm:$0xf]
  %v93 = vld [vmem:[%s1 + $0xb8] sm:$0xf]
  %v94 = vld [vmem:[%s1 + $0xbc] sm:$0xf]
  %v95 = vld [vmem:[%s1 + $0xc0] sm:$0xf]
  %v96 = vld [vmem:[%s1 + $0xc4] sm:$0xf]
  %v97 = vld [vmem:[%s1 + $0xc8] sm:$0xf]
  %v98 = vld [vmem:[%s1 + $0xcc] sm:$0xf]
  %v99 = vld [vmem:[%s1 + $0xd0] sm:$0xf]
  %v100 = vld [vmem:[%s1 + $0xd4] sm:$0xf]
  %v101 = vld [vmem:[%s1 + $0xd8] sm:$0xf]
  %v102 = vld [vmem:[%s1 + $0xdc] sm:$0xf]
  %v103 = vld [vmem:[%s1 + $0xe0] sm:$0xf]
  %v104 = vld [vmem:[%s1 + $0xe4] sm:$0xf]
  %v105 = vld [vmem:[%s1 + $0xe8] sm:$0xf]
  %v106 = vld [vmem:[%s1 + $0xec] sm:$0xf]
  %v107 = vld [vmem:[%s1 + $0xf0] sm:$0xf]
  %v108 = vld [vmem:[%s1 + $0xf4] sm:$0xf]
  %v109 = vld [vmem:[%s1 + $0xf8] sm:$0xf]
  %v110 = vld [vmem:[%s1 + $0xfc] sm:$0xf]
  %v111 = vld [vmem:[%s2] sm:$0x1]
  %v113 = vlaneseq
  %v114 = vshrl.u32 %v113, 7
  %v115 = vsub.s32 0, %v114
  %v116 = vrot.slane %v111, %v115
  %v150 = vunpack.c.l.b16 %v15
  %v151 = vunpack.c.h.b16 %v15
  %v152 = vunpack.c.l.b16 %v16
  %v153 = vunpack.c.h.b16 %v16
  %v154 = vunpack.c.l.b16 %v17
  %v155 = vunpack.c.h.b16 %v17
  %v156 = vunpack.c.l.b16 %v18
  %v157 = vunpack.c.h.b16 %v18
  %v158 = vunpack.c.l.b16 %v19
  %v159 = vunpack.c.h.b16 %v19
  %v160 = vunpack.c.l.b16 %v20
  %v161 = vunpack.c.h.b16 %v20
  %v162 = vunpack.c.l.b16 %v21
  %v163 = vunpack.c.h.b16 %v21
  %v164 = vunpack.c.l.b16 %v22
  %v165 = vunpack.c.h.b16 %v22
  %v166 = vunpack.c.l.b16 %v23
  %v167 = vunpack.c.h.b16 %v23
  %v168 = vunpack.c.l.b16 %v24
  %v169 = vunpack.c.h.b16 %v24
  %v170 = vunpack.c.l.b16 %v25
  %v171 = vunpack.c.h.b16 %v25
  %v172 = vunpack.c.l.b16 %v26
  %v173 = vunpack.c.h.b16 %v26
  %v174 = vunpack.c.l.b16 %v27
  %v175 = vunpack.c.h.b16 %v27
  %v176 = vunpack.c.l.b16 %v28
  %v177 = vunpack.c.h.b16 %v28
  %v178 = vunpack.c.l.b16 %v29
  %v179 = vunpack.c.h.b16 %v29
  %v180 = vunpack.c.l.b16 %v30
  %v181 = vunpack.c.h.b16 %v30
  %v182 = vunpack.c.l.b16 %v31
  %v183 = vunpack.c.h.b16 %v31
  %v184 = vunpack.c.l.b16 %v32
  %v185 = vunpack.c.h.b16 %v32
  %v186 = vunpack.c.l.b16 %v33
  %v187 = vunpack.c.h.b16 %v33
  %v188 = vunpack.c.l.b16 %v34
  %v189 = vunpack.c.h.b16 %v34
  %v190 = vunpack.c.l.b16 %v35
  %v191 = vunpack.c.h.b16 %v35
  %v192 = vunpack.c.l.b16 %v36
  %v193 = vunpack.c.h.b16 %v36
  %v194 = vunpack.c.l.b16 %v37
  %v195 = vunpack.c.h.b16 %v37
  %v196 = vunpack.c.l.b16 %v38
  %v197 = vunpack.c.h.b16 %v38
  %v198 = vunpack.c.l.b16 %v39
  %v199 = vunpack.c.h.b16 %v39
  %v200 = vunpack.c.l.b16 %v40
  %v201 = vunpack.c.h.b16 %v40
  %v202 = vunpack.c.l.b16 %v41
  %v203 = vunpack.c.h.b16 %v41
  %v204 = vunpack.c.l.b16 %v42
  %v205 = vunpack.c.h.b16 %v42
  %v206 = vunpack.c.l.b16 %v43
  %v207 = vunpack.c.h.b16 %v43
  %v208 = vunpack.c.l.b16 %v44
  %v209 = vunpack.c.h.b16 %v44
  %v210 = vunpack.c.l.b16 %v45
  %v211 = vunpack.c.h.b16 %v45
  %v212 = vunpack.c.l.b16 %v46
  %v213 = vunpack.c.h.b16 %v46
  %v214 = vpack.c.b16 %v154, %v150
  %v215 = vpack.c.b16 %v155, %v151
  %v216 = vpack.c.b16 %v156, %v152
  %v217 = vpack.c.b16 %v157, %v153
  %v218 = vpack.c.b16 %v162, %v158
  %v219 = vpack.c.b16 %v163, %v159
  %v220 = vpack.c.b16 %v164, %v160
  %v221 = vpack.c.b16 %v165, %v161
  %v222 = vpack.c.b16 %v170, %v166
  %v223 = vpack.c.b16 %v171, %v167
  %v224 = vpack.c.b16 %v172, %v168
  %v225 = vpack.c.b16 %v173, %v169
  %v226 = vpack.c.b16 %v178, %v174
  %v227 = vpack.c.b16 %v179, %v175
  %v228 = vpack.c.b16 %v180, %v176
  %v229 = vpack.c.b16 %v181, %v177
  %v230 = vpack.c.b16 %v186, %v182
  %v231 = vpack.c.b16 %v187, %v183
  %v232 = vpack.c.b16 %v188, %v184
  %v233 = vpack.c.b16 %v189, %v185
  %v234 = vpack.c.b16 %v194, %v190
  %v235 = vpack.c.b16 %v195, %v191
  %v236 = vpack.c.b16 %v196, %v192
  %v237 = vpack.c.b16 %v197, %v193
  %v238 = vpack.c.b16 %v202, %v198
  %v239 = vpack.c.b16 %v203, %v199
  %v240 = vpack.c.b16 %v204, %v200
  %v241 = vpack.c.b16 %v205, %v201
  %v242 = vpack.c.b16 %v210, %v206
  %v243 = vpack.c.b16 %v211, %v207
  %v244 = vpack.c.b16 %v212, %v208
  %v245 = vpack.c.b16 %v213, %v209
  %v342 = vunpack.c.l.b16 %v47
  %v343 = vunpack.c.l.b16 %v48
  %v344 = vunpack.c.l.b16 %v49
  %v345 = vunpack.c.l.b16 %v50
  %v346 = vunpack.c.l.b16 %v51
  %v347 = vunpack.c.l.b16 %v52
  %v348 = vunpack.c.l.b16 %v53
  %v349 = vunpack.c.l.b16 %v54
  %v350 = vunpack.c.l.b16 %v55
  %v351 = vunpack.c.l.b16 %v56
  %v352 = vunpack.c.l.b16 %v57
  %v353 = vunpack.c.l.b16 %v58
  %v354 = vunpack.c.l.b16 %v59
  %v355 = vunpack.c.l.b16 %v60
  %v356 = vunpack.c.l.b16 %v61
  %v357 = vunpack.c.l.b16 %v62
  %v358 = vunpack.c.l.b16 %v63
  %v359 = vunpack.c.l.b16 %v64
  %v360 = vunpack.c.l.b16 %v65
  %v361 = vunpack.c.l.b16 %v66
  %v362 = vunpack.c.l.b16 %v67
  %v363 = vunpack.c.l.b16 %v68
  %v364 = vunpack.c.l.b16 %v69
  %v365 = vunpack.c.l.b16 %v70
  %v366 = vunpack.c.l.b16 %v71
  %v367 = vunpack.c.l.b16 %v72
  %v368 = vunpack.c.l.b16 %v73
  %v369 = vunpack.c.l.b16 %v74
  %v370 = vunpack.c.l.b16 %v75
  %v371 = vunpack.c.l.b16 %v76
  %v372 = vunpack.c.l.b16 %v77
  %v373 = vunpack.c.l.b16 %v78
  %v374 = vunpack.c.l.b16 %v79
  %v375 = vunpack.c.l.b16 %v80
  %v376 = vunpack.c.l.b16 %v81
  %v377 = vunpack.c.l.b16 %v82
  %v378 = vunpack.c.l.b16 %v83
  %v379 = vunpack.c.l.b16 %v84
  %v380 = vunpack.c.l.b16 %v85
  %v381 = vunpack.c.l.b16 %v86
  %v382 = vunpack.c.l.b16 %v87
  %v383 = vunpack.c.l.b16 %v88
  %v384 = vunpack.c.l.b16 %v89
  %v385 = vunpack.c.l.b16 %v90
  %v386 = vunpack.c.l.b16 %v91
  %v387 = vunpack.c.l.b16 %v92
  %v388 = vunpack.c.l.b16 %v93
  %v389 = vunpack.c.l.b16 %v94
  %v390 = vunpack.c.l.b16 %v95
  %v391 = vunpack.c.l.b16 %v96
  %v392 = vunpack.c.l.b16 %v97
  %v393 = vunpack.c.l.b16 %v98
  %v394 = vunpack.c.l.b16 %v99
  %v395 = vunpack.c.l.b16 %v100
  %v396 = vunpack.c.l.b16 %v101
  %v397 = vunpack.c.l.b16 %v102
  %v398 = vunpack.c.l.b16 %v103
  %v399 = vunpack.c.l.b16 %v104
  %v400 = vunpack.c.l.b16 %v105
  %v401 = vunpack.c.l.b16 %v106
  %v402 = vunpack.c.l.b16 %v107
  %v403 = vunpack.c.l.b16 %v108
  %v404 = vunpack.c.l.b16 %v109
  %v405 = vunpack.c.l.b16 %v110
  %v406 = vpack.c.b16 %v343, %v342
  %v407 = vpack.c.b16 %v345, %v344
  %v408 = vpack.c.b16 %v347, %v346
  %v409 = vpack.c.b16 %v349, %v348
  %v410 = vpack.c.b16 %v351, %v350
  %v411 = vpack.c.b16 %v353, %v352
  %v412 = vpack.c.b16 %v355, %v354
  %v413 = vpack.c.b16 %v357, %v356
  %v414 = vpack.c.b16 %v359, %v358
  %v415 = vpack.c.b16 %v361, %v360
  %v416 = vpack.c.b16 %v363, %v362
  %v417 = vpack.c.b16 %v365, %v364
  %v418 = vpack.c.b16 %v367, %v366
  %v419 = vpack.c.b16 %v369, %v368
  %v420 = vpack.c.b16 %v371, %v370
  %v421 = vpack.c.b16 %v373, %v372
  %v422 = vpack.c.b16 %v375, %v374
  %v423 = vpack.c.b16 %v377, %v376
  %v424 = vpack.c.b16 %v379, %v378
  %v425 = vpack.c.b16 %v381, %v380
  %v426 = vpack.c.b16 %v383, %v382
  %v427 = vpack.c.b16 %v385, %v384
  %v428 = vpack.c.b16 %v387, %v386
  %v429 = vpack.c.b16 %v389, %v388
  %v430 = vpack.c.b16 %v391, %v390
  %v431 = vpack.c.b16 %v393, %v392
  %v432 = vpack.c.b16 %v395, %v394
  %v433 = vpack.c.b16 %v397, %v396
  %v434 = vpack.c.b16 %v399, %v398
  %v435 = vpack.c.b16 %v401, %v400
  %v436 = vpack.c.b16 %v403, %v402
  %v437 = vpack.c.b16 %v405, %v404
  %470 = vmatprep.subr.bf16.mxu0 0
  %471 = vmatpush1.bf16.msra.mxu0 %v413
  %472 = vmatprep.subr.bf16.mxu0 0
  %473 = vmatpush1.bf16.msra.mxu0 %v412
  %474 = vmatprep.subr.bf16.mxu0 0
  %475 = vmatpush1.bf16.msra.mxu0 %v411
  %476 = vmatprep.subr.bf16.mxu0 0
  %477 = vmatpush1.bf16.msra.mxu0 %v410
  %478 = vmatprep.subr.bf16.mxu0 0
  %479 = vmatpush1.bf16.msra.mxu0 %v409
  %480 = vmatprep.subr.bf16.mxu0 0
  %481 = vmatpush1.bf16.msra.mxu0 %v408
  %482 = vmatprep.subr.bf16.mxu0 0
  %483 = vmatpush1.bf16.msra.mxu0 %v407
  %484 = vmatprep.subr.bf16.mxu0 0
  %485 = vmatpush1.bf16.msra.mxu0 %v406
  %486 = vmatprep.subr.bf16.mxu0 0
  %487 = vmatpush2.bf16.msra.mxu0 %v421
  %488 = vmatprep.subr.bf16.mxu0 0
  %489 = vmatpush2.bf16.msra.mxu0 %v420
  %490 = vmatprep.subr.bf16.mxu0 0
  %491 = vmatpush2.bf16.msra.mxu0 %v419
  %492 = vmatprep.subr.bf16.mxu0 0
  %493 = vmatpush2.bf16.msra.mxu0 %v418
  %494 = vmatprep.subr.bf16.mxu0 0
  %495 = vmatpush2.bf16.msra.mxu0 %v417
  %496 = vmatprep.subr.bf16.mxu0 0
  %497 = vmatpush2.bf16.msra.mxu0 %v416
  %498 = vmatprep.subr.bf16.mxu0 0
  %499 = vmatpush2.bf16.msra.mxu0 %v415
  %500 = vmatprep.subr.bf16.mxu0 0
  %501 = vmatpush2.bf16.msra.mxu0 %v414
  %502 = vmatprep.mubr.bf16.mxu0 %v215
  %503 = vmatmul.mubr.bf16.gmra.mxu0 %v214
  %v504 = vpop.f32.mrf.mxu0
  %v505 = vadd.f32 %v116, %v504
  %v506 = vpop.f32.mrf.mxu0
  %v507 = vpop.f32.mrf.mxu0
  %v508 = vadd.f32 %v116, %v507
  %v509 = vpop.f32.mrf.mxu0
  %510 = vmatprep.mubr.bf16.mxu0 %v219
  %511 = vmatmul.mubr.bf16.gmra.mxu0 %v218
  %v512 = vpop.f32.mrf.mxu0
  %v513 = vadd.f32 %v116, %v512
  %v514 = vpop.f32.mrf.mxu0
  %v515 = vpop.f32.mrf.mxu0
  %v516 = vadd.f32 %v116, %v515
  %v517 = vpop.f32.mrf.mxu0
  %518 = vmatprep.mubr.bf16.mxu0 %v223
  %519 = vmatmul.mubr.bf16.gmra.mxu0 %v222
  %v520 = vpop.f32.mrf.mxu0
  %v521 = vadd.f32 %v116, %v520
  %v522 = vpop.f32.mrf.mxu0
  %v523 = vpop.f32.mrf.mxu0
  %v524 = vadd.f32 %v116, %v523
  %v525 = vpop.f32.mrf.mxu0
  %526 = vmatprep.mubr.bf16.mxu0 %v227
  %527 = vmatmul.mubr.bf16.gmra.mxu0 %v226
  %v528 = vpop.f32.mrf.mxu0
  %v529 = vadd.f32 %v116, %v528
  %v530 = vpop.f32.mrf.mxu0
  %v531 = vpop.f32.mrf.mxu0
  %v532 = vadd.f32 %v116, %v531
  %v533 = vpop.f32.mrf.mxu0
  %534 = vmatprep.mubr.bf16.mxu0 %v231
  %535 = vmatmul.mubr.bf16.gmra.mxu0 %v230
  %v536 = vpop.f32.mrf.mxu0
  %v537 = vadd.f32 %v116, %v536
  %v538 = vpop.f32.mrf.mxu0
  %v539 = vpop.f32.mrf.mxu0
  %v540 = vadd.f32 %v116, %v539
  %v541 = vpop.f32.mrf.mxu0
  %542 = vmatprep.mubr.bf16.mxu0 %v235
  %543 = vmatmul.mubr.bf16.gmra.mxu0 %v234
  %v544 = vpop.f32.mrf.mxu0
  %v545 = vadd.f32 %v116, %v544
  %v546 = vpop.f32.mrf.mxu0
  %v547 = vpop.f32.mrf.mxu0
  %v548 = vadd.f32 %v116, %v547
  %v549 = vpop.f32.mrf.mxu0
  %550 = vmatprep.mubr.bf16.mxu0 %v239
  %551 = vmatmul.mubr.bf16.gmra.mxu0 %v238
  %v552 = vpop.f32.mrf.mxu0
  %v553 = vadd.f32 %v116, %v552
  %v554 = vpop.f32.mrf.mxu0
  %v555 = vpop.f32.mrf.mxu0
  %v556 = vadd.f32 %v116, %v555
  %v557 = vpop.f32.mrf.mxu0
  %558 = vmatprep.mubr.bf16.mxu0 %v243
  %559 = vmatmul.mubr.bf16.gmra.mxu0 %v242
  %v560 = vpop.f32.mrf.mxu0
  %v561 = vadd.f32 %v116, %v560
  %v562 = vpop.f32.mrf.mxu0
  %v563 = vpop.f32.mrf.mxu0
  %v564 = vadd.f32 %v116, %v563
  %v565 = vpop.f32.mrf.mxu0
  %566 = vdwg.mxu0
  %567 = vmatprep.subr.bf16.mxu0 0
  %568 = vmatpush1.bf16.msra.mxu0 %v429
  %569 = vmatprep.subr.bf16.mxu0 0
  %570 = vmatpush1.bf16.msra.mxu0 %v428
  %571 = vmatprep.subr.bf16.mxu0 0
  %572 = vmatpush1.bf16.msra.mxu0 %v427
  %573 = vmatprep.subr.bf16.mxu0 0
  %574 = vmatpush1.bf16.msra.mxu0 %v426
  %575 = vmatprep.subr.bf16.mxu0 0
  %576 = vmatpush1.bf16.msra.mxu0 %v425
  %577 = vmatprep.subr.bf16.mxu0 0
  %578 = vmatpush1.bf16.msra.mxu0 %v424
  %579 = vmatprep.subr.bf16.mxu0 0
  %580 = vmatpush1.bf16.msra.mxu0 %v423
  %581 = vmatprep.subr.bf16.mxu0 0
  %582 = vmatpush1.bf16.msra.mxu0 %v422
  %583 = vmatprep.subr.bf16.mxu0 0
  %584 = vmatpush2.bf16.msra.mxu0 %v437
  %585 = vmatprep.subr.bf16.mxu0 0
  %586 = vmatpush2.bf16.msra.mxu0 %v436
  %587 = vmatprep.subr.bf16.mxu0 0
  %588 = vmatpush2.bf16.msra.mxu0 %v435
  %589 = vmatprep.subr.bf16.mxu0 0
  %590 = vmatpush2.bf16.msra.mxu0 %v434
  %591 = vmatprep.subr.bf16.mxu0 0
  %592 = vmatpush2.bf16.msra.mxu0 %v433
  %593 = vmatprep.subr.bf16.mxu0 0
  %594 = vmatpush2.bf16.msra.mxu0 %v432
  %595 = vmatprep.subr.bf16.mxu0 0
  %596 = vmatpush2.bf16.msra.mxu0 %v431
  %597 = vmatprep.subr.bf16.mxu0 0
  %598 = vmatpush2.bf16.msra.mxu0 %v430
  %599 = vmatprep.mubr.bf16.mxu0 %v217
  %600 = vmatmul.mubr.bf16.gmra.mxu0 %v216
  %v601 = vpop.f32.mrf.mxu0
  %v602 = vadd.f32 %v505, %v601
  %v603 = vpop.f32.mrf.mxu0
  %v604 = vpop.f32.mrf.mxu0
  %v605 = vadd.f32 %v508, %v604
  %v606 = vpop.f32.mrf.mxu0
  %607 = vmatprep.mubr.bf16.mxu0 %v221
  %608 = vmatmul.mubr.bf16.gmra.mxu0 %v220
  %v609 = vpop.f32.mrf.mxu0
  %v610 = vadd.f32 %v513, %v609
  %v611 = vpop.f32.mrf.mxu0
  %v612 = vpop.f32.mrf.mxu0
  %v613 = vadd.f32 %v516, %v612
  %v614 = vpop.f32.mrf.mxu0
  %615 = vmatprep.mubr.bf16.mxu0 %v225
  %616 = vmatmul.mubr.bf16.gmra.mxu0 %v224
  %v617 = vpop.f32.mrf.mxu0
  %v618 = vadd.f32 %v521, %v617
  %v619 = vpop.f32.mrf.mxu0
  %v620 = vpop.f32.mrf.mxu0
  %v621 = vadd.f32 %v524, %v620
  %v622 = vpop.f32.mrf.mxu0
  %623 = vmatprep.mubr.bf16.mxu0 %v229
  %624 = vmatmul.mubr.bf16.gmra.mxu0 %v228
  %v625 = vpop.f32.mrf.mxu0
  %v626 = vadd.f32 %v529, %v625
  %v627 = vpop.f32.mrf.mxu0
  %v628 = vpop.f32.mrf.mxu0
  %v629 = vadd.f32 %v532, %v628
  %v630 = vpop.f32.mrf.mxu0
  %631 = vmatprep.mubr.bf16.mxu0 %v233
  %632 = vmatmul.mubr.bf16.gmra.mxu0 %v232
  %v633 = vpop.f32.mrf.mxu0
  %v634 = vadd.f32 %v537, %v633
  %v635 = vpop.f32.mrf.mxu0
  %v636 = vpop.f32.mrf.mxu0
  %v637 = vadd.f32 %v540, %v636
  %v638 = vpop.f32.mrf.mxu0
  %639 = vmatprep.mubr.bf16.mxu0 %v237
  %640 = vmatmul.mubr.bf16.gmra.mxu0 %v236
  %v641 = vpop.f32.mrf.mxu0
  %v642 = vadd.f32 %v545, %v641
  %v643 = vpop.f32.mrf.mxu0
  %v644 = vpop.f32.mrf.mxu0
  %v645 = vadd.f32 %v548, %v644
  %v646 = vpop.f32.mrf.mxu0
  %647 = vmatprep.mubr.bf16.mxu0 %v241
  %648 = vmatmul.mubr.bf16.gmra.mxu0 %v240
  %v649 = vpop.f32.mrf.mxu0
  %v650 = vadd.f32 %v553, %v649
  %v651 = vpop.f32.mrf.mxu0
  %v652 = vpop.f32.mrf.mxu0
  %v653 = vadd.f32 %v556, %v652
  %v654 = vpop.f32.mrf.mxu0
  %655 = vmatprep.mubr.bf16.mxu0 %v245
  %656 = vmatmul.mubr.bf16.gmra.mxu0 %v244
  %v657 = vpop.f32.mrf.mxu0
  %v658 = vadd.f32 %v561, %v657
  %v659 = vpop.f32.mrf.mxu0
  %v660 = vpop.f32.mrf.mxu0
  %v661 = vadd.f32 %v564, %v660
  %v662 = vpop.f32.mrf.mxu0
  %663 = vdwg.mxu0
  %v664 = vpack.c.bf16 %v605, %v602
  %v665 = vpack.c.bf16 %v613, %v610
  %v666 = vpack.c.bf16 %v621, %v618
  %v667 = vpack.c.bf16 %v629, %v626
  %v668 = vpack.c.bf16 %v637, %v634
  %v669 = vpack.c.bf16 %v645, %v642
  %v670 = vpack.c.bf16 %v653, %v650
  %v671 = vpack.c.bf16 %v661, %v658
  %v680 = vunpack.c.l.b16 %v664
  %v681 = vunpack.c.h.b16 %v664
  %v682 = vunpack.c.l.b16 %v665
  %v683 = vunpack.c.h.b16 %v665
  %v684 = vunpack.c.l.b16 %v666
  %v685 = vunpack.c.h.b16 %v666
  %v686 = vunpack.c.l.b16 %v667
  %v687 = vunpack.c.h.b16 %v667
  %v688 = vunpack.c.l.b16 %v668
  %v689 = vunpack.c.h.b16 %v668
  %v690 = vunpack.c.l.b16 %v669
  %v691 = vunpack.c.h.b16 %v669
  %v692 = vunpack.c.l.b16 %v670
  %v693 = vunpack.c.h.b16 %v670
  %v694 = vunpack.c.l.b16 %v671
  %v695 = vunpack.c.h.b16 %v671
  %v696 = vpack.c.b16 %v680, %v680
  %v697 = vpack.c.b16 %v681, %v681
  %v698 = vpack.c.b16 %v682, %v682
  %v699 = vpack.c.b16 %v683, %v683
  %v700 = vpack.c.b16 %v684, %v684
  %v701 = vpack.c.b16 %v685, %v685
  %v702 = vpack.c.b16 %v686, %v686
  %v703 = vpack.c.b16 %v687, %v687
  %v704 = vpack.c.b16 %v688, %v688
  %v705 = vpack.c.b16 %v689, %v689
  %v706 = vpack.c.b16 %v690, %v690
  %v707 = vpack.c.b16 %v691, %v691
  %v708 = vpack.c.b16 %v692, %v692
  %v709 = vpack.c.b16 %v693, %v693
  %v710 = vpack.c.b16 %v694, %v694
  %v711 = vpack.c.b16 %v695, %v695
  %728 = vst [vmem:[%s3] sm:$0xf] %v696
  %729 = vst [vmem:[%s3 + $0x4] sm:$0xf] %v697
  %730 = vst [vmem:[%s3 + $0x8] sm:$0xf] %v698
  %731 = vst [vmem:[%s3 + $0xc] sm:$0xf] %v699
  %732 = vst [vmem:[%s3 + $0x10] sm:$0xf] %v700
  %733 = vst [vmem:[%s3 + $0x14] sm:$0xf] %v701
  %734 = vst [vmem:[%s3 + $0x18] sm:$0xf] %v702
  %735 = vst [vmem:[%s3 + $0x1c] sm:$0xf] %v703
  %736 = vst [vmem:[%s3 + $0x20] sm:$0xf] %v704
  %737 = vst [vmem:[%s3 + $0x24] sm:$0xf] %v705
  %738 = vst [vmem:[%s3 + $0x28] sm:$0xf] %v706
  %739 = vst [vmem:[%s3 + $0x2c] sm:$0xf] %v707
  %740 = vst [vmem:[%s3 + $0x30] sm:$0xf] %v708
  %741 = vst [vmem:[%s3 + $0x34] sm:$0xf] %v709
  %742 = vst [vmem:[%s3 + $0x38] sm:$0xf] %v710
  %743 = vst [vmem:[%s3 + $0x3c] sm:$0xf] %v711
  // Predicated region
  $region14: #{extractor_forward.4} parent=0 // pred_check
    _
  $region15: #{extractor_forward.4} parent=0 // pred_check_branch
    %745 = sbr.rel (0) target = $region17
  $region16: #{extractor_forward.4} parent=0 // pred_region
    _
  $region17: #{extractor_forward.4} parent=0 // pred_fallthru
    _
  // Predicated region
  $region18: #{extractor_forward.4} parent=0 // pred_check
    _
  $region19: #{extractor_forward.4} parent=0 // pred_check_branch
    %747 = sbr.rel (0) target = $region21
  $region20: #{extractor_forward.4} parent=0 // pred_region
    _
  $region21: #{extractor_forward.4} parent=0 // pred_fallthru
    _

// kernel: extractor_forward.5
$region0: #{extractor_forward.5}
  #allocation0 [shape = 'u32[]', space=smem, size = 0x4, offset = 0x4, fixed_abs, tag = 'smem constant byte address 0x4 - core index']
  #allocation1 [shape = 'u32[144,128]{1,0:T(1,128)}', space=vmem, size = 0x12000, scoped, tag = 'internal scratch']
  #allocation2 [shape = 'bf16[10,16,128]{2,1,0:T(8,128)(2,1)}', space=vmem, size = 0xa000, scoped, tag = 'scratch operand']
  %s0 = inlined_call_operand.vmem [shape: bf16[2,10,16,128], index: 0, kind: input, shape index: {}, may-alias: {0,5}]
  %s1 = inlined_call_operand.vmem [shape: bf16[1152,128], index: 1, kind: input, shape index: {}]
  %s2 = inlined_call_operand.vmem [shape: f32[1,128], index: 2, kind: input, shape index: {}]
  %s3 = inlined_call_operand.vmem [shape: bf16[1152,128], index: 3, kind: input, shape index: {}]
  %s4 = inlined_call_operand.vmem [shape: f32[1,128], index: 4, kind: input, shape index: {}]
  %s5 = inlined_call_operand.vmem [shape: bf16[2,10,16,128], index: 5, kind: output, shape index: {}, may-alias: {0,5}]
  %s6 = sld [smem:[#allocation0]]
  $region53: #{extractor_forward.5} parent=0
    _
  %s8 = ssub.s32 1, %s6
  %s9 = scalar_select 0, %s8, %s6
  loop: start=0, step=1, limit=4
  $region2: #{extractor_forward.5} parent=0 // loop_pre_header
    _
  $region3: #{extractor_forward.5} parent=0 // loop_header
    %s11 = sphi 0, %s15
    %p12 = scmp.ge.s32.totalorder %s11, 4
    %s21 = sphi 0, %s23
    %s24 = sphi 0, %s21
    %s25 = sphi 0, %s24
    %s41 = sphi 0, %s25
    %s45 = sphi 0, %s45
    %s47 = sphi 0, %s45
    %s48 = sphi 0, %s47
    %s62 = sphi 0, %s48
    %s66 = sphi 0, %s66
    %s68 = sphi 0, %s66
    %s69 = sphi 0, %s68
    %s83 = sphi 0, %s69
    %s87 = sphi 0, %s87
    %s89 = sphi 0, %s87
    %s90 = sphi 0, %s89
    %s104 = sphi 0, %s90
    %s108 = sphi 0, %s108
    %s110 = sphi 0, %s108
    %s111 = sphi 0, %s110
    %s125 = sphi 0, %s111
    %s131 = sphi 0, %s133
    %s134 = sphi 0, %s131
    %s135 = sphi 0, %s134
    %s151 = sphi 0, %s135
  $region4: #{extractor_forward.5} parent=0 // loop_header_branch
    %14 = sbr.rel (%p12) target = $region8
  $region5: #{extractor_forward.5} parent=0 // loop_body
    %s16 = ssub.s32 %s11, 1
    %s17 = ssub.s32 %s11, 2
    %s18 = sadd.s32 %s11, 1
    %s19 = ssub.s32 %s11, %s18
    %p20 = scmp.eq.s32.totalorder %s19, 0
    %s22 = sadd.s32 %s21, 1
    %s23 = scalar_select %p20, %s21, %s22
    %p26 = pneg %p20
    %p27 = scmp.eq.s32.totalorder %s11, 1
    %p28 = por %p26, %p27
    %p29 = scmp.ne.s32.totalorder %s21, %s24
    %p30 = scmp.eq.s32.totalorder %s11, 0
    %p31 = por %p29, %p30
    %p32 = scmp.ne.s32.totalorder %s21, %s24
    %p33 = scmp.eq.s32.totalorder %s16, 1
    %p34 = por %p32, %p33
    %p35 = scmp.ne.s32.totalorder %s24, %s25
    %p36 = scmp.eq.s32.totalorder %s16, 0
    %p37 = por %p35, %p36
    %p38 = scmp.ne.s32.totalorder %s24, %s25
    %p39 = scmp.eq.s32.totalorder %s17, 1
    %p40 = por %p38, %p39
    %p42 = scmp.ne.s32.totalorder %s25, %s41
    %p43 = scmp.eq.s32.totalorder %s17, 0
    %p44 = por %p42, %p43
    %s46 = sadd.s32 %s45, 1
    %p49 = scmp.eq.s32.totalorder %s11, 1
    %p50 = scmp.ne.s32.totalorder %s45, %s47
    %p51 = scmp.eq.s32.totalorder %s11, 0
    %p52 = por %p50, %p51
    %p53 = scmp.ne.s32.totalorder %s45, %s47
    %p54 = scmp.eq.s32.totalorder %s16, 1
    %p55 = por %p53, %p54
    %p56 = scmp.ne.s32.totalorder %s47, %s48
    %p57 = scmp.eq.s32.totalorder %s16, 0
    %p58 = por %p56, %p57
    %p59 = scmp.ne.s32.totalorder %s47, %s48
    %p60 = scmp.eq.s32.totalorder %s17, 1
    %p61 = por %p59, %p60
    %p63 = scmp.ne.s32.totalorder %s48, %s62
    %p64 = scmp.eq.s32.totalorder %s17, 0
    %p65 = por %p63, %p64
    %s67 = sadd.s32 %s66, 1
    %p70 = scmp.eq.s32.totalorder %s11, 1
    %p71 = scmp.ne.s32.totalorder %s66, %s68
    %p72 = scmp.eq.s32.totalorder %s11, 0
    %p73 = por %p71, %p72
    %p74 = scmp.ne.s32.totalorder %s66, %s68
    %p75 = scmp.eq.s32.totalorder %s16, 1
    %p76 = por %p74, %p75
    %p77 = scmp.ne.s32.totalorder %s68, %s69
    %p78 = scmp.eq.s32.totalorder %s16, 0
    %p79 = por %p77, %p78
    %p80 = scmp.ne.s32.totalorder %s68, %s69
    %p81 = scmp.eq.s32.totalorder %s17, 1
    %p82 = por %p80, %p81
    %p84 = scmp.ne.s32.totalorder %s69, %s83
    %p85 = scmp.eq.s32.totalorder %s17, 0
    %p86 = por %p84, %p85
    %s88 = sadd.s32 %s87, 1
    %p91 = scmp.eq.s32.totalorder %s11, 1
    %p92 = scmp.ne.s32.totalorder %s87, %s89
    %p93 = scmp.eq.s32.totalorder %s11, 0
    %p94 = por %p92, %p93
    %p95 = scmp.ne.s32.totalorder %s87, %s89
    %p96 = scmp.eq.s32.totalorder %s16, 1
    %p97 = por %p95, %p96
    %p98 = scmp.ne.s32.totalorder %s89, %s90
    %p99 = scmp.eq.s32.totalorder %s16, 0
    %p100 = por %p98, %p99
    %p101 = scmp.ne.s32.totalorder %s89, %s90
    %p102 = scmp.eq.s32.totalorder %s17, 1
    %p103 = por %p101, %p102
    %p105 = scmp.ne.s32.totalorder %s90, %s104
    %p106 = scmp.eq.s32.totalorder %s17, 0
    %p107 = por %p105, %p106
    %s109 = sadd.s32 %s108, 1
    %p112 = scmp.eq.s32.totalorder %s11, 1
    %p113 = scmp.ne.s32.totalorder %s108, %s110
    %p114 = scmp.eq.s32.totalorder %s11, 0
    %p115 = por %p113, %p114
    %p116 = scmp.ne.s32.totalorder %s108, %s110
    %p117 = scmp.eq.s32.totalorder %s16, 1
    %p118 = por %p116, %p117
    %p119 = scmp.ne.s32.totalorder %s110, %s111
    %p120 = scmp.eq.s32.totalorder %s16, 0
    %p121 = por %p119, %p120
    %p122 = scmp.ne.s32.totalorder %s110, %s111
    %p123 = scmp.eq.s32.totalorder %s17, 1
    %p124 = por %p122, %p123
    %p126 = scmp.ne.s32.totalorder %s111, %s125
    %p127 = scmp.eq.s32.totalorder %s17, 0
    %p128 = por %p126, %p127
    %s129 = ssub.s32 %s11, %s18
    %p130 = scmp.eq.s32.totalorder %s129, 0
    %s132 = sadd.s32 %s131, 1
    %s133 = scalar_select %p130, %s131, %s132
    %p136 = pneg %p130
    %p137 = scmp.eq.s32.totalorder %s11, 1
    %p138 = por %p136, %p137
    %p139 = scmp.ne.s32.totalorder %s131, %s134
    %p140 = scmp.eq.s32.totalorder %s11, 0
    %p141 = por %p139, %p140
    %p142 = scmp.ne.s32.totalorder %s131, %s134
    %p143 = scmp.eq.s32.totalorder %s16, 1
    %p144 = por %p142, %p143
    %p145 = scmp.ne.s32.totalorder %s134, %s135
    %p146 = scmp.eq.s32.totalorder %s16, 0
    %p147 = por %p145, %p146
    %p148 = scmp.ne.s32.totalorder %s134, %s135
    %p149 = scmp.eq.s32.totalorder %s17, 1
    %p150 = por %p148, %p149
    %p152 = scmp.ne.s32.totalorder %s135, %s151
    %p153 = scmp.eq.s32.totalorder %s17, 0
    %p154 = por %p152, %p153
    %p155 = scmp.le.s32.totalorder 1, %s11
    %p156 = scmp.lt.s32.totalorder %s11, 3
    %p157 = pnand %p155, %p156
    %p158 = pneg %p157
    // Predicated region
    $region9: #{extractor_forward.5} parent=5 // pred_check
      _
    $region10: #{extractor_forward.5} parent=5 // pred_check_branch
      %160 = sbr.rel (%p157) target = $region12
    $region11: #{extractor_forward.5} parent=5 // pred_region
      %s161 = ssub.s32 %s11, 1
      // Predicated region
      $region13: #{extractor_forward.5} parent=11 // pred_check
        %p162 = pneg %p58
      $region14: #{extractor_forward.5} parent=11 // pred_check_branch
        %164 = sbr.rel (%p162) target = $region16
      $region15: #{extractor_forward.5} parent=11 // pred_region
        _
      $region16: #{extractor_forward.5} parent=11 // pred_fallthru
        _
      // Predicated region
      $region17: #{extractor_forward.5} parent=11 // pred_check
        %p165 = pneg %p79
      $region18: #{extractor_forward.5} parent=11 // pred_check_branch
        %167 = sbr.rel (%p165) target = $region20
      $region19: #{extractor_forward.5} parent=11 // pred_region
        _
      $region20: #{extractor_forward.5} parent=11 // pred_fallthru
        _
      // Predicated region
      $region21: #{extractor_forward.5} parent=11 // pred_check
        %p168 = pneg %p100
      $region22: #{extractor_forward.5} parent=11 // pred_check_branch
        %170 = sbr.rel (%p168) target = $region24
      $region23: #{extractor_forward.5} parent=11 // pred_region
        _
      $region24: #{extractor_forward.5} parent=11 // pred_fallthru
        _
      // Predicated region
      $region25: #{extractor_forward.5} parent=11 // pred_check
        %p171 = pneg %p121
      $region26: #{extractor_forward.5} parent=11 // pred_check_branch
        %173 = sbr.rel (%p171) target = $region28
      $region27: #{extractor_forward.5} parent=11 // pred_region
        _
      $region28: #{extractor_forward.5} parent=11 // pred_fallthru
        _
    $region12: #{extractor_forward.5} parent=5 // pred_fallthru
      _
    %p174 = scmp.lt.s32.totalorder %s11, 2
    // Predicated region
    $region29: #{extractor_forward.5} parent=5 // pred_check
      %p175 = pneg %p174
    $region30: #{extractor_forward.5} parent=5 // pred_check_branch
      %177 = sbr.rel (%p175) target = $region32
    $region31: #{extractor_forward.5} parent=5 // pred_region
      // Predicated region
      $region33: #{extractor_forward.5} parent=31 // pred_check
        %p178 = pneg %p31
      $region34: #{extractor_forward.5} parent=31 // pred_check_branch
        %180 = sbr.rel (%p178) target = $region36
      $region35: #{extractor_forward.5} parent=31 // pred_region
        %p181 = scmp.lt.s32.totalorder %s11, 1
        %s182 = scalar_select %p181, %s11, 1
        %s183 = smul.addr %s182, 20
        %s184 = smul.addr %s183, 4
        %s185 = scalar_lea.vmem %s0, %s184
      $region36: #{extractor_forward.5} parent=31 // pred_fallthru
        _
    $region32: #{extractor_forward.5} parent=5 // pred_fallthru
      _
    %p186 = scmp.le.s32.totalorder 1, %s11
    %p187 = scmp.lt.s32.totalorder %s11, 3
    %p188 = pnand %p186, %p187
    %p189 = pneg %p188
    // Predicated region
    $region37: #{extractor_forward.5} parent=5 // pred_check
      _
    $region38: #{extractor_forward.5} parent=5 // pred_check_branch
      %191 = sbr.rel (%p188) target = $region40
    $region39: #{extractor_forward.5} parent=5 // pred_region
      %s192 = ssub.s32 %s11, 1
      %p193 = scmp.lt.s32.totalorder %s16, 1
      %s194 = scalar_select %p193, %s16, 1
      %s195 = smul.addr %s194, 20
      %s196 = smul.addr %s195, 4
      %s197 = scalar_lea.vmem %s0, %s196
      %p198 = pneg %p37
      %p199 = pneg %p34
      %p200 = pneg %p58
      %p201 = pneg %p55
      %p202 = pneg %p79
      %p203 = pneg %p76
      %p204 = pneg %p100
      %p205 = pneg %p97
      %p206 = pneg %p121
      %p207 = pneg %p118
      %p208 = pneg %p147
      %p209 = pneg %p144
      %p210 = scmp.lt.s32.totalorder %s16, 1
      %s211 = scalar_select %p210, %s16, 1
      %s212 = smul.addr %s211, 20
      %s213 = smul.addr %s212, 4
      %s214 = scalar_lea.vmem %s5, %s213
      %p215 = scmp.lt.s32.totalorder %s16, 1
      %s216 = scalar_select %p215, %s16, 1
      %s217 = smul.addr %s216, 20
      %s218 = smul.addr %s217, 4
      %s219 = scalar_lea.vmem %s0, %s218
      %p220 = scmp.lt.s32.totalorder %s16, 1
      %s221 = scalar_select %p220, %s16, 1
      %s222 = smul.addr %s221, 20
      %s223 = smul.addr %s222, 4
      %s224 = scalar_lea.vmem %s5, %s223
      %v226 = vld [vmem:[%s2] sm:$0x1]
      %v227 = vld [vmem:[%s4] sm:$0x1]
      %228 = vst [vmem:[#allocation2] sm:$0xf] 0
      %229 = vst [vmem:[#allocation2 + $0x4] sm:$0xf] 0
      %s230 = scalar_lea.vmem [#allocation2], 72
      %231 = vst [vmem:[%s230] sm:$0xf] 0
      %232 = vst [vmem:[%s230 + $0x4] sm:$0xf] 0
      %vm233 = vcmask 1040384
      %vm234 = vsmask.f32 256
      %vm235 = vmand %vm233, %vm234
      %v236 = vld [vmem:[#allocation2] sm:$0x1]
      %v237 = vsel %vm235, 0, %v236
      %238 = vst [vmem:[#allocation2] sm:$0x1] %v237
      %v239 = vld [vmem:[#allocation2 + $0x8] sm:$0x1]
      %v240 = vsel %vm235, 0, %v239
      %241 = vst [vmem:[#allocation2 + $0x8] sm:$0x1] %v240
      %v242 = vld [vmem:[#allocation2 + $0x10] sm:$0x1]
      %v243 = vsel %vm235, 0, %v242
      %244 = vst [vmem:[#allocation2 + $0x10] sm:$0x1] %v243
      %v245 = vld [vmem:[#allocation2 + $0x18] sm:$0x1]
      %v246 = vsel %vm235, 0, %v245
      %247 = vst [vmem:[#allocation2 + $0x18] sm:$0x1] %v246
      %v248 = vld [vmem:[#allocation2 + $0x20] sm:$0x1]
      %v249 = vsel %vm235, 0, %v248
      %250 = vst [vmem:[#allocation2 + $0x20] sm:$0x1] %v249
      %v251 = vld [vmem:[#allocation2 + $0x28] sm:$0x1]
      %v252 = vsel %vm235, 0, %v251
      %253 = vst [vmem:[#allocation2 + $0x28] sm:$0x1] %v252
      %v254 = vld [vmem:[#allocation2 + $0x30] sm:$0x1]
      %v255 = vsel %vm235, 0, %v254
      %256 = vst [vmem:[#allocation2 + $0x30] sm:$0x1] %v255
      %v257 = vld [vmem:[#allocation2 + $0x38] sm:$0x1]
      %v258 = vsel %vm235, 0, %v257
      %259 = vst [vmem:[#allocation2 + $0x38] sm:$0x1] %v258
      %v260 = vld [vmem:[#allocation2 + $0x40] sm:$0x1]
      %v261 = vsel %vm235, 0, %v260
      %262 = vst [vmem:[#allocation2 + $0x40] sm:$0x1] %v261
      %v263 = vld [vmem:[#allocation2 + $0x48] sm:$0x1]
      %v264 = vsel %vm235, 0, %v263
      %265 = vst [vmem:[#allocation2 + $0x48] sm:$0x1] %v264
      %vm266 = vcmask 1043456
      %vm267 = vsmask.f32 7938
      %vm268 = vmand %vm266, %vm267
      %v269 = vld [vmem:[#allocation2 + $0x4] sm:$0xf]
      %v270 = vsel %vm268, 0, %v269
      %271 = vst [vmem:[#allocation2 + $0x4] sm:$0xf] %v270
      %v272 = vld [vmem:[#allocation2 + $0xc] sm:$0xf]
      %v273 = vsel %vm268, 0, %v272
      %274 = vst [vmem:[#allocation2 + $0xc] sm:$0xf] %v273
      %v275 = vld [vmem:[#allocation2 + $0x14] sm:$0xf]
      %v276 = vsel %vm268, 0, %v275
      %277 = vst [vmem:[#allocation2 + $0x14] sm:$0xf] %v276
      %v278 = vld [vmem:[#allocation2 + $0x1c] sm:$0xf]
      %v279 = vsel %vm268, 0, %v278
      %280 = vst [vmem:[#allocation2 + $0x1c] sm:$0xf] %v279
      %v281 = vld [vmem:[#allocation2 + $0x24] sm:$0xf]
      %v282 = vsel %vm268, 0, %v281
      %283 = vst [vmem:[#allocation2 + $0x24] sm:$0xf] %v282
      %v284 = vld [vmem:[#allocation2 + $0x2c] sm:$0xf]
      %v285 = vsel %vm268, 0, %v284
      %286 = vst [vmem:[#allocation2 + $0x2c] sm:$0xf] %v285
      %v287 = vld [vmem:[#allocation2 + $0x34] sm:$0xf]
      %v288 = vsel %vm268, 0, %v287
      %289 = vst [vmem:[#allocation2 + $0x34] sm:$0xf] %v288
      %v290 = vld [vmem:[#allocation2 + $0x3c] sm:$0xf]
      %v291 = vsel %vm268, 0, %v290
      %292 = vst [vmem:[#allocation2 + $0x3c] sm:$0xf] %v291
      %v293 = vld [vmem:[#allocation2 + $0x44] sm:$0xf]
      %v294 = vsel %vm268, 0, %v293
      %295 = vst [vmem:[#allocation2 + $0x44] sm:$0xf] %v294
      %v296 = vld [vmem:[#allocation2 + $0x4c] sm:$0xf]
      %v297 = vsel %vm268, 0, %v296
      %298 = vst [vmem:[#allocation2 + $0x4c] sm:$0xf] %v297
      %299 = vst [vmem:[%s224] sm:$0xf] 0
      %300 = vst [vmem:[%s224 + $0x4] sm:$0xf] 0
      %s301 = scalar_lea.vmem %s224, 72
      %302 = vst [vmem:[%s301] sm:$0xf] 0
      %303 = vst [vmem:[%s301 + $0x4] sm:$0xf] 0
      %v304 = vld [vmem:[%s224] sm:$0x1]
      %v305 = vsel %vm235, 0, %v304
      %306 = vst [vmem:[%s224] sm:$0x1] %v305
      %v307 = vld [vmem:[%s224 + $0x8] sm:$0x1]
      %v308 = vsel %vm235, 0, %v307
      %309 = vst [vmem:[%s224 + $0x8] sm:$0x1] %v308
      %v310 = vld [vmem:[%s224 + $0x10] sm:$0x1]
      %v311 = vsel %vm235, 0, %v310
      %312 = vst [vmem:[%s224 + $0x10] sm:$0x1] %v311
      %v313 = vld [vmem:[%s224 + $0x18] sm:$0x1]
      %v314 = vsel %vm235, 0, %v313
      %315 = vst [vmem:[%s224 + $0x18] sm:$0x1] %v314
      %v316 = vld [vmem:[%s224 + $0x20] sm:$0x1]
      %v317 = vsel %vm235, 0, %v316
      %318 = vst [vmem:[%s224 + $0x20] sm:$0x1] %v317
      %v319 = vld [vmem:[%s224 + $0x28] sm:$0x1]
      %v320 = vsel %vm235, 0, %v319
      %321 = vst [vmem:[%s224 + $0x28] sm:$0x1] %v320
      %v322 = vld [vmem:[%s224 + $0x30] sm:$0x1]
      %v323 = vsel %vm235, 0, %v322
      %324 = vst [vmem:[%s224 + $0x30] sm:$0x1] %v323
      %v325 = vld [vmem:[%s224 + $0x38] sm:$0x1]
      %v326 = vsel %vm235, 0, %v325
      %327 = vst [vmem:[%s224 + $0x38] sm:$0x1] %v326
      %v328 = vld [vmem:[%s224 + $0x40] sm:$0x1]
      %v329 = vsel %vm235, 0, %v328
      %330 = vst [vmem:[%s224 + $0x40] sm:$0x1] %v329
      %v331 = vld [vmem:[%s224 + $0x48] sm:$0x1]
      %v332 = vsel %vm235, 0, %v331
      %333 = vst [vmem:[%s224 + $0x48] sm:$0x1] %v332
      %v334 = vld [vmem:[%s224 + $0x4] sm:$0xf]
      %v335 = vsel %vm268, 0, %v334
      %336 = vst [vmem:[%s224 + $0x4] sm:$0xf] %v335
      %v337 = vld [vmem:[%s224 + $0xc] sm:$0xf]
      %v338 = vsel %vm268, 0, %v337
      %339 = vst [vmem:[%s224 + $0xc] sm:$0xf] %v338
      %v340 = vld [vmem:[%s224 + $0x14] sm:$0xf]
      %v341 = vsel %vm268, 0, %v340
      %342 = vst [vmem:[%s224 + $0x14] sm:$0xf] %v341
      %v343 = vld [vmem:[%s224 + $0x1c] sm:$0xf]
      %v344 = vsel %vm268, 0, %v343
      %345 = vst [vmem:[%s224 + $0x1c] sm:$0xf] %v344
      %v346 = vld [vmem:[%s224 + $0x24] sm:$0xf]
      %v347 = vsel %vm268, 0, %v346
      %348 = vst [vmem:[%s224 + $0x24] sm:$0xf] %v347
      %v349 = vld [vmem:[%s224 + $0x2c] sm:$0xf]
      %v350 = vsel %vm268, 0, %v349
      %351 = vst [vmem:[%s224 + $0x2c] sm:$0xf] %v350
      %v352 = vld [vmem:[%s224 + $0x34] sm:$0xf]
      %v353 = vsel %vm268, 0, %v352
      %354 = vst [vmem:[%s224 + $0x34] sm:$0xf] %v353
      %v355 = vld [vmem:[%s224 + $0x3c] sm:$0xf]
      %v356 = vsel %vm268, 0, %v355
      %357 = vst [vmem:[%s224 + $0x3c] sm:$0xf] %v356
      %v358 = vld [vmem:[%s224 + $0x44] sm:$0xf]
      %v359 = vsel %vm268, 0, %v358
      %360 = vst [vmem:[%s224 + $0x44] sm:$0xf] %v359
      %v361 = vld [vmem:[%s224 + $0x4c] sm:$0xf]
      %v362 = vsel %vm268, 0, %v361
      %363 = vst [vmem:[%s224 + $0x4c] sm:$0xf] %v362
      %s364 = smul.u32 0, 2
      %s365 = smul.addr %s364, 4
      %s366 = scalar_lea.vmem %s219, %s365
      %v367 = vld [vmem:[%s366] sm:$0xf]
      %v368 = vld [vmem:[%s366 + $0x8] sm:$0xf]
      %v369 = vld [vmem:[%s366 + $0x10] sm:$0xf]
      %v370 = vld [vmem:[%s366 + $0x18] sm:$0xf]
      %v371 = vld [vmem:[%s366 + $0x20] sm:$0xf]
      %v372 = vld [vmem:[%s366 + $0x28] sm:$0xf]
      %v373 = vld [vmem:[%s366 + $0x30] sm:$0xf]
      %v374 = vld [vmem:[%s366 + $0x38] sm:$0xf]
      %v375 = vld [vmem:[%s1] sm:$0xf]
      %v376 = vld [vmem:[%s1 + $0x4] sm:$0xf]
      %v377 = vld [vmem:[%s1 + $0x8] sm:$0xf]
      %v378 = vld [vmem:[%s1 + $0xc] sm:$0xf]
      %v379 = vld [vmem:[%s1 + $0x10] sm:$0xf]
      %v380 = vld [vmem:[%s1 + $0x14] sm:$0xf]
      %v381 = vld [vmem:[%s1 + $0x18] sm:$0xf]
      %v382 = vld [vmem:[%s1 + $0x1c] sm:$0xf]
      %v383 = vld [vmem:[%s1 + $0x20] sm:$0xf]
      %v384 = vld [vmem:[%s1 + $0x24] sm:$0xf]
      %v385 = vld [vmem:[%s1 + $0x28] sm:$0xf]
      %v386 = vld [vmem:[%s1 + $0x2c] sm:$0xf]
      %v387 = vld [vmem:[%s1 + $0x30] sm:$0xf]
      %v388 = vld [vmem:[%s1 + $0x34] sm:$0xf]
      %v389 = vld [vmem:[%s1 + $0x38] sm:$0xf]
      %v390 = vld [vmem:[%s1 + $0x3c] sm:$0xf]
      %v391 = vld [vmem:[%s366 + $0x4] sm:$0x1]
      %v392 = vld [vmem:[%s366 + $0xc] sm:$0x1]
      %v393 = vld [vmem:[%s366 + $0x14] sm:$0x1]
      %v394 = vld [vmem:[%s366 + $0x1c] sm:$0x1]
      %v395 = vld [vmem:[%s366 + $0x24] sm:$0x1]
      %v396 = vld [vmem:[%s366 + $0x2c] sm:$0x1]
      %v397 = vld [vmem:[%s366 + $0x34] sm:$0x1]
      %v398 = vld [vmem:[%s366 + $0x3c] sm:$0x1]
      %vm399 = vsmask.f32 3328
      %vm400 = vsmask.f32 7440
      %vm401 = vmor %vm399, %vm400
      %v403 = vshrl.u32 %v367, 16
      %v405 = vrot.slane %v403, 4
      %v406 = vshll.u32 %v367, 16
      %v408 = vrot.slane %v406, 5
      %v409 = vor.u32 %v405, %v408
      %v410 = vrot.slane %v409, 4
      %v412 = vshll.u32 %v391, 16
      %v414 = vrot.slane %v412, 5
      %v415 = vsel %vm401, %v410, %v414
      %v417 = vshrl.u32 %v368, 16
      %v419 = vrot.slane %v417, 4
      %v420 = vshll.u32 %v368, 16
      %v422 = vrot.slane %v420, 5
      %v423 = vor.u32 %v419, %v422
      %v424 = vrot.slane %v423, 4
      %v426 = vshll.u32 %v392, 16
      %v428 = vrot.slane %v426, 5
      %v429 = vsel %vm401, %v424, %v428
      %v431 = vshrl.u32 %v369, 16
      %v433 = vrot.slane %v431, 4
      %v434 = vshll.u32 %v369, 16
      %v436 = vrot.slane %v434, 5
      %v437 = vor.u32 %v433, %v436
      %v438 = vrot.slane %v437, 4
      %v440 = vshll.u32 %v393, 16
      %v442 = vrot.slane %v440, 5
      %v443 = vsel %vm401, %v438, %v442
      %v445 = vshrl.u32 %v370, 16
      %v447 = vrot.slane %v445, 4
      %v448 = vshll.u32 %v370, 16
      %v450 = vrot.slane %v448, 5
      %v451 = vor.u32 %v447, %v450
      %v452 = vrot.slane %v451, 4
      %v454 = vshll.u32 %v394, 16
      %v456 = vrot.slane %v454, 5
      %v457 = vsel %vm401, %v452, %v456
      %v459 = vshrl.u32 %v371, 16
      %v461 = vrot.slane %v459, 4
      %v462 = vshll.u32 %v371, 16
      %v464 = vrot.slane %v462, 5
      %v465 = vor.u32 %v461, %v464
      %v466 = vrot.slane %v465, 4
      %v468 = vshll.u32 %v395, 16
      %v470 = vrot.slane %v468, 5
      %v471 = vsel %vm401, %v466, %v470
      %v473 = vshrl.u32 %v372, 16
      %v475 = vrot.slane %v473, 4
      %v476 = vshll.u32 %v372, 16
      %v478 = vrot.slane %v476, 5
      %v479 = vor.u32 %v475, %v478
      %v480 = vrot.slane %v479, 4
      %v482 = vshll.u32 %v396, 16
      %v484 = vrot.slane %v482, 5
      %v485 = vsel %vm401, %v480, %v484
      %v487 = vshrl.u32 %v373, 16
      %v489 = vrot.slane %v487, 4
      %v490 = vshll.u32 %v373, 16
      %v492 = vrot.slane %v490, 5
      %v493 = vor.u32 %v489, %v492
      %v494 = vrot.slane %v493, 4
      %v496 = vshll.u32 %v397, 16
      %v498 = vrot.slane %v496, 5
      %v499 = vsel %vm401, %v494, %v498
      %v501 = vshrl.u32 %v374, 16
      %v503 = vrot.slane %v501, 4
      %v504 = vshll.u32 %v374, 16
      %v506 = vrot.slane %v504, 5
      %v507 = vor.u32 %v503, %v506
      %v508 = vrot.slane %v507, 4
      %v510 = vshll.u32 %v398, 16
      %v512 = vrot.slane %v510, 5
      %v513 = vsel %vm401, %v508, %v512
      %v514 = vld [vmem:[%s1 + $0x40] sm:$0xf]
      %v515 = vld [vmem:[%s1 + $0x44] sm:$0xf]
      %v516 = vld [vmem:[%s1 + $0x48] sm:$0xf]
      %v517 = vld [vmem:[%s1 + $0x4c] sm:$0xf]
      %v518 = vld [vmem:[%s1 + $0x50] sm:$0xf]
      %v519 = vld [vmem:[%s1 + $0x54] sm:$0xf]
      %v520 = vld [vmem:[%s1 + $0x58] sm:$0xf]
      %v521 = vld [vmem:[%s1 + $0x5c] sm:$0xf]
      %v522 = vld [vmem:[%s1 + $0x60] sm:$0xf]
      %v523 = vld [vmem:[%s1 + $0x64] sm:$0xf]
      %v524 = vld [vmem:[%s1 + $0x68] sm:$0xf]
      %v525 = vld [vmem:[%s1 + $0x6c] sm:$0xf]
      %v526 = vld [vmem:[%s1 + $0x70] sm:$0xf]
      %v527 = vld [vmem:[%s1 + $0x74] sm:$0xf]
      %v528 = vld [vmem:[%s1 + $0x78] sm:$0xf]
      %v529 = vld [vmem:[%s1 + $0x7c] sm:$0xf]
      %v530 = vunpack.c.l.b16 %v415
      %v531 = vunpack.c.l.b16 %v429
      %v532 = vunpack.c.l.b16 %v443
      %v533 = vunpack.c.l.b16 %v457
      %v534 = vunpack.c.l.b16 %v471
      %v535 = vunpack.c.l.b16 %v485
      %v536 = vunpack.c.l.b16 %v499
      %v537 = vunpack.c.l.b16 %v513
      %v538 = vpack.c.b16 %v531, %v530
      %v539 = vpack.c.b16 %v533, %v532
      %v540 = vpack.c.b16 %v535, %v534
      %v541 = vpack.c.b16 %v537, %v536
      %v562 = vunpack.c.l.b16 %v514
      %v563 = vunpack.c.l.b16 %v515
      %v564 = vunpack.c.l.b16 %v516
      %v565 = vunpack.c.l.b16 %v517
      %v566 = vunpack.c.l.b16 %v518
      %v567 = vunpack.c.l.b16 %v519
      %v568 = vunpack.c.l.b16 %v520
      %v569 = vunpack.c.l.b16 %v521
      %v570 = vunpack.c.l.b16 %v522
      %v571 = vunpack.c.l.b16 %v523
      %v572 = vunpack.c.l.b16 %v524
      %v573 = vunpack.c.l.b16 %v525
      %v574 = vunpack.c.l.b16 %v526
      %v575 = vunpack.c.l.b16 %v527
      %v576 = vunpack.c.l.b16 %v528
      %v577 = vunpack.c.l.b16 %v529
      %v578 = vpack.c.b16 %v563, %v562
      %v579 = vpack.c.b16 %v565, %v564
      %v580 = vpack.c.b16 %v567, %v566
      %v581 = vpack.c.b16 %v569, %v568
      %v582 = vpack.c.b16 %v571, %v570
      %v583 = vpack.c.b16 %v573, %v572
      %v584 = vpack.c.b16 %v575, %v574
      %v585 = vpack.c.b16 %v577, %v576
      %594 = vmatprep.subr.bf16.mxu0 0
      %595 = vmatpush1.bf16.msra.mxu0 %v585
      %596 = vmatprep.subr.bf16.mxu0 0
      %597 = vmatpush1.bf16.msra.mxu0 %v584
      %598 = vmatprep.subr.bf16.mxu0 0
      %599 = vmatpush1.bf16.msra.mxu0 %v583
      %600 = vmatprep.subr.bf16.mxu0 0
      %601 = vmatpush1.bf16.msra.mxu0 %v582
      %602 = vmatprep.subr.bf16.mxu0 0
      %603 = vmatpush1.bf16.msra.mxu0 %v581
      %604 = vmatprep.subr.bf16.mxu0 0
      %605 = vmatpush1.bf16.msra.mxu0 %v580
      %606 = vmatprep.subr.bf16.mxu0 0
      %607 = vmatpush1.bf16.msra.mxu0 %v579
      %608 = vmatprep.subr.bf16.mxu0 0
      %609 = vmatpush1.bf16.msra.mxu0 %v578
      %610 = vmatprep.subr.bf16.mxu0 0
      %611 = vmatpush2.bf16.msra.mxu0 0
      %612 = vmatprep.subr.bf16.mxu0 0
      %613 = vmatpush2.bf16.msra.mxu0 0
      %614 = vmatprep.subr.bf16.mxu0 0
      %615 = vmatpush2.bf16.msra.mxu0 0
      %616 = vmatprep.subr.bf16.mxu0 0
      %617 = vmatpush2.bf16.msra.mxu0 0
      %618 = vmatprep.subr.bf16.mxu0 0
      %619 = vmatpush2.bf16.msra.mxu0 0
      %620 = vmatprep.subr.bf16.mxu0 0
      %621 = vmatpush2.bf16.msra.mxu0 0
      %622 = vmatprep.subr.bf16.mxu0 0
      %623 = vmatpush2.bf16.msra.mxu0 0
      %624 = vmatprep.subr.bf16.mxu0 0
      %625 = vmatpush2.bf16.msra.mxu0 0
      %626 = vmatprep.mubr.bf16.mxu0 0
      %627 = vmatmul.mubr.bf16.gmra.mxu0 %v538
      %v628 = vpop.f32.mrf.mxu0
      %v629 = vadd.f32 0.0, %v628
      %v630 = vpop.f32.mrf.mxu0
      %v631 = vpop.f32.mrf.mxu0
      %v632 = vadd.f32 0.0, %v631
      %v633 = vpop.f32.mrf.mxu0
      %634 = vmatprep.mubr.bf16.mxu0 0
      %635 = vmatmul.mubr.bf16.gmra.mxu0 %v539
      %v636 = vpop.f32.mrf.mxu0
      %v637 = vadd.f32 0.0, %v636
      %v638 = vpop.f32.mrf.mxu0
      %v639 = vpop.f32.mrf.mxu0
      %v640 = vadd.f32 0.0, %v639
      %v641 = vpop.f32.mrf.mxu0
      %642 = vmatprep.mubr.bf16.mxu0 0
      %643 = vmatmul.mubr.bf16.gmra.mxu0 %v540
      %v644 = vpop.f32.mrf.mxu0
      %v645 = vadd.f32 0.0, %v644
      %v646 = vpop.f32.mrf.mxu0
      %v647 = vpop.f32.mrf.mxu0
      %v648 = vadd.f32 0.0, %v647
      %v649 = vpop.f32.mrf.mxu0
      %650 = vmatprep.mubr.bf16.mxu0 0
      %651 = vmatmul.mubr.bf16.gmra.mxu0 %v541
      %v652 = vpop.f32.mrf.mxu0
      %v653 = vadd.f32 0.0, %v652
      %v654 = vpop.f32.mrf.mxu0
      %v655 = vpop.f32.mrf.mxu0
      %v656 = vadd.f32 0.0, %v655
      %v657 = vpop.f32.mrf.mxu0
      %658 = vdwg.mxu0
      %v667 = vunpack.c.l.b16 %v367
      %v668 = vunpack.c.l.b16 %v368
      %v669 = vunpack.c.l.b16 %v369
      %v670 = vunpack.c.l.b16 %v370
      %v671 = vunpack.c.l.b16 %v371
      %v672 = vunpack.c.l.b16 %v372
      %v673 = vunpack.c.l.b16 %v373
      %v674 = vunpack.c.l.b16 %v374
      %v675 = vpack.c.b16 %v668, %v667
      %v676 = vpack.c.b16 %v670, %v669
      %v677 = vpack.c.b16 %v672, %v671
      %v678 = vpack.c.b16 %v674, %v673
      %v699 = vunpack.c.l.b16 %v375
      %v700 = vunpack.c.l.b16 %v376
      %v701 = vunpack.c.l.b16 %v377
      %v702 = vunpack.c.l.b16 %v378
      %v703 = vunpack.c.l.b16 %v379
      %v704 = vunpack.c.l.b16 %v380
      %v705 = vunpack.c.l.b16 %v381
      %v706 = vunpack.c.l.b16 %v382
      %v707 = vunpack.c.l.b16 %v383
      %v708 = vunpack.c.l.b16 %v384
      %v709 = vunpack.c.l.b16 %v385
      %v710 = vunpack.c.l.b16 %v386
      %v711 = vunpack.c.l.b16 %v387
      %v712 = vunpack.c.l.b16 %v388
      %v713 = vunpack.c.l.b16 %v389
      %v714 = vunpack.c.l.b16 %v390
      %v715 = vpack.c.b16 %v700, %v699
      %v716 = vpack.c.b16 %v702, %v701
      %v717 = vpack.c.b16 %v704, %v703
      %v718 = vpack.c.b16 %v706, %v705
      %v719 = vpack.c.b16 %v708, %v707
      %v720 = vpack.c.b16 %v710, %v709
      %v721 = vpack.c.b16 %v712, %v711
      %v722 = vpack.c.b16 %v714, %v713
      %731 = vmatprep.subr.bf16.mxu0 0
      %732 = vmatpush1.bf16.msra.mxu0 %v722
      %733 = vmatprep.subr.bf16.mxu0 0
      %734 = vmatpush1.bf16.msra.mxu0 %v721
      %735 = vmatprep.subr.bf16.mxu0 0
      %736 = vmatpush1.bf16.msra.mxu0 %v720
      %737 = vmatprep.subr.bf16.mxu0 0
      %738 = vmatpush1.bf16.msra.mxu0 %v719
      %739 = vmatprep.subr.bf16.mxu0 0
      %740 = vmatpush1.bf16.msra.mxu0 %v718
      %741 = vmatprep.subr.bf16.mxu0 0
      %742 = vmatpush1.bf16.msra.mxu0 %v717
      %743 = vmatprep.subr.bf16.mxu0 0
      %744 = vmatpush1.bf16.msra.mxu0 %v716
      %745 = vmatprep.subr.bf16.mxu0 0
      %746 = vmatpush1.bf16.msra.mxu0 %v715
      %747 = vmatprep.subr.bf16.mxu0 0
      %748 = vmatpush2.bf16.msra.mxu0 0
      %749 = vmatprep.subr.bf16.mxu0 0
      %750 = vmatpush2.bf16.msra.mxu0 0
      %751 = vmatprep.subr.bf16.mxu0 0
      %752 = vmatpush2.bf16.msra.mxu0 0
      %753 = vmatprep.subr.bf16.mxu0 0
      %754 = vmatpush2.bf16.msra.mxu0 0
      %755 = vmatprep.subr.bf16.mxu0 0
      %756 = vmatpush2.bf16.msra.mxu0 0
      %757 = vmatprep.subr.bf16.mxu0 0
      %758 = vmatpush2.bf16.msra.mxu0 0
      %759 = vmatprep.subr.bf16.mxu0 0
      %760 = vmatpush2.bf16.msra.mxu0 0
      %761 = vmatprep.subr.bf16.mxu0 0
      %762 = vmatpush2.bf16.msra.mxu0 0
      %763 = vmatprep.mubr.bf16.mxu0 0
      %764 = vmatmul.mubr.bf16.gmra.mxu0 %v675
      %v765 = vpop.f32.mrf.mxu0
      %v766 = vadd.f32 %v629, %v765
      %v767 = vpop.f32.mrf.mxu0
      %v768 = vpop.f32.mrf.mxu0
      %v769 = vadd.f32 %v632, %v768
      %v770 = vpop.f32.mrf.mxu0
      %771 = vmatprep.mubr.bf16.mxu0 0
      %772 = vmatmul.mubr.bf16.gmra.mxu0 %v676
      %v773 = vpop.f32.mrf.mxu0
      %v774 = vadd.f32 %v637, %v773
      %v775 = vpop.f32.mrf.mxu0
      %v776 = vpop.f32.mrf.mxu0
      %v777 = vadd.f32 %v640, %v776
      %v778 = vpop.f32.mrf.mxu0
      %779 = vmatprep.mubr.bf16.mxu0 0
      %780 = vmatmul.mubr.bf16.gmra.mxu0 %v677
      %v781 = vpop.f32.mrf.mxu0
      %v782 = vadd.f32 %v645, %v781
      %v783 = vpop.f32.mrf.mxu0
      %v784 = vpop.f32.mrf.mxu0
      %v785 = vadd.f32 %v648, %v784
      %v786 = vpop.f32.mrf.mxu0
      %787 = vmatprep.mubr.bf16.mxu0 0
      %788 = vmatmul.mubr.bf16.gmra.mxu0 %v678
      %v789 = vpop.f32.mrf.mxu0
      %v790 = vadd.f32 %v653, %v789
      %v791 = vpop.f32.mrf.mxu0
      %v792 = vpop.f32.mrf.mxu0
      %v793 = vadd.f32 %v656, %v792
      %v794 = vpop.f32.mrf.mxu0
      %795 = vdwg.mxu0
      %v796 = vld [vmem:[%s366] sm:$0xe]
      %v797 = vld [vmem:[%s366 + $0x8] sm:$0xe]
      %v798 = vld [vmem:[%s366 + $0x10] sm:$0xe]
      %v799 = vld [vmem:[%s366 + $0x18] sm:$0xe]
      %v800 = vld [vmem:[%s366 + $0x20] sm:$0xe]
      %v801 = vld [vmem:[%s366 + $0x28] sm:$0xe]
      %v802 = vld [vmem:[%s366 + $0x30] sm:$0xe]
      %v803 = vld [vmem:[%s366 + $0x38] sm:$0xe]
      %vm820 = vcmask 1042432
      %vm821 = vcmask 1046532
      %vm822 = vmor %vm820, %vm821
      %v823 = vrot.slane %v796, 5
      %v824 = vrot.slane %v823, 4
      %v825 = vrot.slane %v391, 5
      %v826 = vsel %vm822, %v824, %v825
      %v827 = vrot.slane %v797, 5
      %v828 = vrot.slane %v827, 4
      %v829 = vrot.slane %v392, 5
      %v830 = vsel %vm822, %v828, %v829
      %v831 = vrot.slane %v798, 5
      %v832 = vrot.slane %v831, 4
      %v833 = vrot.slane %v393, 5
      %v834 = vsel %vm822, %v832, %v833
      %v835 = vrot.slane %v799, 5
      %v836 = vrot.slane %v835, 4
      %v837 = vrot.slane %v394, 5
      %v838 = vsel %vm822, %v836, %v837
      %v839 = vrot.slane %v800, 5
      %v840 = vrot.slane %v839, 4
      %v841 = vrot.slane %v395, 5
      %v842 = vsel %vm822, %v840, %v841
      %v843 = vrot.slane %v801, 5
      %v844 = vrot.slane %v843, 4
      %v845 = vrot.slane %v396, 5
      %v846 = vsel %vm822, %v844, %v845
      %v847 = vrot.slane %v802, 5
      %v848 = vrot.slane %v847, 4
      %v849 = vrot.slane %v397, 5
      %v850 = vsel %vm822, %v848, %v849
      %v851 = vrot.slane %v803, 5
      %v852 = vrot.slane %v851, 4
      %v853 = vrot.slane %v398, 5
      %v854 = vsel %vm822, %v852, %v853
      %v855 = vld [vmem:[%s1 + $0x80] sm:$0xf]
      %v856 = vld [vmem:[%s1 + $0x84] sm:$0xf]
      %v857 = vld [vmem:[%s1 + $0x88] sm:$0xf]
      %v858 = vld [vmem:[%s1 + $0x8c] sm:$0xf]
      %v859 = vld [vmem:[%s1 + $0x90] sm:$0xf]
      %v860 = vld [vmem:[%s1 + $0x94] sm:$0xf]
      %v861 = vld [vmem:[%s1 + $0x98] sm:$0xf]
      %v862 = vld [vmem:[%s1 + $0x9c] sm:$0xf]
      %v863 = vld [vmem:[%s1 + $0xa0] sm:$0xf]
      %v864 = vld [vmem:[%s1 + $0xa4] sm:$0xf]
      %v865 = vld [vmem:[%s1 + $0xa8] sm:$0xf]
      %v866 = vld [vmem:[%s1 + $0xac] sm:$0xf]
      %v867 = vld [vmem:[%s1 + $0xb0] sm:$0xf]
      %v868 = vld [vmem:[%s1 + $0xb4] sm:$0xf]
      %v869 = vld [vmem:[%s1 + $0xb8] sm:$0xf]
      %v870 = vld [vmem:[%s1 + $0xbc] sm:$0xf]
      %v871 = vunpack.c.l.b16 %v826
      %v872 = vunpack.c.l.b16 %v830
      %v873 = vunpack.c.l.b16 %v834
      %v874 = vunpack.c.l.b16 %v838
      %v875 = vunpack.c.l.b16 %v842
      %v876 = vunpack.c.l.b16 %v846
      %v877 = vunpack.c.l.b16 %v850
      %v878 = vunpack.c.l.b16 %v854
      %v879 = vpack.c.b16 %v872, %v871
      %v880 = vpack.c.b16 %v874, %v873
      %v881 = vpack.c.b16 %v876, %v875
      %v882 = vpack.c.b16 %v878, %v877
      %v903 = vunpack.c.l.b16 %v855
      %v904 = vunpack.c.l.b16 %v856
      %v905 = vunpack.c.l.b16 %v857
      %v906 = vunpack.c.l.b16 %v858
      %v907 = vunpack.c.l.b16 %v859
      %v908 = vunpack.c.l.b16 %v860
      %v909 = vunpack.c.l.b16 %v861
      %v910 = vunpack.c.l.b16 %v862
      %v911 = vunpack.c.l.b16 %v863
      %v912 = vunpack.c.l.b16 %v864
      %v913 = vunpack.c.l.b16 %v865
      %v914 = vunpack.c.l.b16 %v866
      %v915 = vunpack.c.l.b16 %v867
      %v916 = vunpack.c.l.b16 %v868
      %v917 = vunpack.c.l.b16 %v869
      %v918 = vunpack.c.l.b16 %v870
      %v919 = vpack.c.b16 %v904, %v903
      %v920 = vpack.c.b16 %v906, %v905
      %v921 = vpack.c.b16 %v908, %v907
      %v922 = vpack.c.b16 %v910, %v909
      %v923 = vpack.c.b16 %v912, %v911
      %v924 = vpack.c.b16 %v914, %v913
      %v925 = vpack.c.b16 %v916, %v915
      %v926 = vpack.c.b16 %v918, %v917
      %935 = vmatprep.subr.bf16.mxu0 0
      %936 = vmatpush1.bf16.msra.mxu0 %v926
      %937 = vmatprep.subr.bf16.mxu0 0
      %938 = vmatpush1.bf16.msra.mxu0 %v925
      %939 = vmatprep.subr.bf16.mxu0 0
      %940 = vmatpush1.bf16.msra.mxu0 %v924
      %941 = vmatprep.subr.bf16.mxu0 0
      %942 = vmatpush1.bf16.msra.mxu0 %v923
      %943 = vmatprep.subr.bf16.mxu0 0
      %944 = vmatpush1.bf16.msra.mxu0 %v922
      %945 = vmatprep.subr.bf16.mxu0 0
      %946 = vmatpush1.bf16.msra.mxu0 %v921
      %947 = vmatprep.subr.bf16.mxu0 0
      %948 = vmatpush1.bf16.msra.mxu0 %v920
      %949 = vmatprep.subr.bf16.mxu0 0
      %950 = vmatpush1.bf16.msra.mxu0 %v919
      %951 = vmatprep.subr.bf16.mxu0 0
      %952 = vmatpush2.bf16.msra.mxu0 0
      %953 = vmatprep.subr.bf16.mxu0 0
      %954 = vmatpush2.bf16.msra.mxu0 0
      %955 = vmatprep.subr.bf16.mxu0 0
      %956 = vmatpush2.bf16.msra.mxu0 0
      %957 = vmatprep.subr.bf16.mxu0 0
      %958 = vmatpush2.bf16.msra.mxu0 0
      %959 = vmatprep.subr.bf16.mxu0 0
      %960 = vmatpush2.bf16.msra.mxu0 0
      %961 = vmatprep.subr.bf16.mxu0 0
      %962 = vmatpush2.bf16.msra.mxu0 0
      %963 = vmatprep.subr.bf16.mxu0 0
      %964 = vmatpush2.bf16.msra.mxu0 0
      %965 = vmatprep.subr.bf16.mxu0 0
      %966 = vmatpush2.bf16.msra.mxu0 0
      %967 = vmatprep.mubr.bf16.mxu0 0
      %968 = vmatmul.mubr.bf16.gmra.mxu0 %v879
      %v969 = vpop.f32.mrf.mxu0
      %v970 = vadd.f32 0.0, %v969
      %v971 = vpop.f32.mrf.mxu0
      %v972 = vpop.f32.mrf.mxu0
      %v973 = vadd.f32 0.0, %v972
      %v974 = vpop.f32.mrf.mxu0
      %975 = vmatprep.mubr.bf16.mxu0 0
      %976 = vmatmul.mubr.bf16.gmra.mxu0 %v880
      %v977 = vpop.f32.mrf.mxu0
      %v978 = vadd.f32 0.0, %v977
      %v979 = vpop.f32.mrf.mxu0
      %v980 = vpop.f32.mrf.mxu0
      %v981 = vadd.f32 0.0, %v980
      %v982 = vpop.f32.mrf.mxu0
      %983 = vmatprep.mubr.bf16.mxu0 0
      %984 = vmatmul.mubr.bf16.gmra.mxu0 %v881
      %v985 = vpop.f32.mrf.mxu0
      %v986 = vadd.f32 0.0, %v985
      %v987 = vpop.f32.mrf.mxu0
      %v988 = vpop.f32.mrf.mxu0
      %v989 = vadd.f32 0.0, %v988
      %v990 = vpop.f32.mrf.mxu0
      %991 = vmatprep.mubr.bf16.mxu0 0
      %992 = vmatmul.mubr.bf16.gmra.mxu0 %v882
      %v993 = vpop.f32.mrf.mxu0
      %v994 = vadd.f32 0.0, %v993
      %v995 = vpop.f32.mrf.mxu0
      %v996 = vpop.f32.mrf.mxu0
      %v997 = vadd.f32 0.0, %v996
      %v998 = vpop.f32.mrf.mxu0
      %999 = vdwg.mxu0
      %v1000 = vadd.f32 %v766, %v970
      %v1001 = vadd.f32 %v769, %v973
      %v1002 = vadd.f32 %v774, %v978
      %v1003 = vadd.f32 %v777, %v981
      %v1004 = vadd.f32 %v782, %v986
      %v1005 = vadd.f32 %v785, %v989
      %v1006 = vadd.f32 %v790, %v994
      %v1007 = vadd.f32 %v793, %v997
      %s1008 = sadd.s32 0, 1
      %s1009 = smul.u32 %s1008, 2
      %s1010 = smul.addr %s1009, 4
      %s1011 = scalar_lea.vmem %s219, %s1010
      %v1012 = vld [vmem:[%s1011] sm:$0xf]
      %v1013 = vld [vmem:[%s1011 + $0x8] sm:$0xf]
      %v1014 = vld [vmem:[%s1011 + $0x10] sm:$0xf]
      %v1015 = vld [vmem:[%s1011 + $0x18] sm:$0xf]
      %v1016 = vld [vmem:[%s1011 + $0x20] sm:$0xf]
      %v1017 = vld [vmem:[%s1011 + $0x28] sm:$0xf]
      %v1018 = vld [vmem:[%s1011 + $0x30] sm:$0xf]
      %v1019 = vld [vmem:[%s1011 + $0x38] sm:$0xf]
      %v1020 = vld [vmem:[%s1 + $0xc0] sm:$0xf]
      %v1021 = vld [vmem:[%s1 + $0xc4] sm:$0xf]
      %v1022 = vld [vmem:[%s1 + $0xc8] sm:$0xf]
      %v1023 = vld [vmem:[%s1 + $0xcc] sm:$0xf]
      %v1024 = vld [vmem:[%s1 + $0xd0] sm:$0xf]
      %v1025 = vld [vmem:[%s1 + $0xd4] sm:$0xf]
      %v1026 = vld [vmem:[%s1 + $0xd8] sm:$0xf]
      %v1027 = vld [vmem:[%s1 + $0xdc] sm:$0xf]
      %v1028 = vld [vmem:[%s1 + $0xe0] sm:$0xf]
      %v1029 = vld [vmem:[%s1 + $0xe4] sm:$0xf]
      %v1030 = vld [vmem:[%s1 + $0xe8] sm:$0xf]
      %v1031 = vld [vmem:[%s1 + $0xec] sm:$0xf]
      %v1032 = vld [vmem:[%s1 + $0xf0] sm:$0xf]
      %v1033 = vld [vmem:[%s1 + $0xf4] sm:$0xf]
      %v1034 = vld [vmem:[%s1 + $0xf8] sm:$0xf]
      %v1035 = vld [vmem:[%s1 + $0xfc] sm:$0xf]
      %v1044 = vunpack.c.l.b16 %v1012
      %v1045 = vunpack.c.l.b16 %v1013
      %v1046 = vunpack.c.l.b16 %v1014
      %v1047 = vunpack.c.l.b16 %v1015
      %v1048 = vunpack.c.l.b16 %v1016
      %v1049 = vunpack.c.l.b16 %v1017
      %v1050 = vunpack.c.l.b16 %v1018
      %v1051 = vunpack.c.l.b16 %v1019
      %v1052 = vpack.c.b16 %v1045, %v1044
      %v1053 = vpack.c.b16 %v1047, %v1046
      %v1054 = vpack.c.b16 %v1049, %v1048
      %v1055 = vpack.c.b16 %v1051, %v1050
      %v1076 = vunpack.c.l.b16 %v1020
      %v1077 = vunpack.c.l.b16 %v1021
      %v1078 = vunpack.c.l.b16 %v1022
      %v1079 = vunpack.c.l.b16 %v1023
      %v1080 = vunpack.c.l.b16 %v1024
      %v1081 = vunpack.c.l.b16 %v1025
      %v1082 = vunpack.c.l.b16 %v1026
      %v1083 = vunpack.c.l.b16 %v1027
      %v1084 = vunpack.c.l.b16 %v1028
      %v1085 = vunpack.c.l.b16 %v1029
      %v1086 = vunpack.c.l.b16 %v1030
      %v1087 = vunpack.c.l.b16 %v1031
      %v1088 = vunpack.c.l.b16 %v1032
      %v1089 = vunpack.c.l.b16 %v1033
      %v1090 = vunpack.c.l.b16 %v1034
      %v1091 = vunpack.c.l.b16 %v1035
      %v1092 = vpack.c.b16 %v1077, %v1076
      %v1093 = vpack.c.b16 %v1079, %v1078
      %v1094 = vpack.c.b16 %v1081, %v1080
      %v1095 = vpack.c.b16 %v1083, %v1082
      %v1096 = vpack.c.b16 %v1085, %v1084
      %v1097 = vpack.c.b16 %v1087, %v1086
      %v1098 = vpack.c.b16 %v1089, %v1088
      %v1099 = vpack.c.b16 %v1091, %v1090
      %1108 = vmatprep.subr.bf16.mxu0 0
      %1109 = vmatpush1.bf16.msra.mxu0 %v1099
      %1110 = vmatprep.subr.bf16.mxu0 0
      %1111 = vmatpush1.bf16.msra.mxu0 %v1098
      %1112 = vmatprep.subr.bf16.mxu0 0
      %1113 = vmatpush1.bf16.msra.mxu0 %v1097
      %1114 = vmatprep.subr.bf16.mxu0 0
      %1115 = vmatpush1.bf16.msra.mxu0 %v1096
      %1116 = vmatprep.subr.bf16.mxu0 0
      %1117 = vmatpush1.bf16.msra.mxu0 %v1095
      %1118 = vmatprep.subr.bf16.mxu0 0
      %1119 = vmatpush1.bf16.msra.mxu0 %v1094
      %1120 = vmatprep.subr.bf16.mxu0 0
      %1121 = vmatpush1.bf16.msra.mxu0 %v1093
      %1122 = vmatprep.subr.bf16.mxu0 0
      %1123 = vmatpush1.bf16.msra.mxu0 %v1092
      %1124 = vmatprep.subr.bf16.mxu0 0
      %1125 = vmatpush2.bf16.msra.mxu0 0
      %1126 = vmatprep.subr.bf16.mxu0 0
      %1127 = vmatpush2.bf16.msra.mxu0 0
      %1128 = vmatprep.subr.bf16.mxu0 0
      %1129 = vmatpush2.bf16.msra.mxu0 0
      %1130 = vmatprep.subr.bf16.mxu0 0
      %1131 = vmatpush2.bf16.msra.mxu0 0
      %1132 = vmatprep.subr.bf16.mxu0 0
      %1133 = vmatpush2.bf16.msra.mxu0 0
      %1134 = vmatprep.subr.bf16.mxu0 0
      %1135 = vmatpush2.bf16.msra.mxu0 0
      %1136 = vmatprep.subr.bf16.mxu0 0
      %1137 = vmatpush2.bf16.msra.mxu0 0
      %1138 = vmatprep.subr.bf16.mxu0 0
      %1139 = vmatpush2.bf16.msra.mxu0 0
      %1140 = vmatprep.mubr.bf16.mxu0 0
      %1141 = vmatmul.mubr.bf16.gmra.mxu0 %v1052
      %v1142 = vpop.f32.mrf.mxu0
      %v1143 = vadd.f32 0.0, %v1142
      %v1144 = vpop.f32.mrf.mxu0
      %v1145 = vpop.f32.mrf.mxu0
      %v1146 = vadd.f32 0.0, %v1145
      %v1147 = vpop.f32.mrf.mxu0
      %1148 = vmatprep.mubr.bf16.mxu0 0
      %1149 = vmatmul.mubr.bf16.gmra.mxu0 %v1053
      %v1150 = vpop.f32.mrf.mxu0
      %v1151 = vadd.f32 0.0, %v1150
      %v1152 = vpop.f32.mrf.mxu0
      %v1153 = vpop.f32.mrf.mxu0
      %v1154 = vadd.f32 0.0, %v1153
      %v1155 = vpop.f32.mrf.mxu0
      %1156 = vmatprep.mubr.bf16.mxu0 0
      %1157 = vmatmul.mubr.bf16.gmra.mxu0 %v1054
      %v1158 = vpop.f32.mrf.mxu0
      %v1159 = vadd.f32 0.0, %v1158
      %v1160 = vpop.f32.mrf.mxu0
      %v1161 = vpop.f32.mrf.mxu0
      %v1162 = vadd.f32 0.0, %v1161
      %v1163 = vpop.f32.mrf.mxu0
      %1164 = vmatprep.mubr.bf16.mxu0 0
      %1165 = vmatmul.mubr.bf16.gmra.mxu0 %v1055
      %v1166 = vpop.f32.mrf.mxu0
      %v1167 = vadd.f32 0.0, %v1166
      %v1168 = vpop.f32.mrf.mxu0
      %v1169 = vpop.f32.mrf.mxu0
      %v1170 = vadd.f32 0.0, %v1169
      %v1171 = vpop.f32.mrf.mxu0
      %1172 = vdwg.mxu0
      %v1173 = vadd.f32 %v1000, %v1143
      %v1174 = vadd.f32 %v1001, %v1146
      %v1175 = vadd.f32 %v1002, %v1151
      %v1176 = vadd.f32 %v1003, %v1154
      %v1177 = vadd.f32 %v1004, %v1159
      %v1178 = vadd.f32 %v1005, %v1162
      %v1179 = vadd.f32 %v1006, %v1167
      %v1180 = vadd.f32 %v1007, %v1170
      %v1181 = vld [vmem:[%s1011] sm:$0xf]
      %v1182 = vld [vmem:[%s1011 + $0x4] sm:$0x1]
      %v1183 = vld [vmem:[%s1011 + $0x8] sm:$0xf]
      %v1184 = vld [vmem:[%s1011 + $0xc] sm:$0x1]
      %v1185 = vld [vmem:[%s1011 + $0x10] sm:$0xf]
      %v1186 = vld [vmem:[%s1011 + $0x14] sm:$0x1]
      %v1187 = vld [vmem:[%s1011 + $0x18] sm:$0xf]
      %v1188 = vld [vmem:[%s1011 + $0x1c] sm:$0x1]
      %v1189 = vld [vmem:[%s1011 + $0x20] sm:$0xf]
      %v1190 = vld [vmem:[%s1011 + $0x24] sm:$0x1]
      %v1191 = vld [vmem:[%s1011 + $0x28] sm:$0xf]
      %v1192 = vld [vmem:[%s1011 + $0x2c] sm:$0x1]
      %v1193 = vld [vmem:[%s1011 + $0x30] sm:$0xf]
      %v1194 = vld [vmem:[%s1011 + $0x34] sm:$0x1]
      %v1195 = vld [vmem:[%s1011 + $0x38] sm:$0xf]
      %v1196 = vld [vmem:[%s1011 + $0x3c] sm:$0x1]
      %v1198 = vshrl.u32 %v1181, 16
      %v1200 = vrot.slane %v1198, 4
      %v1201 = vshll.u32 %v1181, 16
      %v1203 = vrot.slane %v1201, 5
      %v1204 = vor.u32 %v1200, %v1203
      %v1205 = vrot.slane %v1204, 4
      %v1207 = vshll.u32 %v1182, 16
      %v1209 = vrot.slane %v1207, 5
      %v1210 = vsel %vm401, %v1205, %v1209
      %v1212 = vshrl.u32 %v1183, 16
      %v1214 = vrot.slane %v1212, 4
      %v1215 = vshll.u32 %v1183, 16
      %v1217 = vrot.slane %v1215, 5
      %v1218 = vor.u32 %v1214, %v1217
      %v1219 = vrot.slane %v1218, 4
      %v1221 = vshll.u32 %v1184, 16
      %v1223 = vrot.slane %v1221, 5
      %v1224 = vsel %vm401, %v1219, %v1223
      %v1226 = vshrl.u32 %v1185, 16
      %v1228 = vrot.slane %v1226, 4
      %v1229 = vshll.u32 %v1185, 16
      %v1231 = vrot.slane %v1229, 5
      %v1232 = vor.u32 %v1228, %v1231
      %v1233 = vrot.slane %v1232, 4
      %v1235 = vshll.u32 %v1186, 16
      %v1237 = vrot.slane %v1235, 5
      %v1238 = vsel %vm401, %v1233, %v1237
      %v1240 = vshrl.u32 %v1187, 16
      %v1242 = vrot.slane %v1240, 4
      %v1243 = vshll.u32 %v1187, 16
      %v1245 = vrot.slane %v1243, 5
      %v1246 = vor.u32 %v1242, %v1245
      %v1247 = vrot.slane %v1246, 4
      %v1249 = vshll.u32 %v1188, 16
      %v1251 = vrot.slane %v1249, 5
      %v1252 = vsel %vm401, %v1247, %v1251
      %v1254 = vshrl.u32 %v1189, 16
      %v1256 = vrot.slane %v1254, 4
      %v1257 = vshll.u32 %v1189, 16
      %v1259 = vrot.slane %v1257, 5
      %v1260 = vor.u32 %v1256, %v1259
      %v1261 = vrot.slane %v1260, 4
      %v1263 = vshll.u32 %v1190, 16
      %v1265 = vrot.slane %v1263, 5
      %v1266 = vsel %vm401, %v1261, %v1265
      %v1268 = vshrl.u32 %v1191, 16
      %v1270 = vrot.slane %v1268, 4
      %v1271 = vshll.u32 %v1191, 16
      %v1273 = vrot.slane %v1271, 5
      %v1274 = vor.u32 %v1270, %v1273
      %v1275 = vrot.slane %v1274, 4
      %v1277 = vshll.u32 %v1192, 16
      %v1279 = vrot.slane %v1277, 5
      %v1280 = vsel %vm401, %v1275, %v1279
      %v1282 = vshrl.u32 %v1193, 16
      %v1284 = vrot.slane %v1282, 4
      %v1285 = vshll.u32 %v1193, 16
      %v1287 = vrot.slane %v1285, 5
      %v1288 = vor.u32 %v1284, %v1287
      %v1289 = vrot.slane %v1288, 4
      %v1291 = vshll.u32 %v1194, 16
      %v1293 = vrot.slane %v1291, 5
      %v1294 = vsel %vm401, %v1289, %v1293
      %v1296 = vshrl.u32 %v1195, 16
      %v1298 = vrot.slane %v1296, 4
      %v1299 = vshll.u32 %v1195, 16
      %v1301 = vrot.slane %v1299, 5
      %v1302 = vor.u32 %v1298, %v1301
      %v1303 = vrot.slane %v1302, 4
      %v1305 = vshll.u32 %v1196, 16
      %v1307 = vrot.slane %v1305, 5
      %v1308 = vsel %vm401, %v1303, %v1307
      %v1309 = vld [vmem:[%s1 + $0x100] sm:$0xf]
      %v1310 = vld [vmem:[%s1 + $0x104] sm:$0xf]
      %v1311 = vld [vmem:[%s1 + $0x108] sm:$0xf]
      %v1312 = vld [vmem:[%s1 + $0x10c] sm:$0xf]
      %v1313 = vld [vmem:[%s1 + $0x110] sm:$0xf]
      %v1314 = vld [vmem:[%s1 + $0x114] sm:$0xf]
      %v1315 = vld [vmem:[%s1 + $0x118] sm:$0xf]
      %v1316 = vld [vmem:[%s1 + $0x11c] sm:$0xf]
      %v1317 = vld [vmem:[%s1 + $0x120] sm:$0xf]
      %v1318 = vld [vmem:[%s1 + $0x124] sm:$0xf]
      %v1319 = vld [vmem:[%s1 + $0x128] sm:$0xf]
      %v1320 = vld [vmem:[%s1 + $0x12c] sm:$0xf]
      %v1321 = vld [vmem:[%s1 + $0x130] sm:$0xf]
      %v1322 = vld [vmem:[%s1 + $0x134] sm:$0xf]
      %v1323 = vld [vmem:[%s1 + $0x138] sm:$0xf]
      %v1324 = vld [vmem:[%s1 + $0x13c] sm:$0xf]
      %v1325 = vunpack.c.l.b16 %v1210
      %v1326 = vunpack.c.l.b16 %v1224
      %v1327 = vunpack.c.l.b16 %v1238
      %v1328 = vunpack.c.l.b16 %v1252
      %v1329 = vunpack.c.l.b16 %v1266
      %v1330 = vunpack.c.l.b16 %v1280
      %v1331 = vunpack.c.l.b16 %v1294
      %v1332 = vunpack.c.l.b16 %v1308
      %v1333 = vpack.c.b16 %v1326, %v1325
      %v1334 = vpack.c.b16 %v1328, %v1327
      %v1335 = vpack.c.b16 %v1330, %v1329
      %v1336 = vpack.c.b16 %v1332, %v1331
      %v1357 = vunpack.c.l.b16 %v1309
      %v1358 = vunpack.c.l.b16 %v1310
      %v1359 = vunpack.c.l.b16 %v1311
      %v1360 = vunpack.c.l.b16 %v1312
      %v1361 = vunpack.c.l.b16 %v1313
      %v1362 = vunpack.c.l.b16 %v1314
      %v1363 = vunpack.c.l.b16 %v1315
      %v1364 = vunpack.c.l.b16 %v1316
      %v1365 = vunpack.c.l.b16 %v1317
      %v1366 = vunpack.c.l.b16 %v1318
      %v1367 = vunpack.c.l.b16 %v1319
      %v1368 = vunpack.c.l.b16 %v1320
      %v1369 = vunpack.c.l.b16 %v1321
      %v1370 = vunpack.c.l.b16 %v1322
      %v1371 = vunpack.c.l.b16 %v1323
      %v1372 = vunpack.c.l.b16 %v1324
      %v1373 = vpack.c.b16 %v1358, %v1357
      %v1374 = vpack.c.b16 %v1360, %v1359
      %v1375 = vpack.c.b16 %v1362, %v1361
      %v1376 = vpack.c.b16 %v1364, %v1363
      %v1377 = vpack.c.b16 %v1366, %v1365
      %v1378 = vpack.c.b16 %v1368, %v1367
      %v1379 = vpack.c.b16 %v1370, %v1369
      %v1380 = vpack.c.b16 %v1372, %v1371
      %1389 = vmatprep.subr.bf16.mxu0 0
      %1390 = vmatpush1.bf16.msra.mxu0 %v1380
      %1391 = vmatprep.subr.bf16.mxu0 0
      %1392 = vmatpush1.bf16.msra.mxu0 %v1379
      %1393 = vmatprep.subr.bf16.mxu0 0
      %1394 = vmatpush1.bf16.msra.mxu0 %v1378
      %1395 = vmatprep.subr.bf16.mxu0 0
      %1396 = vmatpush1.bf16.msra.mxu0 %v1377
      %1397 = vmatprep.subr.bf16.mxu0 0
      %1398 = vmatpush1.bf16.msra.mxu0 %v1376
      %1399 = vmatprep.subr.bf16.mxu0 0
      %1400 = vmatpush1.bf16.msra.mxu0 %v1375
      %1401 = vmatprep.subr.bf16.mxu0 0
      %1402 = vmatpush1.bf16.msra.mxu0 %v1374
      %1403 = vmatprep.subr.bf16.mxu0 0
      %1404 = vmatpush1.bf16.msra.mxu0 %v1373
      %1405 = vmatprep.subr.bf16.mxu0 0
      %1406 = vmatpush2.bf16.msra.mxu0 0
      %1407 = vmatprep.subr.bf16.mxu0 0
      %1408 = vmatpush2.bf16.msra.mxu0 0
      %1409 = vmatprep.subr.bf16.mxu0 0
      %1410 = vmatpush2.bf16.msra.mxu0 0
      %1411 = vmatprep.subr.bf16.mxu0 0
      %1412 = vmatpush2.bf16.msra.mxu0 0
      %1413 = vmatprep.subr.bf16.mxu0 0
      %1414 = vmatpush2.bf16.msra.mxu0 0
      %1415 = vmatprep.subr.bf16.mxu0 0
      %1416 = vmatpush2.bf16.msra.mxu0 0
      %1417 = vmatprep.subr.bf16.mxu0 0
      %1418 = vmatpush2.bf16.msra.mxu0 0
      %1419 = vmatprep.subr.bf16.mxu0 0
      %1420 = vmatpush2.bf16.msra.mxu0 0
      %1421 = vmatprep.mubr.bf16.mxu0 0
      %1422 = vmatmul.mubr.bf16.gmra.mxu0 %v1333
      %v1423 = vpop.f32.mrf.mxu0
      %v1424 = vadd.f32 0.0, %v1423
      %v1425 = vpop.f32.mrf.mxu0
      %v1426 = vpop.f32.mrf.mxu0
      %v1427 = vadd.f32 0.0, %v1426
      %v1428 = vpop.f32.mrf.mxu0
      %1429 = vmatprep.mubr.bf16.mxu0 0
      %1430 = vmatmul.mubr.bf16.gmra.mxu0 %v1334
      %v1431 = vpop.f32.mrf.mxu0
      %v1432 = vadd.f32 0.0, %v1431
      %v1433 = vpop.f32.mrf.mxu0
      %v1434 = vpop.f32.mrf.mxu0
      %v1435 = vadd.f32 0.0, %v1434
      %v1436 = vpop.f32.mrf.mxu0
      %1437 = vmatprep.mubr.bf16.mxu0 0
      %1438 = vmatmul.mubr.bf16.gmra.mxu0 %v1335
      %v1439 = vpop.f32.mrf.mxu0
      %v1440 = vadd.f32 0.0, %v1439
      %v1441 = vpop.f32.mrf.mxu0
      %v1442 = vpop.f32.mrf.mxu0
      %v1443 = vadd.f32 0.0, %v1442
      %v1444 = vpop.f32.mrf.mxu0
      %1445 = vmatprep.mubr.bf16.mxu0 0
      %1446 = vmatmul.mubr.bf16.gmra.mxu0 %v1336
      %v1447 = vpop.f32.mrf.mxu0
      %v1448 = vadd.f32 0.0, %v1447
      %v1449 = vpop.f32.mrf.mxu0
      %v1450 = vpop.f32.mrf.mxu0
      %v1451 = vadd.f32 0.0, %v1450
      %v1452 = vpop.f32.mrf.mxu0
      %1453 = vdwg.mxu0
      %v1454 = vadd.f32 %v1173, %v1424
      %v1455 = vadd.f32 %v1174, %v1427
      %v1456 = vadd.f32 %v1175, %v1432
      %v1457 = vadd.f32 %v1176, %v1435
      %v1458 = vadd.f32 %v1177, %v1440
      %v1459 = vadd.f32 %v1178, %v1443
      %v1460 = vadd.f32 %v1179, %v1448
      %v1461 = vadd.f32 %v1180, %v1451
      %v1462 = vld [vmem:[%s1011] sm:$0xe]
      %v1463 = vld [vmem:[%s1011 + $0x8] sm:$0xe]
      %v1464 = vld [vmem:[%s1011 + $0x10] sm:$0xe]
      %v1465 = vld [vmem:[%s1011 + $0x18] sm:$0xe]
      %v1466 = vld [vmem:[%s1011 + $0x20] sm:$0xe]
      %v1467 = vld [vmem:[%s1011 + $0x28] sm:$0xe]
      %v1468 = vld [vmem:[%s1011 + $0x30] sm:$0xe]
      %v1469 = vld [vmem:[%s1011 + $0x38] sm:$0xe]
      %v1486 = vrot.slane %v1462, 5
      %v1487 = vrot.slane %v1486, 4
      %v1488 = vrot.slane %v1182, 5
      %v1489 = vsel %vm822, %v1487, %v1488
      %v1490 = vrot.slane %v1463, 5
      %v1491 = vrot.slane %v1490, 4
      %v1492 = vrot.slane %v1184, 5
      %v1493 = vsel %vm822, %v1491, %v1492
      %v1494 = vrot.slane %v1464, 5
      %v1495 = vrot.slane %v1494, 4
      %v1496 = vrot.slane %v1186, 5
      %v1497 = vsel %vm822, %v1495, %v1496
      %v1498 = vrot.slane %v1465, 5
      %v1499 = vrot.slane %v1498, 4
      %v1500 = vrot.slane %v1188, 5
      %v1501 = vsel %vm822, %v1499, %v1500
      %v1502 = vrot.slane %v1466, 5
      %v1503 = vrot.slane %v1502, 4
      %v1504 = vrot.slane %v1190, 5
      %v1505 = vsel %vm822, %v1503, %v1504
      %v1506 = vrot.slane %v1467, 5
      %v1507 = vrot.slane %v1506, 4
      %v1508 = vrot.slane %v1192, 5
      %v1509 = vsel %vm822, %v1507, %v1508
      %v1510 = vrot.slane %v1468, 5
      %v1511 = vrot.slane %v1510, 4
      %v1512 = vrot.slane %v1194, 5
      %v1513 = vsel %vm822, %v1511, %v1512
      %v1514 = vrot.slane %v1469, 5
      %v1515 = vrot.slane %v1514, 4
      %v1516 = vrot.slane %v1196, 5
      %v1517 = vsel %vm822, %v1515, %v1516
      %v1518 = vld [vmem:[%s1 + $0x140] sm:$0xf]
      %v1519 = vld [vmem:[%s1 + $0x144] sm:$0xf]
      %v1520 = vld [vmem:[%s1 + $0x148] sm:$0xf]
      %v1521 = vld [vmem:[%s1 + $0x14c] sm:$0xf]
      %v1522 = vld [vmem:[%s1 + $0x150] sm:$0xf]
      %v1523 = vld [vmem:[%s1 + $0x154] sm:$0xf]
      %v1524 = vld [vmem:[%s1 + $0x158] sm:$0xf]
      %v1525 = vld [vmem:[%s1 + $0x15c] sm:$0xf]
      %v1526 = vld [vmem:[%s1 + $0x160] sm:$0xf]
      %v1527 = vld [vmem:[%s1 + $0x164] sm:$0xf]
      %v1528 = vld [vmem:[%s1 + $0x168] sm:$0xf]
      %v1529 = vld [vmem:[%s1 + $0x16c] sm:$0xf]
      %v1530 = vld [vmem:[%s1 + $0x170] sm:$0xf]
      %v1531 = vld [vmem:[%s1 + $0x174] sm:$0xf]
      %v1532 = vld [vmem:[%s1 + $0x178] sm:$0xf]
      %v1533 = vld [vmem:[%s1 + $0x17c] sm:$0xf]
      %v1534 = vunpack.c.l.b16 %v1489
      %v1535 = vunpack.c.l.b16 %v1493
      %v1536 = vunpack.c.l.b16 %v1497
      %v1537 = vunpack.c.l.b16 %v1501
      %v1538 = vunpack.c.l.b16 %v1505
      %v1539 = vunpack.c.l.b16 %v1509
      %v1540 = vunpack.c.l.b16 %v1513
      %v1541 = vunpack.c.l.b16 %v1517
      %v1542 = vpack.c.b16 %v1535, %v1534
      %v1543 = vpack.c.b16 %v1537, %v1536
      %v1544 = vpack.c.b16 %v1539, %v1538
      %v1545 = vpack.c.b16 %v1541, %v1540
      %v1566 = vunpack.c.l.b16 %v1518
      %v1567 = vunpack.c.l.b16 %v1519
      %v1568 = vunpack.c.l.b16 %v1520
      %v1569 = vunpack.c.l.b16 %v1521
      %v1570 = vunpack.c.l.b16 %v1522
      %v1571 = vunpack.c.l.b16 %v1523
      %v1572 = vunpack.c.l.b16 %v1524
      %v1573 = vunpack.c.l.b16 %v1525
      %v1574 = vunpack.c.l.b16 %v1526
      %v1575 = vunpack.c.l.b16 %v1527
      %v1576 = vunpack.c.l.b16 %v1528
      %v1577 = vunpack.c.l.b16 %v1529
      %v1578 = vunpack.c.l.b16 %v1530
      %v1579 = vunpack.c.l.b16 %v1531
      %v1580 = vunpack.c.l.b16 %v1532
      %v1581 = vunpack.c.l.b16 %v1533
      %v1582 = vpack.c.b16 %v1567, %v1566
      %v1583 = vpack.c.b16 %v1569, %v1568
      %v1584 = vpack.c.b16 %v1571, %v1570
      %v1585 = vpack.c.b16 %v1573, %v1572
      %v1586 = vpack.c.b16 %v1575, %v1574
      %v1587 = vpack.c.b16 %v1577, %v1576
      %v1588 = vpack.c.b16 %v1579, %v1578
      %v1589 = vpack.c.b16 %v1581, %v1580
      %1598 = vmatprep.subr.bf16.mxu0 0
      %1599 = vmatpush1.bf16.msra.mxu0 %v1589
      %1600 = vmatprep.subr.bf16.mxu0 0
      %1601 = vmatpush1.bf16.msra.mxu0 %v1588
      %1602 = vmatprep.subr.bf16.mxu0 0
      %1603 = vmatpush1.bf16.msra.mxu0 %v1587
      %1604 = vmatprep.subr.bf16.mxu0 0
      %1605 = vmatpush1.bf16.msra.mxu0 %v1586
      %1606 = vmatprep.subr.bf16.mxu0 0
      %1607 = vmatpush1.bf16.msra.mxu0 %v1585
      %1608 = vmatprep.subr.bf16.mxu0 0
      %1609 = vmatpush1.bf16.msra.mxu0 %v1584
      %1610 = vmatprep.subr.bf16.mxu0 0
      %1611 = vmatpush1.bf16.msra.mxu0 %v1583
      %1612 = vmatprep.subr.bf16.mxu0 0
      %1613 = vmatpush1.bf16.msra.mxu0 %v1582
      %1614 = vmatprep.subr.bf16.mxu0 0
      %1615 = vmatpush2.bf16.msra.mxu0 0
      %1616 = vmatprep.subr.bf16.mxu0 0
      %1617 = vmatpush2.bf16.msra.mxu0 0
      %1618 = vmatprep.subr.bf16.mxu0 0
      %1619 = vmatpush2.bf16.msra.mxu0 0
      %1620 = vmatprep.subr.bf16.mxu0 0
      %1621 = vmatpush2.bf16.msra.mxu0 0
      %1622 = vmatprep.subr.bf16.mxu0 0
      %1623 = vmatpush2.bf16.msra.mxu0 0
      %1624 = vmatprep.subr.bf16.mxu0 0
      %1625 = vmatpush2.bf16.msra.mxu0 0
      %1626 = vmatprep.subr.bf16.mxu0 0
      %1627 = vmatpush2.bf16.msra.mxu0 0
      %1628 = vmatprep.subr.bf16.mxu0 0
      %1629 = vmatpush2.bf16.msra.mxu0 0
      %1630 = vmatprep.mubr.bf16.mxu0 0
      %1631 = vmatmul.mubr.bf16.gmra.mxu0 %v1542
      %v1632 = vpop.f32.mrf.mxu0
      %v1633 = vadd.f32 0.0, %v1632
      %v1634 = vpop.f32.mrf.mxu0
      %v1635 = vpop.f32.mrf.mxu0
      %v1636 = vadd.f32 0.0, %v1635
      %v1637 = vpop.f32.mrf.mxu0
      %1638 = vmatprep.mubr.bf16.mxu0 0
      %1639 = vmatmul.mubr.bf16.gmra.mxu0 %v1543
      %v1640 = vpop.f32.mrf.mxu0
      %v1641 = vadd.f32 0.0, %v1640
      %v1642 = vpop.f32.mrf.mxu0
      %v1643 = vpop.f32.mrf.mxu0
      %v1644 = vadd.f32 0.0, %v1643
      %v1645 = vpop.f32.mrf.mxu0
      %1646 = vmatprep.mubr.bf16.mxu0 0
      %1647 = vmatmul.mubr.bf16.gmra.mxu0 %v1544
      %v1648 = vpop.f32.mrf.mxu0
      %v1649 = vadd.f32 0.0, %v1648
      %v1650 = vpop.f32.mrf.mxu0
      %v1651 = vpop.f32.mrf.mxu0
      %v1652 = vadd.f32 0.0, %v1651
      %v1653 = vpop.f32.mrf.mxu0
      %1654 = vmatprep.mubr.bf16.mxu0 0
      %1655 = vmatmul.mubr.bf16.gmra.mxu0 %v1545
      %v1656 = vpop.f32.mrf.mxu0
      %v1657 = vadd.f32 0.0, %v1656
      %v1658 = vpop.f32.mrf.mxu0
      %v1659 = vpop.f32.mrf.mxu0
      %v1660 = vadd.f32 0.0, %v1659
      %v1661 = vpop.f32.mrf.mxu0
      %1662 = vdwg.mxu0
      %v1663 = vadd.f32 %v1454, %v1633
      %v1664 = vadd.f32 %v1455, %v1636
      %v1665 = vadd.f32 %v1456, %v1641
      %v1666 = vadd.f32 %v1457, %v1644
      %v1667 = vadd.f32 %v1458, %v1649
      %v1668 = vadd.f32 %v1459, %v1652
      %v1669 = vadd.f32 %v1460, %v1657
      %v1670 = vadd.f32 %v1461, %v1660
      %s1671 = sadd.s32 0, 2
      %s1672 = smul.u32 %s1671, 2
      %s1673 = smul.addr %s1672, 4
      %s1674 = scalar_lea.vmem %s219, %s1673
      %v1675 = vld [vmem:[%s1674] sm:$0xf]
      %v1676 = vld [vmem:[%s1674 + $0x8] sm:$0xf]
      %v1677 = vld [vmem:[%s1674 + $0x10] sm:$0xf]
      %v1678 = vld [vmem:[%s1674 + $0x18] sm:$0xf]
      %v1679 = vld [vmem:[%s1674 + $0x20] sm:$0xf]
      %v1680 = vld [vmem:[%s1674 + $0x28] sm:$0xf]
      %v1681 = vld [vmem:[%s1674 + $0x30] sm:$0xf]
      %v1682 = vld [vmem:[%s1674 + $0x38] sm:$0xf]
      %v1683 = vld [vmem:[%s1 + $0x180] sm:$0xf]
      %v1684 = vld [vmem:[%s1 + $0x184] sm:$0xf]
      %v1685 = vld [vmem:[%s1 + $0x188] sm:$0xf]
      %v1686 = vld [vmem:[%s1 + $0x18c] sm:$0xf]
      %v1687 = vld [vmem:[%s1 + $0x190] sm:$0xf]
      %v1688 = vld [vmem:[%s1 + $0x194] sm:$0xf]
      %v1689 = vld [vmem:[%s1 + $0x198] sm:$0xf]
      %v1690 = vld [vmem:[%s1 + $0x19c] sm:$0xf]
      %v1691 = vld [vmem:[%s1 + $0x1a0] sm:$0xf]
      %v1692 = vld [vmem:[%s1 + $0x1a4] sm:$0xf]
      %v1693 = vld [vmem:[%s1 + $0x1a8] sm:$0xf]
      %v1694 = vld [vmem:[%s1 + $0x1ac] sm:$0xf]
      %v1695 = vld [vmem:[%s1 + $0x1b0] sm:$0xf]
      %v1696 = vld [vmem:[%s1 + $0x1b4] sm:$0xf]
      %v1697 = vld [vmem:[%s1 + $0x1b8] sm:$0xf]
      %v1698 = vld [vmem:[%s1 + $0x1bc] sm:$0xf]
      %v1707 = vunpack.c.l.b16 %v1675
      %v1708 = vunpack.c.l.b16 %v1676
      %v1709 = vunpack.c.l.b16 %v1677
      %v1710 = vunpack.c.l.b16 %v1678
      %v1711 = vunpack.c.l.b16 %v1679
      %v1712 = vunpack.c.l.b16 %v1680
      %v1713 = vunpack.c.l.b16 %v1681
      %v1714 = vunpack.c.l.b16 %v1682
      %v1715 = vpack.c.b16 %v1708, %v1707
      %v1716 = vpack.c.b16 %v1710, %v1709
      %v1717 = vpack.c.b16 %v1712, %v1711
      %v1718 = vpack.c.b16 %v1714, %v1713
      %v1739 = vunpack.c.l.b16 %v1683
      %v1740 = vunpack.c.l.b16 %v1684
      %v1741 = vunpack.c.l.b16 %v1685
      %v1742 = vunpack.c.l.b16 %v1686
      %v1743 = vunpack.c.l.b16 %v1687
      %v1744 = vunpack.c.l.b16 %v1688
      %v1745 = vunpack.c.l.b16 %v1689
      %v1746 = vunpack.c.l.b16 %v1690
      %v1747 = vunpack.c.l.b16 %v1691
      %v1748 = vunpack.c.l.b16 %v1692
      %v1749 = vunpack.c.l.b16 %v1693
      %v1750 = vunpack.c.l.b16 %v1694
      %v1751 = vunpack.c.l.b16 %v1695
      %v1752 = vunpack.c.l.b16 %v1696
      %v1753 = vunpack.c.l.b16 %v1697
      %v1754 = vunpack.c.l.b16 %v1698
      %v1755 = vpack.c.b16 %v1740, %v1739
      %v1756 = vpack.c.b16 %v1742, %v1741
      %v1757 = vpack.c.b16 %v1744, %v1743
      %v1758 = vpack.c.b16 %v1746, %v1745
      %v1759 = vpack.c.b16 %v1748, %v1747
      %v1760 = vpack.c.b16 %v1750, %v1749
      %v1761 = vpack.c.b16 %v1752, %v1751
      %v1762 = vpack.c.b16 %v1754, %v1753
      %1771 = vmatprep.subr.bf16.mxu0 0
      %1772 = vmatpush1.bf16.msra.mxu0 %v1762
      %1773 = vmatprep.subr.bf16.mxu0 0
      %1774 = vmatpush1.bf16.msra.mxu0 %v1761
      %1775 = vmatprep.subr.bf16.mxu0 0
      %1776 = vmatpush1.bf16.msra.mxu0 %v1760
      %1777 = vmatprep.subr.bf16.mxu0 0
      %1778 = vmatpush1.bf16.msra.mxu0 %v1759
      %1779 = vmatprep.subr.bf16.mxu0 0
      %1780 = vmatpush1.bf16.msra.mxu0 %v1758
      %1781 = vmatprep.subr.bf16.mxu0 0
      %1782 = vmatpush1.bf16.msra.mxu0 %v1757
      %1783 = vmatprep.subr.bf16.mxu0 0
      %1784 = vmatpush1.bf16.msra.mxu0 %v1756
      %1785 = vmatprep.subr.bf16.mxu0 0
      %1786 = vmatpush1.bf16.msra.mxu0 %v1755
      %1787 = vmatprep.subr.bf16.mxu0 0
      %1788 = vmatpush2.bf16.msra.mxu0 0
      %1789 = vmatprep.subr.bf16.mxu0 0
      %1790 = vmatpush2.bf16.msra.mxu0 0
      %1791 = vmatprep.subr.bf16.mxu0 0
      %1792 = vmatpush2.bf16.msra.mxu0 0
      %1793 = vmatprep.subr.bf16.mxu0 0
      %1794 = vmatpush2.bf16.msra.mxu0 0
      %1795 = vmatprep.subr.bf16.mxu0 0
      %1796 = vmatpush2.bf16.msra.mxu0 0
      %1797 = vmatprep.subr.bf16.mxu0 0
      %1798 = vmatpush2.bf16.msra.mxu0 0
      %1799 = vmatprep.subr.bf16.mxu0 0
      %1800 = vmatpush2.bf16.msra.mxu0 0
      %1801 = vmatprep.subr.bf16.mxu0 0
      %1802 = vmatpush2.bf16.msra.mxu0 0
      %1803 = vmatprep.mubr.bf16.mxu0 0
      %1804 = vmatmul.mubr.bf16.gmra.mxu0 %v1715
      %v1805 = vpop.f32.mrf.mxu0
      %v1806 = vadd.f32 0.0, %v1805
      %v1807 = vpop.f32.mrf.mxu0
      %v1808 = vpop.f32.mrf.mxu0
      %v1809 = vadd.f32 0.0, %v1808
      %v1810 = vpop.f32.mrf.mxu0
      %1811 = vmatprep.mubr.bf16.mxu0 0
      %1812 = vmatmul.mubr.bf16.gmra.mxu0 %v1716
      %v1813 = vpop.f32.mrf.mxu0
      %v1814 = vadd.f32 0.0, %v1813
      %v1815 = vpop.f32.mrf.mxu0
      %v1816 = vpop.f32.mrf.mxu0
      %v1817 = vadd.f32 0.0, %v1816
      %v1818 = vpop.f32.mrf.mxu0
      %1819 = vmatprep.mubr.bf16.mxu0 0
      %1820 = vmatmul.mubr.bf16.gmra.mxu0 %v1717
      %v1821 = vpop.f32.mrf.mxu0
      %v1822 = vadd.f32 0.0, %v1821
      %v1823 = vpop.f32.mrf.mxu0
      %v1824 = vpop.f32.mrf.mxu0
      %v1825 = vadd.f32 0.0, %v1824
      %v1826 = vpop.f32.mrf.mxu0
      %1827 = vmatprep.mubr.bf16.mxu0 0
      %1828 = vmatmul.mubr.bf16.gmra.mxu0 %v1718
      %v1829 = vpop.f32.mrf.mxu0
      %v1830 = vadd.f32 0.0, %v1829
      %v1831 = vpop.f32.mrf.mxu0
      %v1832 = vpop.f32.mrf.mxu0
      %v1833 = vadd.f32 0.0, %v1832
      %v1834 = vpop.f32.mrf.mxu0
      %1835 = vdwg.mxu0
      %v1836 = vadd.f32 %v1663, %v1806
      %v1837 = vadd.f32 %v1664, %v1809
      %v1838 = vadd.f32 %v1665, %v1814
      %v1839 = vadd.f32 %v1666, %v1817
      %v1840 = vadd.f32 %v1667, %v1822
      %v1841 = vadd.f32 %v1668, %v1825
      %v1842 = vadd.f32 %v1669, %v1830
      %v1843 = vadd.f32 %v1670, %v1833
      %v1844 = vld [vmem:[%s1674] sm:$0xf]
      %v1845 = vld [vmem:[%s1674 + $0x4] sm:$0x1]
      %v1846 = vld [vmem:[%s1674 + $0x8] sm:$0xf]
      %v1847 = vld [vmem:[%s1674 + $0xc] sm:$0x1]
      %v1848 = vld [vmem:[%s1674 + $0x10] sm:$0xf]
      %v1849 = vld [vmem:[%s1674 + $0x14] sm:$0x1]
      %v1850 = vld [vmem:[%s1674 + $0x18] sm:$0xf]
      %v1851 = vld [vmem:[%s1674 + $0x1c] sm:$0x1]
      %v1852 = vld [vmem:[%s1674 + $0x20] sm:$0xf]
      %v1853 = vld [vmem:[%s1674 + $0x24] sm:$0x1]
      %v1854 = vld [vmem:[%s1674 + $0x28] sm:$0xf]
      %v1855 = vld [vmem:[%s1674 + $0x2c] sm:$0x1]
      %v1856 = vld [vmem:[%s1674 + $0x30] sm:$0xf]
      %v1857 = vld [vmem:[%s1674 + $0x34] sm:$0x1]
      %v1858 = vld [vmem:[%s1674 + $0x38] sm:$0xf]
      %v1859 = vld [vmem:[%s1674 + $0x3c] sm:$0x1]
      %v1861 = vshrl.u32 %v1844, 16
      %v1863 = vrot.slane %v1861, 4
      %v1864 = vshll.u32 %v1844, 16
      %v1866 = vrot.slane %v1864, 5
      %v1867 = vor.u32 %v1863, %v1866
      %v1868 = vrot.slane %v1867, 4
      %v1870 = vshll.u32 %v1845, 16
      %v1872 = vrot.slane %v1870, 5
      %v1873 = vsel %vm401, %v1868, %v1872
      %v1875 = vshrl.u32 %v1846, 16
      %v1877 = vrot.slane %v1875, 4
      %v1878 = vshll.u32 %v1846, 16
      %v1880 = vrot.slane %v1878, 5
      %v1881 = vor.u32 %v1877, %v1880
      %v1882 = vrot.slane %v1881, 4
      %v1884 = vshll.u32 %v1847, 16
      %v1886 = vrot.slane %v1884, 5
      %v1887 = vsel %vm401, %v1882, %v1886
      %v1889 = vshrl.u32 %v1848, 16
      %v1891 = vrot.slane %v1889, 4
      %v1892 = vshll.u32 %v1848, 16
      %v1894 = vrot.slane %v1892, 5
      %v1895 = vor.u32 %v1891, %v1894
      %v1896 = vrot.slane %v1895, 4
      %v1898 = vshll.u32 %v1849, 16
      %v1900 = vrot.slane %v1898, 5
      %v1901 = vsel %vm401, %v1896, %v1900
      %v1903 = vshrl.u32 %v1850, 16
      %v1905 = vrot.slane %v1903, 4
      %v1906 = vshll.u32 %v1850, 16
      %v1908 = vrot.slane %v1906, 5
      %v1909 = vor.u32 %v1905, %v1908
      %v1910 = vrot.slane %v1909, 4
      %v1912 = vshll.u32 %v1851, 16
      %v1914 = vrot.slane %v1912, 5
      %v1915 = vsel %vm401, %v1910, %v1914
      %v1917 = vshrl.u32 %v1852, 16
      %v1919 = vrot.slane %v1917, 4
      %v1920 = vshll.u32 %v1852, 16
      %v1922 = vrot.slane %v1920, 5
      %v1923 = vor.u32 %v1919, %v1922
      %v1924 = vrot.slane %v1923, 4
      %v1926 = vshll.u32 %v1853, 16
      %v1928 = vrot.slane %v1926, 5
      %v1929 = vsel %vm401, %v1924, %v1928
      %v1931 = vshrl.u32 %v1854, 16
      %v1933 = vrot.slane %v1931, 4
      %v1934 = vshll.u32 %v1854, 16
      %v1936 = vrot.slane %v1934, 5
      %v1937 = vor.u32 %v1933, %v1936
      %v1938 = vrot.slane %v1937, 4
      %v1940 = vshll.u32 %v1855, 16
      %v1942 = vrot.slane %v1940, 5
      %v1943 = vsel %vm401, %v1938, %v1942
      %v1945 = vshrl.u32 %v1856, 16
      %v1947 = vrot.slane %v1945, 4
      %v1948 = vshll.u32 %v1856, 16
      %v1950 = vrot.slane %v1948, 5
      %v1951 = vor.u32 %v1947, %v1950
      %v1952 = vrot.slane %v1951, 4
      %v1954 = vshll.u32 %v1857, 16
      %v1956 = vrot.slane %v1954, 5
      %v1957 = vsel %vm401, %v1952, %v1956
      %v1959 = vshrl.u32 %v1858, 16
      %v1961 = vrot.slane %v1959, 4
      %v1962 = vshll.u32 %v1858, 16
      %v1964 = vrot.slane %v1962, 5
      %v1965 = vor.u32 %v1961, %v1964
      %v1966 = vrot.slane %v1965, 4
      %v1968 = vshll.u32 %v1859, 16
      %v1970 = vrot.slane %v1968, 5
      %v1971 = vsel %vm401, %v1966, %v1970
      %v1972 = vld [vmem:[%s1 + $0x1c0] sm:$0xf]
      %v1973 = vld [vmem:[%s1 + $0x1c4] sm:$0xf]
      %v1974 = vld [vmem:[%s1 + $0x1c8] sm:$0xf]
      %v1975 = vld [vmem:[%s1 + $0x1cc] sm:$0xf]
      %v1976 = vld [vmem:[%s1 + $0x1d0] sm:$0xf]
      %v1977 = vld [vmem:[%s1 + $0x1d4] sm:$0xf]
      %v1978 = vld [vmem:[%s1 + $0x1d8] sm:$0xf]
      %v1979 = vld [vmem:[%s1 + $0x1dc] sm:$0xf]
      %v1980 = vld [vmem:[%s1 + $0x1e0] sm:$0xf]
      %v1981 = vld [vmem:[%s1 + $0x1e4] sm:$0xf]
      %v1982 = vld [vmem:[%s1 + $0x1e8] sm:$0xf]
      %v1983 = vld [vmem:[%s1 + $0x1ec] sm:$0xf]
      %v1984 = vld [vmem:[%s1 + $0x1f0] sm:$0xf]
      %v1985 = vld [vmem:[%s1 + $0x1f4] sm:$0xf]
      %v1986 = vld [vmem:[%s1 + $0x1f8] sm:$0xf]
      %v1987 = vld [vmem:[%s1 + $0x1fc] sm:$0xf]
      %v1988 = vunpack.c.l.b16 %v1873
      %v1989 = vunpack.c.l.b16 %v1887
      %v1990 = vunpack.c.l.b16 %v1901
      %v1991 = vunpack.c.l.b16 %v1915
      %v1992 = vunpack.c.l.b16 %v1929
      %v1993 = vunpack.c.l.b16 %v1943
      %v1994 = vunpack.c.l.b16 %v1957
      %v1995 = vunpack.c.l.b16 %v1971
      %v1996 = vpack.c.b16 %v1989, %v1988
      %v1997 = vpack.c.b16 %v1991, %v1990
      %v1998 = vpack.c.b16 %v1993, %v1992
      %v1999 = vpack.c.b16 %v1995, %v1994
      %v2020 = vunpack.c.l.b16 %v1972
      %v2021 = vunpack.c.l.b16 %v1973
      %v2022 = vunpack.c.l.b16 %v1974
      %v2023 = vunpack.c.l.b16 %v1975
      %v2024 = vunpack.c.l.b16 %v1976
      %v2025 = vunpack.c.l.b16 %v1977
      %v2026 = vunpack.c.l.b16 %v1978
      %v2027 = vunpack.c.l.b16 %v1979
      %v2028 = vunpack.c.l.b16 %v1980
      %v2029 = vunpack.c.l.b16 %v1981
      %v2030 = vunpack.c.l.b16 %v1982
      %v2031 = vunpack.c.l.b16 %v1983
      %v2032 = vunpack.c.l.b16 %v1984
      %v2033 = vunpack.c.l.b16 %v1985
      %v2034 = vunpack.c.l.b16 %v1986
      %v2035 = vunpack.c.l.b16 %v1987
      %v2036 = vpack.c.b16 %v2021, %v2020
      %v2037 = vpack.c.b16 %v2023, %v2022
      %v2038 = vpack.c.b16 %v2025, %v2024
      %v2039 = vpack.c.b16 %v2027, %v2026
      %v2040 = vpack.c.b16 %v2029, %v2028
      %v2041 = vpack.c.b16 %v2031, %v2030
      %v2042 = vpack.c.b16 %v2033, %v2032
      %v2043 = vpack.c.b16 %v2035, %v2034
      %2052 = vmatprep.subr.bf16.mxu0 0
      %2053 = vmatpush1.bf16.msra.mxu0 %v2043
      %2054 = vmatprep.subr.bf16.mxu0 0
      %2055 = vmatpush1.bf16.msra.mxu0 %v2042
      %2056 = vmatprep.subr.bf16.mxu0 0
      %2057 = vmatpush1.bf16.msra.mxu0 %v2041
      %2058 = vmatprep.subr.bf16.mxu0 0
      %2059 = vmatpush1.bf16.msra.mxu0 %v2040
      %2060 = vmatprep.subr.bf16.mxu0 0
      %2061 = vmatpush1.bf16.msra.mxu0 %v2039
      %2062 = vmatprep.subr.bf16.mxu0 0
      %2063 = vmatpush1.bf16.msra.mxu0 %v2038
      %2064 = vmatprep.subr.bf16.mxu0 0
      %2065 = vmatpush1.bf16.msra.mxu0 %v2037
      %2066 = vmatprep.subr.bf16.mxu0 0
      %2067 = vmatpush1.bf16.msra.mxu0 %v2036
      %2068 = vmatprep.subr.bf16.mxu0 0
      %2069 = vmatpush2.bf16.msra.mxu0 0
      %2070 = vmatprep.subr.bf16.mxu0 0
      %2071 = vmatpush2.bf16.msra.mxu0 0
      %2072 = vmatprep.subr.bf16.mxu0 0
      %2073 = vmatpush2.bf16.msra.mxu0 0
      %2074 = vmatprep.subr.bf16.mxu0 0
      %2075 = vmatpush2.bf16.msra.mxu0 0
      %2076 = vmatprep.subr.bf16.mxu0 0
      %2077 = vmatpush2.bf16.msra.mxu0 0
      %2078 = vmatprep.subr.bf16.mxu0 0
      %2079 = vmatpush2.bf16.msra.mxu0 0
      %2080 = vmatprep.subr.bf16.mxu0 0
      %2081 = vmatpush2.bf16.msra.mxu0 0
      %2082 = vmatprep.subr.bf16.mxu0 0
      %2083 = vmatpush2.bf16.msra.mxu0 0
      %2084 = vmatprep.mubr.bf16.mxu0 0
      %2085 = vmatmul.mubr.bf16.gmra.mxu0 %v1996
      %v2086 = vpop.f32.mrf.mxu0
      %v2087 = vadd.f32 0.0, %v2086
      %v2088 = vpop.f32.mrf.mxu0
      %v2089 = vpop.f32.mrf.mxu0
      %v2090 = vadd.f32 0.0, %v2089
      %v2091 = vpop.f32.mrf.mxu0
      %2092 = vmatprep.mubr.bf16.mxu0 0
      %2093 = vmatmul.mubr.bf16.gmra.mxu0 %v1997
      %v2094 = vpop.f32.mrf.mxu0
      %v2095 = vadd.f32 0.0, %v2094
      %v2096 = vpop.f32.mrf.mxu0
      %v2097 = vpop.f32.mrf.mxu0
      %v2098 = vadd.f32 0.0, %v2097
      %v2099 = vpop.f32.mrf.mxu0
      %2100 = vmatprep.mubr.bf16.mxu0 0
      %2101 = vmatmul.mubr.bf16.gmra.mxu0 %v1998
      %v2102 = vpop.f32.mrf.mxu0
      %v2103 = vadd.f32 0.0, %v2102
      %v2104 = vpop.f32.mrf.mxu0
      %v2105 = vpop.f32.mrf.mxu0
      %v2106 = vadd.f32 0.0, %v2105
      %v2107 = vpop.f32.mrf.mxu0
      %2108 = vmatprep.mubr.bf16.mxu0 0
      %2109 = vmatmul.mubr.bf16.gmra.mxu0 %v1999
      %v2110 = vpop.f32.mrf.mxu0
      %v2111 = vadd.f32 0.0, %v2110
      %v2112 = vpop.f32.mrf.mxu0
      %v2113 = vpop.f32.mrf.mxu0
      %v2114 = vadd.f32 0.0, %v2113
      %v2115 = vpop.f32.mrf.mxu0
      %2116 = vdwg.mxu0
      %v2117 = vadd.f32 %v1836, %v2087
      %v2118 = vadd.f32 %v1837, %v2090
      %v2119 = vadd.f32 %v1838, %v2095
      %v2120 = vadd.f32 %v1839, %v2098
      %v2121 = vadd.f32 %v1840, %v2103
      %v2122 = vadd.f32 %v1841, %v2106
      %v2123 = vadd.f32 %v1842, %v2111
      %v2124 = vadd.f32 %v1843, %v2114
      %v2125 = vld [vmem:[%s1674] sm:$0xe]
      %v2126 = vld [vmem:[%s1674 + $0x8] sm:$0xe]
      %v2127 = vld [vmem:[%s1674 + $0x10] sm:$0xe]
      %v2128 = vld [vmem:[%s1674 + $0x18] sm:$0xe]
      %v2129 = vld [vmem:[%s1674 + $0x20] sm:$0xe]
      %v2130 = vld [vmem:[%s1674 + $0x28] sm:$0xe]
      %v2131 = vld [vmem:[%s1674 + $0x30] sm:$0xe]
      %v2132 = vld [vmem:[%s1674 + $0x38] sm:$0xe]
      %v2149 = vrot.slane %v2125, 5
      %v2150 = vrot.slane %v2149, 4
      %v2151 = vrot.slane %v1845, 5
      %v2152 = vsel %vm822, %v2150, %v2151
      %v2153 = vrot.slane %v2126, 5
      %v2154 = vrot.slane %v2153, 4
      %v2155 = vrot.slane %v1847, 5
      %v2156 = vsel %vm822, %v2154, %v2155
      %v2157 = vrot.slane %v2127, 5
      %v2158 = vrot.slane %v2157, 4
      %v2159 = vrot.slane %v1849, 5
      %v2160 = vsel %vm822, %v2158, %v2159
      %v2161 = vrot.slane %v2128, 5
      %v2162 = vrot.slane %v2161, 4
      %v2163 = vrot.slane %v1851, 5
      %v2164 = vsel %vm822, %v2162, %v2163
      %v2165 = vrot.slane %v2129, 5
      %v2166 = vrot.slane %v2165, 4
      %v2167 = vrot.slane %v1853, 5
      %v2168 = vsel %vm822, %v2166, %v2167
      %v2169 = vrot.slane %v2130, 5
      %v2170 = vrot.slane %v2169, 4
      %v2171 = vrot.slane %v1855, 5
      %v2172 = vsel %vm822, %v2170, %v2171
      %v2173 = vrot.slane %v2131, 5
      %v2174 = vrot.slane %v2173, 4
      %v2175 = vrot.slane %v1857, 5
      %v2176 = vsel %vm822, %v2174, %v2175
      %v2177 = vrot.slane %v2132, 5
      %v2178 = vrot.slane %v2177, 4
      %v2179 = vrot.slane %v1859, 5
      %v2180 = vsel %vm822, %v2178, %v2179
      %v2181 = vld [vmem:[%s1 + $0x200] sm:$0xf]
      %v2182 = vld [vmem:[%s1 + $0x204] sm:$0xf]
      %v2183 = vld [vmem:[%s1 + $0x208] sm:$0xf]
      %v2184 = vld [vmem:[%s1 + $0x20c] sm:$0xf]
      %v2185 = vld [vmem:[%s1 + $0x210] sm:$0xf]
      %v2186 = vld [vmem:[%s1 + $0x214] sm:$0xf]
      %v2187 = vld [vmem:[%s1 + $0x218] sm:$0xf]
      %v2188 = vld [vmem:[%s1 + $0x21c] sm:$0xf]
      %v2189 = vld [vmem:[%s1 + $0x220] sm:$0xf]
      %v2190 = vld [vmem:[%s1 + $0x224] sm:$0xf]
      %v2191 = vld [vmem:[%s1 + $0x228] sm:$0xf]
      %v2192 = vld [vmem:[%s1 + $0x22c] sm:$0xf]
      %v2193 = vld [vmem:[%s1 + $0x230] sm:$0xf]
      %v2194 = vld [vmem:[%s1 + $0x234] sm:$0xf]
      %v2195 = vld [vmem:[%s1 + $0x238] sm:$0xf]
      %v2196 = vld [vmem:[%s1 + $0x23c] sm:$0xf]
      %v2197 = vunpack.c.l.b16 %v2152
      %v2198 = vunpack.c.l.b16 %v2156
      %v2199 = vunpack.c.l.b16 %v2160
      %v2200 = vunpack.c.l.b16 %v2164
      %v2201 = vunpack.c.l.b16 %v2168
      %v2202 = vunpack.c.l.b16 %v2172
      %v2203 = vunpack.c.l.b16 %v2176
      %v2204 = vunpack.c.l.b16 %v2180
      %v2205 = vpack.c.b16 %v2198, %v2197
      %v2206 = vpack.c.b16 %v2200, %v2199
      %v2207 = vpack.c.b16 %v2202, %v2201
      %v2208 = vpack.c.b16 %v2204, %v2203
      %v2229 = vunpack.c.l.b16 %v2181
      %v2230 = vunpack.c.l.b16 %v2182
      %v2231 = vunpack.c.l.b16 %v2183
      %v2232 = vunpack.c.l.b16 %v2184
      %v2233 = vunpack.c.l.b16 %v2185
      %v2234 = vunpack.c.l.b16 %v2186
      %v2235 = vunpack.c.l.b16 %v2187
      %v2236 = vunpack.c.l.b16 %v2188
      %v2237 = vunpack.c.l.b16 %v2189
      %v2238 = vunpack.c.l.b16 %v2190
      %v2239 = vunpack.c.l.b16 %v2191
      %v2240 = vunpack.c.l.b16 %v2192
      %v2241 = vunpack.c.l.b16 %v2193
      %v2242 = vunpack.c.l.b16 %v2194
      %v2243 = vunpack.c.l.b16 %v2195
      %v2244 = vunpack.c.l.b16 %v2196
      %v2245 = vpack.c.b16 %v2230, %v2229
      %v2246 = vpack.c.b16 %v2232, %v2231
      %v2247 = vpack.c.b16 %v2234, %v2233
      %v2248 = vpack.c.b16 %v2236, %v2235
      %v2249 = vpack.c.b16 %v2238, %v2237
      %v2250 = vpack.c.b16 %v2240, %v2239
      %v2251 = vpack.c.b16 %v2242, %v2241
      %v2252 = vpack.c.b16 %v2244, %v2243
      %2261 = vmatprep.subr.bf16.mxu0 0
      %2262 = vmatpush1.bf16.msra.mxu0 %v2252
      %2263 = vmatprep.subr.bf16.mxu0 0
      %2264 = vmatpush1.bf16.msra.mxu0 %v2251
      %2265 = vmatprep.subr.bf16.mxu0 0
      %2266 = vmatpush1.bf16.msra.mxu0 %v2250
      %2267 = vmatprep.subr.bf16.mxu0 0
      %2268 = vmatpush1.bf16.msra.mxu0 %v2249
      %2269 = vmatprep.subr.bf16.mxu0 0
      %2270 = vmatpush1.bf16.msra.mxu0 %v2248
      %2271 = vmatprep.subr.bf16.mxu0 0
      %2272 = vmatpush1.bf16.msra.mxu0 %v2247
      %2273 = vmatprep.subr.bf16.mxu0 0
      %2274 = vmatpush1.bf16.msra.mxu0 %v2246
      %2275 = vmatprep.subr.bf16.mxu0 0
      %2276 = vmatpush1.bf16.msra.mxu0 %v2245
      %2277 = vmatprep.subr.bf16.mxu0 0
      %2278 = vmatpush2.bf16.msra.mxu0 0
      %2279 = vmatprep.subr.bf16.mxu0 0
      %2280 = vmatpush2.bf16.msra.mxu0 0
      %2281 = vmatprep.subr.bf16.mxu0 0
      %2282 = vmatpush2.bf16.msra.mxu0 0
      %2283 = vmatprep.subr.bf16.mxu0 0
      %2284 = vmatpush2.bf16.msra.mxu0 0
      %2285 = vmatprep.subr.bf16.mxu0 0
      %2286 = vmatpush2.bf16.msra.mxu0 0
      %2287 = vmatprep.subr.bf16.mxu0 0
      %2288 = vmatpush2.bf16.msra.mxu0 0
      %2289 = vmatprep.subr.bf16.mxu0 0
      %2290 = vmatpush2.bf16.msra.mxu0 0
      %2291 = vmatprep.subr.bf16.mxu0 0
      %2292 = vmatpush2.bf16.msra.mxu0 0
      %2293 = vmatprep.mubr.bf16.mxu0 0
      %2294 = vmatmul.mubr.bf16.gmra.mxu0 %v2205
      %v2295 = vpop.f32.mrf.mxu0
      %v2296 = vadd.f32 0.0, %v2295
      %v2297 = vpop.f32.mrf.mxu0
      %v2298 = vpop.f32.mrf.mxu0
      %v2299 = vadd.f32 0.0, %v2298
      %v2300 = vpop.f32.mrf.mxu0
      %2301 = vmatprep.mubr.bf16.mxu0 0
      %2302 = vmatmul.mubr.bf16.gmra.mxu0 %v2206
      %v2303 = vpop.f32.mrf.mxu0
      %v2304 = vadd.f32 0.0, %v2303
      %v2305 = vpop.f32.mrf.mxu0
      %v2306 = vpop.f32.mrf.mxu0
      %v2307 = vadd.f32 0.0, %v2306
      %v2308 = vpop.f32.mrf.mxu0
      %2309 = vmatprep.mubr.bf16.mxu0 0
      %2310 = vmatmul.mubr.bf16.gmra.mxu0 %v2207
      %v2311 = vpop.f32.mrf.mxu0
      %v2312 = vadd.f32 0.0, %v2311
      %v2313 = vpop.f32.mrf.mxu0
      %v2314 = vpop.f32.mrf.mxu0
      %v2315 = vadd.f32 0.0, %v2314
      %v2316 = vpop.f32.mrf.mxu0
      %2317 = vmatprep.mubr.bf16.mxu0 0
      %2318 = vmatmul.mubr.bf16.gmra.mxu0 %v2208
      %v2319 = vpop.f32.mrf.mxu0
      %v2320 = vadd.f32 0.0, %v2319
      %v2321 = vpop.f32.mrf.mxu0
      %v2322 = vpop.f32.mrf.mxu0
      %v2323 = vadd.f32 0.0, %v2322
      %v2324 = vpop.f32.mrf.mxu0
      %2325 = vdwg.mxu0
      %v2326 = vadd.f32 %v2117, %v2296
      %v2327 = vadd.f32 %v2118, %v2299
      %v2328 = vadd.f32 %v2119, %v2304
      %v2329 = vadd.f32 %v2120, %v2307
      %v2330 = vadd.f32 %v2121, %v2312
      %v2331 = vadd.f32 %v2122, %v2315
      %v2332 = vadd.f32 %v2123, %v2320
      %v2333 = vadd.f32 %v2124, %v2323
      %v2335 = vlaneseq
      %v2336 = vshrl.u32 %v2335, 7
      %v2337 = vsub.s32 0, %v2336
      %v2338 = vrot.slane %v226, %v2337
      %v2340 = vadd.f32 %v2326, %v2338
      %v2341 = vadd.f32 %v2327, %v2338
      %v2342 = vadd.f32 %v2328, %v2338
      %v2343 = vadd.f32 %v2329, %v2338
      %v2344 = vadd.f32 %v2330, %v2338
      %v2345 = vadd.f32 %v2331, %v2338
      %v2346 = vadd.f32 %v2332, %v2338
      %v2347 = vadd.f32 %v2333, %v2338
      %v2348 = vmax.f32 %v2340, 0.0
      %v2349 = vmax.f32 %v2341, 0.0
      %v2350 = vmax.f32 %v2342, 0.0
      %v2351 = vmax.f32 %v2343, 0.0
      %v2352 = vmax.f32 %v2344, 0.0
      %v2353 = vmax.f32 %v2345, 0.0
      %v2354 = vmax.f32 %v2346, 0.0
      %v2355 = vmax.f32 %v2347, 0.0
      %v2356 = vpack.c.bf16 %v2348, %v2348
      %v2357 = vpack.c.bf16 %v2349, %v2349
      %v2358 = vpack.c.bf16 %v2350, %v2350
      %v2359 = vpack.c.bf16 %v2351, %v2351
      %v2360 = vpack.c.bf16 %v2352, %v2352
      %v2361 = vpack.c.bf16 %v2353, %v2353
      %v2362 = vpack.c.bf16 %v2354, %v2354
      %v2363 = vpack.c.bf16 %v2355, %v2355
      %v2372 = vunpack.c.l.b16 %v2356
      %v2373 = vunpack.c.l.b16 %v2357
      %v2374 = vunpack.c.l.b16 %v2358
      %v2375 = vunpack.c.l.b16 %v2359
      %v2376 = vunpack.c.l.b16 %v2360
      %v2377 = vunpack.c.l.b16 %v2361
      %v2378 = vunpack.c.l.b16 %v2362
      %v2379 = vunpack.c.l.b16 %v2363
      %v2380 = vpack.c.b16 %v2372, %v2372
      %v2381 = vpack.c.b16 %v2373, %v2373
      %v2382 = vpack.c.b16 %v2374, %v2374
      %v2383 = vpack.c.b16 %v2375, %v2375
      %v2384 = vpack.c.b16 %v2376, %v2376
      %v2385 = vpack.c.b16 %v2377, %v2377
      %v2386 = vpack.c.b16 %v2378, %v2378
      %v2387 = vpack.c.b16 %v2379, %v2379
      %v2389 = vshrl.u32 %v2380, 16
      %v2391 = vrot.slane %v2389, 7
      %v2392 = vshll.u32 %v2380, 16
      %v2394 = vor.u32 %v2391, %v2392
      %v2395 = vrot.slane %v2391, 4
      %v2397 = vshrl.u32 %v2381, 16
      %v2399 = vrot.slane %v2397, 7
      %v2400 = vshll.u32 %v2381, 16
      %v2402 = vor.u32 %v2399, %v2400
      %v2403 = vrot.slane %v2399, 4
      %v2405 = vshrl.u32 %v2382, 16
      %v2407 = vrot.slane %v2405, 7
      %v2408 = vshll.u32 %v2382, 16
      %v2410 = vor.u32 %v2407, %v2408
      %v2411 = vrot.slane %v2407, 4
      %v2413 = vshrl.u32 %v2383, 16
      %v2415 = vrot.slane %v2413, 7
      %v2416 = vshll.u32 %v2383, 16
      %v2418 = vor.u32 %v2415, %v2416
      %v2419 = vrot.slane %v2415, 4
      %v2421 = vshrl.u32 %v2384, 16
      %v2423 = vrot.slane %v2421, 7
      %v2424 = vshll.u32 %v2384, 16
      %v2426 = vor.u32 %v2423, %v2424
      %v2427 = vrot.slane %v2423, 4
      %v2429 = vshrl.u32 %v2385, 16
      %v2431 = vrot.slane %v2429, 7
      %v2432 = vshll.u32 %v2385, 16
      %v2434 = vor.u32 %v2431, %v2432
      %v2435 = vrot.slane %v2431, 4
      %v2437 = vshrl.u32 %v2386, 16
      %v2439 = vrot.slane %v2437, 7
      %v2440 = vshll.u32 %v2386, 16
      %v2442 = vor.u32 %v2439, %v2440
      %v2443 = vrot.slane %v2439, 4
      %v2445 = vshrl.u32 %v2387, 16
      %v2447 = vrot.slane %v2445, 7
      %v2448 = vshll.u32 %v2387, 16
      %v2450 = vor.u32 %v2447, %v2448
      %v2451 = vrot.slane %v2447, 4
      %s2468 = smul.addr %s1009, 4
      %s2469 = scalar_lea.vmem [#allocation2], %s2468
      %v2470 = vld [vmem:[%s2469] sm:$0xf]
      %v2471 = vsel %vm268, %v2394, %v2470
      %2472 = vst [vmem:[%s2469] sm:$0xf] %v2471
      %v2473 = vld [vmem:[%s2469 + $0x4] sm:$0x1]
      %v2474 = vsel %vm235, %v2395, %v2473
      %2475 = vst [vmem:[%s2469 + $0x4] sm:$0x1] %v2474
      %v2476 = vld [vmem:[%s2469 + $0x8] sm:$0xf]
      %v2477 = vsel %vm268, %v2402, %v2476
      %2478 = vst [vmem:[%s2469 + $0x8] sm:$0xf] %v2477
      %v2479 = vld [vmem:[%s2469 + $0xc] sm:$0x1]
      %v2480 = vsel %vm235, %v2403, %v2479
      %2481 = vst [vmem:[%s2469 + $0xc] sm:$0x1] %v2480
      %v2482 = vld [vmem:[%s2469 + $0x10] sm:$0xf]
      %v2483 = vsel %vm268, %v2410, %v2482
      %2484 = vst [vmem:[%s2469 + $0x10] sm:$0xf] %v2483
      %v2485 = vld [vmem:[%s2469 + $0x14] sm:$0x1]
      %v2486 = vsel %vm235, %v2411, %v2485
      %2487 = vst [vmem:[%s2469 + $0x14] sm:$0x1] %v2486
      %v2488 = vld [vmem:[%s2469 + $0x18] sm:$0xf]
      %v2489 = vsel %vm268, %v2418, %v2488
      %2490 = vst [vmem:[%s2469 + $0x18] sm:$0xf] %v2489
      %v2491 = vld [vmem:[%s2469 + $0x1c] sm:$0x1]
      %v2492 = vsel %vm235, %v2419, %v2491
      %2493 = vst [vmem:[%s2469 + $0x1c] sm:$0x1] %v2492
      %v2494 = vld [vmem:[%s2469 + $0x20] sm:$0xf]
      %v2495 = vsel %vm268, %v2426, %v2494
      %2496 = vst [vmem:[%s2469 + $0x20] sm:$0xf] %v2495
      %v2497 = vld [vmem:[%s2469 + $0x24] sm:$0x1]
      %v2498 = vsel %vm235, %v2427, %v2497
      %2499 = vst [vmem:[%s2469 + $0x24] sm:$0x1] %v2498
      %v2500 = vld [vmem:[%s2469 + $0x28] sm:$0xf]
      %v2501 = vsel %vm268, %v2434, %v2500
      %2502 = vst [vmem:[%s2469 + $0x28] sm:$0xf] %v2501
      %v2503 = vld [vmem:[%s2469 + $0x2c] sm:$0x1]
      %v2504 = vsel %vm235, %v2435, %v2503
      %2505 = vst [vmem:[%s2469 + $0x2c] sm:$0x1] %v2504
      %v2506 = vld [vmem:[%s2469 + $0x30] sm:$0xf]
      %v2507 = vsel %vm268, %v2442, %v2506
      %2508 = vst [vmem:[%s2469 + $0x30] sm:$0xf] %v2507
      %v2509 = vld [vmem:[%s2469 + $0x34] sm:$0x1]
      %v2510 = vsel %vm235, %v2443, %v2509
      %2511 = vst [vmem:[%s2469 + $0x34] sm:$0x1] %v2510
      %v2512 = vld [vmem:[%s2469 + $0x38] sm:$0xf]
      %v2513 = vsel %vm268, %v2450, %v2512
      %2514 = vst [vmem:[%s2469 + $0x38] sm:$0xf] %v2513
      %v2515 = vld [vmem:[%s2469 + $0x3c] sm:$0x1]
      %v2516 = vsel %vm235, %v2451, %v2515
      %2517 = vst [vmem:[%s2469 + $0x3c] sm:$0x1] %v2516
      %v2518 = vld [vmem:[%s1011] sm:$0xf]
      %v2519 = vld [vmem:[%s1011 + $0x4] sm:$0x1]
      %v2520 = vld [vmem:[%s1011 + $0x8] sm:$0xf]
      %v2521 = vld [vmem:[%s1011 + $0xc] sm:$0x1]
      %v2522 = vld [vmem:[%s1011 + $0x10] sm:$0xf]
      %v2523 = vld [vmem:[%s1011 + $0x14] sm:$0x1]
      %v2524 = vld [vmem:[%s1011 + $0x18] sm:$0xf]
      %v2525 = vld [vmem:[%s1011 + $0x1c] sm:$0x1]
      %v2526 = vld [vmem:[%s1011 + $0x20] sm:$0xf]
      %v2527 = vld [vmem:[%s1011 + $0x24] sm:$0x1]
      %v2528 = vld [vmem:[%s1011 + $0x28] sm:$0xf]
      %v2529 = vld [vmem:[%s1011 + $0x2c] sm:$0x1]
      %v2530 = vld [vmem:[%s1011 + $0x30] sm:$0xf]
      %v2531 = vld [vmem:[%s1011 + $0x34] sm:$0x1]
      %v2532 = vld [vmem:[%s1011 + $0x38] sm:$0xf]
      %v2533 = vld [vmem:[%s1011 + $0x3c] sm:$0x1]
      %v2535 = vshrl.u32 %v2518, 16
      %v2537 = vrot.slane %v2535, 4
      %v2538 = vshll.u32 %v2518, 16
      %v2540 = vrot.slane %v2538, 5
      %v2541 = vor.u32 %v2537, %v2540
      %v2542 = vrot.slane %v2541, 4
      %v2544 = vshll.u32 %v2519, 16
      %v2546 = vrot.slane %v2544, 5
      %v2547 = vsel %vm401, %v2542, %v2546
      %v2549 = vshrl.u32 %v2520, 16
      %v2551 = vrot.slane %v2549, 4
      %v2552 = vshll.u32 %v2520, 16
      %v2554 = vrot.slane %v2552, 5
      %v2555 = vor.u32 %v2551, %v2554
      %v2556 = vrot.slane %v2555, 4
      %v2558 = vshll.u32 %v2521, 16
      %v2560 = vrot.slane %v2558, 5
      %v2561 = vsel %vm401, %v2556, %v2560
      %v2563 = vshrl.u32 %v2522, 16
      %v2565 = vrot.slane %v2563, 4
      %v2566 = vshll.u32 %v2522, 16
      %v2568 = vrot.slane %v2566, 5
      %v2569 = vor.u32 %v2565, %v2568
      %v2570 = vrot.slane %v2569, 4
      %v2572 = vshll.u32 %v2523, 16
      %v2574 = vrot.slane %v2572, 5
      %v2575 = vsel %vm401, %v2570, %v2574
      %v2577 = vshrl.u32 %v2524, 16
      %v2579 = vrot.slane %v2577, 4
      %v2580 = vshll.u32 %v2524, 16
      %v2582 = vrot.slane %v2580, 5
      %v2583 = vor.u32 %v2579, %v2582
      %v2584 = vrot.slane %v2583, 4
      %v2586 = vshll.u32 %v2525, 16
      %v2588 = vrot.slane %v2586, 5
      %v2589 = vsel %vm401, %v2584, %v2588
      %v2591 = vshrl.u32 %v2526, 16
      %v2593 = vrot.slane %v2591, 4
      %v2594 = vshll.u32 %v2526, 16
      %v2596 = vrot.slane %v2594, 5
      %v2597 = vor.u32 %v2593, %v2596
      %v2598 = vrot.slane %v2597, 4
      %v2600 = vshll.u32 %v2527, 16
      %v2602 = vrot.slane %v2600, 5
      %v2603 = vsel %vm401, %v2598, %v2602
      %v2605 = vshrl.u32 %v2528, 16
      %v2607 = vrot.slane %v2605, 4
      %v2608 = vshll.u32 %v2528, 16
      %v2610 = vrot.slane %v2608, 5
      %v2611 = vor.u32 %v2607, %v2610
      %v2612 = vrot.slane %v2611, 4
      %v2614 = vshll.u32 %v2529, 16
      %v2616 = vrot.slane %v2614, 5
      %v2617 = vsel %vm401, %v2612, %v2616
      %v2619 = vshrl.u32 %v2530, 16
      %v2621 = vrot.slane %v2619, 4
      %v2622 = vshll.u32 %v2530, 16
      %v2624 = vrot.slane %v2622, 5
      %v2625 = vor.u32 %v2621, %v2624
      %v2626 = vrot.slane %v2625, 4
      %v2628 = vshll.u32 %v2531, 16
      %v2630 = vrot.slane %v2628, 5
      %v2631 = vsel %vm401, %v2626, %v2630
      %v2633 = vshrl.u32 %v2532, 16
      %v2635 = vrot.slane %v2633, 4
      %v2636 = vshll.u32 %v2532, 16
      %v2638 = vrot.slane %v2636, 5
      %v2639 = vor.u32 %v2635, %v2638
      %v2640 = vrot.slane %v2639, 4
      %v2642 = vshll.u32 %v2533, 16
      %v2644 = vrot.slane %v2642, 5
      %v2645 = vsel %vm401, %v2640, %v2644
      %v2654 = vunpack.c.l.bf16 %v2547
      %v2655 = vunpack.c.l.bf16 %v2561
      %v2656 = vunpack.c.l.bf16 %v2575
      %v2657 = vunpack.c.l.bf16 %v2589
      %v2658 = vunpack.c.l.bf16 %v2603
      %v2659 = vunpack.c.l.bf16 %v2617
      %v2660 = vunpack.c.l.bf16 %v2631
      %v2661 = vunpack.c.l.bf16 %v2645
      %s2662 = smul.addr %s364, 4
      %s2663 = scalar_lea.vmem [#allocation2], %s2662
      %v2664 = vld [vmem:[%s2663] sm:$0xf]
      %v2665 = vld [vmem:[%s2663 + $0x8] sm:$0xf]
      %v2666 = vld [vmem:[%s2663 + $0x10] sm:$0xf]
      %v2667 = vld [vmem:[%s2663 + $0x18] sm:$0xf]
      %v2668 = vld [vmem:[%s2663 + $0x20] sm:$0xf]
      %v2669 = vld [vmem:[%s2663 + $0x28] sm:$0xf]
      %v2670 = vld [vmem:[%s2663 + $0x30] sm:$0xf]
      %v2671 = vld [vmem:[%s2663 + $0x38] sm:$0xf]
      %v2672 = vld [vmem:[%s3] sm:$0xf]
      %v2673 = vld [vmem:[%s3 + $0x4] sm:$0xf]
      %v2674 = vld [vmem:[%s3 + $0x8] sm:$0xf]
      %v2675 = vld [vmem:[%s3 + $0xc] sm:$0xf]
      %v2676 = vld [vmem:[%s3 + $0x10] sm:$0xf]
      %v2677 = vld [vmem:[%s3 + $0x14] sm:$0xf]
      %v2678 = vld [vmem:[%s3 + $0x18] sm:$0xf]
      %v2679 = vld [vmem:[%s3 + $0x1c] sm:$0xf]
      %v2680 = vld [vmem:[%s3 + $0x20] sm:$0xf]
      %v2681 = vld [vmem:[%s3 + $0x24] sm:$0xf]
      %v2682 = vld [vmem:[%s3 + $0x28] sm:$0xf]
      %v2683 = vld [vmem:[%s3 + $0x2c] sm:$0xf]
      %v2684 = vld [vmem:[%s3 + $0x30] sm:$0xf]
      %v2685 = vld [vmem:[%s3 + $0x34] sm:$0xf]
      %v2686 = vld [vmem:[%s3 + $0x38] sm:$0xf]
      %v2687 = vld [vmem:[%s3 + $0x3c] sm:$0xf]
      %v2688 = vld [vmem:[%s2663 + $0x4] sm:$0x1]
      %v2689 = vld [vmem:[%s2663 + $0xc] sm:$0x1]
      %v2690 = vld [vmem:[%s2663 + $0x14] sm:$0x1]
      %v2691 = vld [vmem:[%s2663 + $0x1c] sm:$0x1]
      %v2692 = vld [vmem:[%s2663 + $0x24] sm:$0x1]
      %v2693 = vld [vmem:[%s2663 + $0x2c] sm:$0x1]
      %v2694 = vld [vmem:[%s2663 + $0x34] sm:$0x1]
      %v2695 = vld [vmem:[%s2663 + $0x3c] sm:$0x1]
      %v2697 = vshrl.u32 %v2664, 16
      %v2699 = vrot.slane %v2697, 4
      %v2700 = vshll.u32 %v2664, 16
      %v2702 = vrot.slane %v2700, 5
      %v2703 = vor.u32 %v2699, %v2702
      %v2704 = vrot.slane %v2703, 4
      %v2706 = vshll.u32 %v2688, 16
      %v2708 = vrot.slane %v2706, 5
      %v2709 = vsel %vm401, %v2704, %v2708
      %v2711 = vshrl.u32 %v2665, 16
      %v2713 = vrot.slane %v2711, 4
      %v2714 = vshll.u32 %v2665, 16
      %v2716 = vrot.slane %v2714, 5
      %v2717 = vor.u32 %v2713, %v2716
      %v2718 = vrot.slane %v2717, 4
      %v2720 = vshll.u32 %v2689, 16
      %v2722 = vrot.slane %v2720, 5
      %v2723 = vsel %vm401, %v2718, %v2722
      %v2725 = vshrl.u32 %v2666, 16
      %v2727 = vrot.slane %v2725, 4
      %v2728 = vshll.u32 %v2666, 16
      %v2730 = vrot.slane %v2728, 5
      %v2731 = vor.u32 %v2727, %v2730
      %v2732 = vrot.slane %v2731, 4
      %v2734 = vshll.u32 %v2690, 16
      %v2736 = vrot.slane %v2734, 5
      %v2737 = vsel %vm401, %v2732, %v2736
      %v2739 = vshrl.u32 %v2667, 16
      %v2741 = vrot.slane %v2739, 4
      %v2742 = vshll.u32 %v2667, 16
      %v2744 = vrot.slane %v2742, 5
      %v2745 = vor.u32 %v2741, %v2744
      %v2746 = vrot.slane %v2745, 4
      %v2748 = vshll.u32 %v2691, 16
      %v2750 = vrot.slane %v2748, 5
      %v2751 = vsel %vm401, %v2746, %v2750
      %v2753 = vshrl.u32 %v2668, 16
      %v2755 = vrot.slane %v2753, 4
      %v2756 = vshll.u32 %v2668, 16
      %v2758 = vrot.slane %v2756, 5
      %v2759 = vor.u32 %v2755, %v2758
      %v2760 = vrot.slane %v2759, 4
      %v2762 = vshll.u32 %v2692, 16
      %v2764 = vrot.slane %v2762, 5
      %v2765 = vsel %vm401, %v2760, %v2764
      %v2767 = vshrl.u32 %v2669, 16
      %v2769 = vrot.slane %v2767, 4
      %v2770 = vshll.u32 %v2669, 16
      %v2772 = vrot.slane %v2770, 5
      %v2773 = vor.u32 %v2769, %v2772
      %v2774 = vrot.slane %v2773, 4
      %v2776 = vshll.u32 %v2693, 16
      %v2778 = vrot.slane %v2776, 5
      %v2779 = vsel %vm401, %v2774, %v2778
      %v2781 = vshrl.u32 %v2670, 16
      %v2783 = vrot.slane %v2781, 4
      %v2784 = vshll.u32 %v2670, 16
      %v2786 = vrot.slane %v2784, 5
      %v2787 = vor.u32 %v2783, %v2786
      %v2788 = vrot.slane %v2787, 4
      %v2790 = vshll.u32 %v2694, 16
      %v2792 = vrot.slane %v2790, 5
      %v2793 = vsel %vm401, %v2788, %v2792
      %v2795 = vshrl.u32 %v2671, 16
      %v2797 = vrot.slane %v2795, 4
      %v2798 = vshll.u32 %v2671, 16
      %v2800 = vrot.slane %v2798, 5
      %v2801 = vor.u32 %v2797, %v2800
      %v2802 = vrot.slane %v2801, 4
      %v2804 = vshll.u32 %v2695, 16
      %v2806 = vrot.slane %v2804, 5
      %v2807 = vsel %vm401, %v2802, %v2806
      %v2808 = vld [vmem:[%s3 + $0x40] sm:$0xf]
      %v2809 = vld [vmem:[%s3 + $0x44] sm:$0xf]
      %v2810 = vld [vmem:[%s3 + $0x48] sm:$0xf]
      %v2811 = vld [vmem:[%s3 + $0x4c] sm:$0xf]
      %v2812 = vld [vmem:[%s3 + $0x50] sm:$0xf]
      %v2813 = vld [vmem:[%s3 + $0x54] sm:$0xf]
      %v2814 = vld [vmem:[%s3 + $0x58] sm:$0xf]
      %v2815 = vld [vmem:[%s3 + $0x5c] sm:$0xf]
      %v2816 = vld [vmem:[%s3 + $0x60] sm:$0xf]
      %v2817 = vld [vmem:[%s3 + $0x64] sm:$0xf]
      %v2818 = vld [vmem:[%s3 + $0x68] sm:$0xf]
      %v2819 = vld [vmem:[%s3 + $0x6c] sm:$0xf]
      %v2820 = vld [vmem:[%s3 + $0x70] sm:$0xf]
      %v2821 = vld [vmem:[%s3 + $0x74] sm:$0xf]
      %v2822 = vld [vmem:[%s3 + $0x78] sm:$0xf]
      %v2823 = vld [vmem:[%s3 + $0x7c] sm:$0xf]
      %v2824 = vunpack.c.l.b16 %v2709
      %v2825 = vunpack.c.l.b16 %v2723
      %v2826 = vunpack.c.l.b16 %v2737
      %v2827 = vunpack.c.l.b16 %v2751
      %v2828 = vunpack.c.l.b16 %v2765
      %v2829 = vunpack.c.l.b16 %v2779
      %v2830 = vunpack.c.l.b16 %v2793
      %v2831 = vunpack.c.l.b16 %v2807
      %v2832 = vpack.c.b16 %v2825, %v2824
      %v2833 = vpack.c.b16 %v2827, %v2826
      %v2834 = vpack.c.b16 %v2829, %v2828
      %v2835 = vpack.c.b16 %v2831, %v2830
      %v2856 = vunpack.c.l.b16 %v2808
      %v2857 = vunpack.c.l.b16 %v2809
      %v2858 = vunpack.c.l.b16 %v2810
      %v2859 = vunpack.c.l.b16 %v2811
      %v2860 = vunpack.c.l.b16 %v2812
      %v2861 = vunpack.c.l.b16 %v2813
      %v2862 = vunpack.c.l.b16 %v2814
      %v2863 = vunpack.c.l.b16 %v2815
      %v2864 = vunpack.c.l.b16 %v2816
      %v2865 = vunpack.c.l.b16 %v2817
      %v2866 = vunpack.c.l.b16 %v2818
      %v2867 = vunpack.c.l.b16 %v2819
      %v2868 = vunpack.c.l.b16 %v2820
      %v2869 = vunpack.c.l.b16 %v2821
      %v2870 = vunpack.c.l.b16 %v2822
      %v2871 = vunpack.c.l.b16 %v2823
      %v2872 = vpack.c.b16 %v2857, %v2856
      %v2873 = vpack.c.b16 %v2859, %v2858
      %v2874 = vpack.c.b16 %v2861, %v2860
      %v2875 = vpack.c.b16 %v2863, %v2862
      %v2876 = vpack.c.b16 %v2865, %v2864
      %v2877 = vpack.c.b16 %v2867, %v2866
      %v2878 = vpack.c.b16 %v2869, %v2868
      %v2879 = vpack.c.b16 %v2871, %v2870
      %2888 = vmatprep.subr.bf16.mxu0 0
      %2889 = vmatpush1.bf16.msra.mxu0 %v2879
      %2890 = vmatprep.subr.bf16.mxu0 0
      %2891 = vmatpush1.bf16.msra.mxu0 %v2878
      %2892 = vmatprep.subr.bf16.mxu0 0
      %2893 = vmatpush1.bf16.msra.mxu0 %v2877
      %2894 = vmatprep.subr.bf16.mxu0 0
      %2895 = vmatpush1.bf16.msra.mxu0 %v2876
      %2896 = vmatprep.subr.bf16.mxu0 0
      %2897 = vmatpush1.bf16.msra.mxu0 %v2875
      %2898 = vmatprep.subr.bf16.mxu0 0
      %2899 = vmatpush1.bf16.msra.mxu0 %v2874
      %2900 = vmatprep.subr.bf16.mxu0 0
      %2901 = vmatpush1.bf16.msra.mxu0 %v2873
      %2902 = vmatprep.subr.bf16.mxu0 0
      %2903 = vmatpush1.bf16.msra.mxu0 %v2872
      %2904 = vmatprep.subr.bf16.mxu0 0
      %2905 = vmatpush2.bf16.msra.mxu0 0
      %2906 = vmatprep.subr.bf16.mxu0 0
      %2907 = vmatpush2.bf16.msra.mxu0 0
      %2908 = vmatprep.subr.bf16.mxu0 0
      %2909 = vmatpush2.bf16.msra.mxu0 0
      %2910 = vmatprep.subr.bf16.mxu0 0
      %2911 = vmatpush2.bf16.msra.mxu0 0
      %2912 = vmatprep.subr.bf16.mxu0 0
      %2913 = vmatpush2.bf16.msra.mxu0 0
      %2914 = vmatprep.subr.bf16.mxu0 0
      %2915 = vmatpush2.bf16.msra.mxu0 0
      %2916 = vmatprep.subr.bf16.mxu0 0
      %2917 = vmatpush2.bf16.msra.mxu0 0
      %2918 = vmatprep.subr.bf16.mxu0 0
      %2919 = vmatpush2.bf16.msra.mxu0 0
      %2920 = vmatprep.mubr.bf16.mxu0 0
      %2921 = vmatmul.mubr.bf16.gmra.mxu0 %v2832
      %v2922 = vpop.f32.mrf.mxu0
      %v2923 = vadd.f32 0.0, %v2922
      %v2924 = vpop.f32.mrf.mxu0
      %v2925 = vpop.f32.mrf.mxu0
      %v2926 = vadd.f32 0.0, %v2925
      %v2927 = vpop.f32.mrf.mxu0
      %2928 = vmatprep.mubr.bf16.mxu0 0
      %2929 = vmatmul.mubr.bf16.gmra.mxu0 %v2833
      %v2930 = vpop.f32.mrf.mxu0
      %v2931 = vadd.f32 0.0, %v2930
      %v2932 = vpop.f32.mrf.mxu0
      %v2933 = vpop.f32.mrf.mxu0
      %v2934 = vadd.f32 0.0, %v2933
      %v2935 = vpop.f32.mrf.mxu0
      %2936 = vmatprep.mubr.bf16.mxu0 0
      %2937 = vmatmul.mubr.bf16.gmra.mxu0 %v2834
      %v2938 = vpop.f32.mrf.mxu0
      %v2939 = vadd.f32 0.0, %v2938
      %v2940 = vpop.f32.mrf.mxu0
      %v2941 = vpop.f32.mrf.mxu0
      %v2942 = vadd.f32 0.0, %v2941
      %v2943 = vpop.f32.mrf.mxu0
      %2944 = vmatprep.mubr.bf16.mxu0 0
      %2945 = vmatmul.mubr.bf16.gmra.mxu0 %v2835
      %v2946 = vpop.f32.mrf.mxu0
      %v2947 = vadd.f32 0.0, %v2946
      %v2948 = vpop.f32.mrf.mxu0
      %v2949 = vpop.f32.mrf.mxu0
      %v2950 = vadd.f32 0.0, %v2949
      %v2951 = vpop.f32.mrf.mxu0
      %2952 = vdwg.mxu0
      %v2961 = vunpack.c.l.b16 %v2664
      %v2962 = vunpack.c.l.b16 %v2665
      %v2963 = vunpack.c.l.b16 %v2666
      %v2964 = vunpack.c.l.b16 %v2667
      %v2965 = vunpack.c.l.b16 %v2668
      %v2966 = vunpack.c.l.b16 %v2669
      %v2967 = vunpack.c.l.b16 %v2670
      %v2968 = vunpack.c.l.b16 %v2671
      %v2969 = vpack.c.b16 %v2962, %v2961
      %v2970 = vpack.c.b16 %v2964, %v2963
      %v2971 = vpack.c.b16 %v2966, %v2965
      %v2972 = vpack.c.b16 %v2968, %v2967
      %v2993 = vunpack.c.l.b16 %v2672
      %v2994 = vunpack.c.l.b16 %v2673
      %v2995 = vunpack.c.l.b16 %v2674
      %v2996 = vunpack.c.l.b16 %v2675
      %v2997 = vunpack.c.l.b16 %v2676
      %v2998 = vunpack.c.l.b16 %v2677
      %v2999 = vunpack.c.l.b16 %v2678
      %v3000 = vunpack.c.l.b16 %v2679
      %v3001 = vunpack.c.l.b16 %v2680
      %v3002 = vunpack.c.l.b16 %v2681
      %v3003 = vunpack.c.l.b16 %v2682
      %v3004 = vunpack.c.l.b16 %v2683
      %v3005 = vunpack.c.l.b16 %v2684
      %v3006 = vunpack.c.l.b16 %v2685
      %v3007 = vunpack.c.l.b16 %v2686
      %v3008 = vunpack.c.l.b16 %v2687
      %v3009 = vpack.c.b16 %v2994, %v2993
      %v3010 = vpack.c.b16 %v2996, %v2995
      %v3011 = vpack.c.b16 %v2998, %v2997
      %v3012 = vpack.c.b16 %v3000, %v2999
      %v3013 = vpack.c.b16 %v3002, %v3001
      %v3014 = vpack.c.b16 %v3004, %v3003
      %v3015 = vpack.c.b16 %v3006, %v3005
      %v3016 = vpack.c.b16 %v3008, %v3007
      %3025 = vmatprep.subr.bf16.mxu0 0
      %3026 = vmatpush1.bf16.msra.mxu0 %v3016
      %3027 = vmatprep.subr.bf16.mxu0 0
      %3028 = vmatpush1.bf16.msra.mxu0 %v3015
      %3029 = vmatprep.subr.bf16.mxu0 0
      %3030 = vmatpush1.bf16.msra.mxu0 %v3014
      %3031 = vmatprep.subr.bf16.mxu0 0
      %3032 = vmatpush1.bf16.msra.mxu0 %v3013
      %3033 = vmatprep.subr.bf16.mxu0 0
      %3034 = vmatpush1.bf16.msra.mxu0 %v3012
      %3035 = vmatprep.subr.bf16.mxu0 0
      %3036 = vmatpush1.bf16.msra.mxu0 %v3011
      %3037 = vmatprep.subr.bf16.mxu0 0
      %3038 = vmatpush1.bf16.msra.mxu0 %v3010
      %3039 = vmatprep.subr.bf16.mxu0 0
      %3040 = vmatpush1.bf16.msra.mxu0 %v3009
      %3041 = vmatprep.subr.bf16.mxu0 0
      %3042 = vmatpush2.bf16.msra.mxu0 0
      %3043 = vmatprep.subr.bf16.mxu0 0
      %3044 = vmatpush2.bf16.msra.mxu0 0
      %3045 = vmatprep.subr.bf16.mxu0 0
      %3046 = vmatpush2.bf16.msra.mxu0 0
      %3047 = vmatprep.subr.bf16.mxu0 0
      %3048 = vmatpush2.bf16.msra.mxu0 0
      %3049 = vmatprep.subr.bf16.mxu0 0
      %3050 = vmatpush2.bf16.msra.mxu0 0
      %3051 = vmatprep.subr.bf16.mxu0 0
      %3052 = vmatpush2.bf16.msra.mxu0 0
      %3053 = vmatprep.subr.bf16.mxu0 0
      %3054 = vmatpush2.bf16.msra.mxu0 0
      %3055 = vmatprep.subr.bf16.mxu0 0
      %3056 = vmatpush2.bf16.msra.mxu0 0
      %3057 = vmatprep.mubr.bf16.mxu0 0
      %3058 = vmatmul.mubr.bf16.gmra.mxu0 %v2969
      %v3059 = vpop.f32.mrf.mxu0
      %v3060 = vadd.f32 %v2923, %v3059
      %v3061 = vpop.f32.mrf.mxu0
      %v3062 = vpop.f32.mrf.mxu0
      %v3063 = vadd.f32 %v2926, %v3062
      %v3064 = vpop.f32.mrf.mxu0
      %3065 = vmatprep.mubr.bf16.mxu0 0
      %3066 = vmatmul.mubr.bf16.gmra.mxu0 %v2970
      %v3067 = vpop.f32.mrf.mxu0
      %v3068 = vadd.f32 %v2931, %v3067
      %v3069 = vpop.f32.mrf.mxu0
      %v3070 = vpop.f32.mrf.mxu0
      %v3071 = vadd.f32 %v2934, %v3070
      %v3072 = vpop.f32.mrf.mxu0
      %3073 = vmatprep.mubr.bf16.mxu0 0
      %3074 = vmatmul.mubr.bf16.gmra.mxu0 %v2971
      %v3075 = vpop.f32.mrf.mxu0
      %v3076 = vadd.f32 %v2939, %v3075
      %v3077 = vpop.f32.mrf.mxu0
      %v3078 = vpop.f32.mrf.mxu0
      %v3079 = vadd.f32 %v2942, %v3078
      %v3080 = vpop.f32.mrf.mxu0
      %3081 = vmatprep.mubr.bf16.mxu0 0
      %3082 = vmatmul.mubr.bf16.gmra.mxu0 %v2972
      %v3083 = vpop.f32.mrf.mxu0
      %v3084 = vadd.f32 %v2947, %v3083
      %v3085 = vpop.f32.mrf.mxu0
      %v3086 = vpop.f32.mrf.mxu0
      %v3087 = vadd.f32 %v2950, %v3086
      %v3088 = vpop.f32.mrf.mxu0
      %3089 = vdwg.mxu0
      %v3090 = vld [vmem:[%s2663] sm:$0xe]
      %v3091 = vld [vmem:[%s2663 + $0x8] sm:$0xe]
      %v3092 = vld [vmem:[%s2663 + $0x10] sm:$0xe]
      %v3093 = vld [vmem:[%s2663 + $0x18] sm:$0xe]
      %v3094 = vld [vmem:[%s2663 + $0x20] sm:$0xe]
      %v3095 = vld [vmem:[%s2663 + $0x28] sm:$0xe]
      %v3096 = vld [vmem:[%s2663 + $0x30] sm:$0xe]
      %v3097 = vld [vmem:[%s2663 + $0x38] sm:$0xe]
      %v3114 = vrot.slane %v3090, 5
      %v3115 = vrot.slane %v3114, 4
      %v3116 = vrot.slane %v2688, 5
      %v3117 = vsel %vm822, %v3115, %v3116
      %v3118 = vrot.slane %v3091, 5
      %v3119 = vrot.slane %v3118, 4
      %v3120 = vrot.slane %v2689, 5
      %v3121 = vsel %vm822, %v3119, %v3120
      %v3122 = vrot.slane %v3092, 5
      %v3123 = vrot.slane %v3122, 4
      %v3124 = vrot.slane %v2690, 5
      %v3125 = vsel %vm822, %v3123, %v3124
      %v3126 = vrot.slane %v3093, 5
      %v3127 = vrot.slane %v3126, 4
      %v3128 = vrot.slane %v2691, 5
      %v3129 = vsel %vm822, %v3127, %v3128
      %v3130 = vrot.slane %v3094, 5
      %v3131 = vrot.slane %v3130, 4
      %v3132 = vrot.slane %v2692, 5
      %v3133 = vsel %vm822, %v3131, %v3132
      %v3134 = vrot.slane %v3095, 5
      %v3135 = vrot.slane %v3134, 4
      %v3136 = vrot.slane %v2693, 5
      %v3137 = vsel %vm822, %v3135, %v3136
      %v3138 = vrot.slane %v3096, 5
      %v3139 = vrot.slane %v3138, 4
      %v3140 = vrot.slane %v2694, 5
      %v3141 = vsel %vm822, %v3139, %v3140
      %v3142 = vrot.slane %v3097, 5
      %v3143 = vrot.slane %v3142, 4
      %v3144 = vrot.slane %v2695, 5
      %v3145 = vsel %vm822, %v3143, %v3144
      %v3146 = vld [vmem:[%s3 + $0x80] sm:$0xf]
      %v3147 = vld [vmem:[%s3 + $0x84] sm:$0xf]
      %v3148 = vld [vmem:[%s3 + $0x88] sm:$0xf]
      %v3149 = vld [vmem:[%s3 + $0x8c] sm:$0xf]
      %v3150 = vld [vmem:[%s3 + $0x90] sm:$0xf]
      %v3151 = vld [vmem:[%s3 + $0x94] sm:$0xf]
      %v3152 = vld [vmem:[%s3 + $0x98] sm:$0xf]
      %v3153 = vld [vmem:[%s3 + $0x9c] sm:$0xf]
      %v3154 = vld [vmem:[%s3 + $0xa0] sm:$0xf]
      %v3155 = vld [vmem:[%s3 + $0xa4] sm:$0xf]
      %v3156 = vld [vmem:[%s3 + $0xa8] sm:$0xf]
      %v3157 = vld [vmem:[%s3 + $0xac] sm:$0xf]
      %v3158 = vld [vmem:[%s3 + $0xb0] sm:$0xf]
      %v3159 = vld [vmem:[%s3 + $0xb4] sm:$0xf]
      %v3160 = vld [vmem:[%s3 + $0xb8] sm:$0xf]
      %v3161 = vld [vmem:[%s3 + $0xbc] sm:$0xf]
      %v3162 = vunpack.c.l.b16 %v3117
      %v3163 = vunpack.c.l.b16 %v3121
      %v3164 = vunpack.c.l.b16 %v3125
      %v3165 = vunpack.c.l.b16 %v3129
      %v3166 = vunpack.c.l.b16 %v3133
      %v3167 = vunpack.c.l.b16 %v3137
      %v3168 = vunpack.c.l.b16 %v3141
      %v3169 = vunpack.c.l.b16 %v3145
      %v3170 = vpack.c.b16 %v3163, %v3162
      %v3171 = vpack.c.b16 %v3165, %v3164
      %v3172 = vpack.c.b16 %v3167, %v3166
      %v3173 = vpack.c.b16 %v3169, %v3168
      %v3194 = vunpack.c.l.b16 %v3146
      %v3195 = vunpack.c.l.b16 %v3147
      %v3196 = vunpack.c.l.b16 %v3148
      %v3197 = vunpack.c.l.b16 %v3149
      %v3198 = vunpack.c.l.b16 %v3150
      %v3199 = vunpack.c.l.b16 %v3151
      %v3200 = vunpack.c.l.b16 %v3152
      %v3201 = vunpack.c.l.b16 %v3153
      %v3202 = vunpack.c.l.b16 %v3154
      %v3203 = vunpack.c.l.b16 %v3155
      %v3204 = vunpack.c.l.b16 %v3156
      %v3205 = vunpack.c.l.b16 %v3157
      %v3206 = vunpack.c.l.b16 %v3158
      %v3207 = vunpack.c.l.b16 %v3159
      %v3208 = vunpack.c.l.b16 %v3160
      %v3209 = vunpack.c.l.b16 %v3161
      %v3210 = vpack.c.b16 %v3195, %v3194
      %v3211 = vpack.c.b16 %v3197, %v3196
      %v3212 = vpack.c.b16 %v3199, %v3198
      %v3213 = vpack.c.b16 %v3201, %v3200
      %v3214 = vpack.c.b16 %v3203, %v3202
      %v3215 = vpack.c.b16 %v3205, %v3204
      %v3216 = vpack.c.b16 %v3207, %v3206
      %v3217 = vpack.c.b16 %v3209, %v3208
      %3226 = vmatprep.subr.bf16.mxu0 0
      %3227 = vmatpush1.bf16.msra.mxu0 %v3217
      %3228 = vmatprep.subr.bf16.mxu0 0
      %3229 = vmatpush1.bf16.msra.mxu0 %v3216
      %3230 = vmatprep.subr.bf16.mxu0 0
      %3231 = vmatpush1.bf16.msra.mxu0 %v3215
      %3232 = vmatprep.subr.bf16.mxu0 0
      %3233 = vmatpush1.bf16.msra.mxu0 %v3214
      %3234 = vmatprep.subr.bf16.mxu0 0
      %3235 = vmatpush1.bf16.msra.mxu0 %v3213
      %3236 = vmatprep.subr.bf16.mxu0 0
      %3237 = vmatpush1.bf16.msra.mxu0 %v3212
      %3238 = vmatprep.subr.bf16.mxu0 0
      %3239 = vmatpush1.bf16.msra.mxu0 %v3211
      %3240 = vmatprep.subr.bf16.mxu0 0
      %3241 = vmatpush1.bf16.msra.mxu0 %v3210
      %3242 = vmatprep.subr.bf16.mxu0 0
      %3243 = vmatpush2.bf16.msra.mxu0 0
      %3244 = vmatprep.subr.bf16.mxu0 0
      %3245 = vmatpush2.bf16.msra.mxu0 0
      %3246 = vmatprep.subr.bf16.mxu0 0
      %3247 = vmatpush2.bf16.msra.mxu0 0
      %3248 = vmatprep.subr.bf16.mxu0 0
      %3249 = vmatpush2.bf16.msra.mxu0 0
      %3250 = vmatprep.subr.bf16.mxu0 0
      %3251 = vmatpush2.bf16.msra.mxu0 0
      %3252 = vmatprep.subr.bf16.mxu0 0
      %3253 = vmatpush2.bf16.msra.mxu0 0
      %3254 = vmatprep.subr.bf16.mxu0 0
      %3255 = vmatpush2.bf16.msra.mxu0 0
      %3256 = vmatprep.subr.bf16.mxu0 0
      %3257 = vmatpush2.bf16.msra.mxu0 0
      %3258 = vmatprep.mubr.bf16.mxu0 0
      %3259 = vmatmul.mubr.bf16.gmra.mxu0 %v3170
      %v3260 = vpop.f32.mrf.mxu0
      %v3261 = vadd.f32 0.0, %v3260
      %v3262 = vpop.f32.mrf.mxu0
      %v3263 = vpop.f32.mrf.mxu0
      %v3264 = vadd.f32 0.0, %v3263
      %v3265 = vpop.f32.mrf.mxu0
      %3266 = vmatprep.mubr.bf16.mxu0 0
      %3267 = vmatmul.mubr.bf16.gmra.mxu0 %v3171
      %v3268 = vpop.f32.mrf.mxu0
      %v3269 = vadd.f32 0.0, %v3268
      %v3270 = vpop.f32.mrf.mxu0
      %v3271 = vpop.f32.mrf.mxu0
      %v3272 = vadd.f32 0.0, %v3271
      %v3273 = vpop.f32.mrf.mxu0
      %3274 = vmatprep.mubr.bf16.mxu0 0
      %3275 = vmatmul.mubr.bf16.gmra.mxu0 %v3172
      %v3276 = vpop.f32.mrf.mxu0
      %v3277 = vadd.f32 0.0, %v3276
      %v3278 = vpop.f32.mrf.mxu0
      %v3279 = vpop.f32.mrf.mxu0
      %v3280 = vadd.f32 0.0, %v3279
      %v3281 = vpop.f32.mrf.mxu0
      %3282 = vmatprep.mubr.bf16.mxu0 0
      %3283 = vmatmul.mubr.bf16.gmra.mxu0 %v3173
      %v3284 = vpop.f32.mrf.mxu0
      %v3285 = vadd.f32 0.0, %v3284
      %v3286 = vpop.f32.mrf.mxu0
      %v3287 = vpop.f32.mrf.mxu0
      %v3288 = vadd.f32 0.0, %v3287
      %v3289 = vpop.f32.mrf.mxu0
      %3290 = vdwg.mxu0
      %v3291 = vadd.f32 %v3060, %v3261
      %v3292 = vadd.f32 %v3063, %v3264
      %v3293 = vadd.f32 %v3068, %v3269
      %v3294 = vadd.f32 %v3071, %v3272
      %v3295 = vadd.f32 %v3076, %v3277
      %v3296 = vadd.f32 %v3079, %v3280
      %v3297 = vadd.f32 %v3084, %v3285
      %v3298 = vadd.f32 %v3087, %v3288
      %v3299 = vld [vmem:[%s2469] sm:$0xf]
      %v3300 = vld [vmem:[%s2469 + $0x8] sm:$0xf]
      %v3301 = vld [vmem:[%s2469 + $0x10] sm:$0xf]
      %v3302 = vld [vmem:[%s2469 + $0x18] sm:$0xf]
      %v3303 = vld [vmem:[%s2469 + $0x20] sm:$0xf]
      %v3304 = vld [vmem:[%s2469 + $0x28] sm:$0xf]
      %v3305 = vld [vmem:[%s2469 + $0x30] sm:$0xf]
      %v3306 = vld [vmem:[%s2469 + $0x38] sm:$0xf]
      %v3307 = vld [vmem:[%s3 + $0xc0] sm:$0xf]
      %v3308 = vld [vmem:[%s3 + $0xc4] sm:$0xf]
      %v3309 = vld [vmem:[%s3 + $0xc8] sm:$0xf]
      %v3310 = vld [vmem:[%s3 + $0xcc] sm:$0xf]
      %v3311 = vld [vmem:[%s3 + $0xd0] sm:$0xf]
      %v3312 = vld [vmem:[%s3 + $0xd4] sm:$0xf]
      %v3313 = vld [vmem:[%s3 + $0xd8] sm:$0xf]
      %v3314 = vld [vmem:[%s3 + $0xdc] sm:$0xf]
      %v3315 = vld [vmem:[%s3 + $0xe0] sm:$0xf]
      %v3316 = vld [vmem:[%s3 + $0xe4] sm:$0xf]
      %v3317 = vld [vmem:[%s3 + $0xe8] sm:$0xf]
      %v3318 = vld [vmem:[%s3 + $0xec] sm:$0xf]
      %v3319 = vld [vmem:[%s3 + $0xf0] sm:$0xf]
      %v3320 = vld [vmem:[%s3 + $0xf4] sm:$0xf]
      %v3321 = vld [vmem:[%s3 + $0xf8] sm:$0xf]
      %v3322 = vld [vmem:[%s3 + $0xfc] sm:$0xf]
      %v3331 = vunpack.c.l.b16 %v3299
      %v3332 = vunpack.c.l.b16 %v3300
      %v3333 = vunpack.c.l.b16 %v3301
      %v3334 = vunpack.c.l.b16 %v3302
      %v3335 = vunpack.c.l.b16 %v3303
      %v3336 = vunpack.c.l.b16 %v3304
      %v3337 = vunpack.c.l.b16 %v3305
      %v3338 = vunpack.c.l.b16 %v3306
      %v3339 = vpack.c.b16 %v3332, %v3331
      %v3340 = vpack.c.b16 %v3334, %v3333
      %v3341 = vpack.c.b16 %v3336, %v3335
      %v3342 = vpack.c.b16 %v3338, %v3337
      %v3363 = vunpack.c.l.b16 %v3307
      %v3364 = vunpack.c.l.b16 %v3308
      %v3365 = vunpack.c.l.b16 %v3309
      %v3366 = vunpack.c.l.b16 %v3310
      %v3367 = vunpack.c.l.b16 %v3311
      %v3368 = vunpack.c.l.b16 %v3312
      %v3369 = vunpack.c.l.b16 %v3313
      %v3370 = vunpack.c.l.b16 %v3314
      %v3371 = vunpack.c.l.b16 %v3315
      %v3372 = vunpack.c.l.b16 %v3316
      %v3373 = vunpack.c.l.b16 %v3317
      %v3374 = vunpack.c.l.b16 %v3318
      %v3375 = vunpack.c.l.b16 %v3319
      %v3376 = vunpack.c.l.b16 %v3320
      %v3377 = vunpack.c.l.b16 %v3321
      %v3378 = vunpack.c.l.b16 %v3322
      %v3379 = vpack.c.b16 %v3364, %v3363
      %v3380 = vpack.c.b16 %v3366, %v3365
      %v3381 = vpack.c.b16 %v3368, %v3367
      %v3382 = vpack.c.b16 %v3370, %v3369
      %v3383 = vpack.c.b16 %v3372, %v3371
      %v3384 = vpack.c.b16 %v3374, %v3373
      %v3385 = vpack.c.b16 %v3376, %v3375
      %v3386 = vpack.c.b16 %v3378, %v3377
      %3395 = vmatprep.subr.bf16.mxu0 0
      %3396 = vmatpush1.bf16.msra.mxu0 %v3386
      %3397 = vmatprep.subr.bf16.mxu0 0
      %3398 = vmatpush1.bf16.msra.mxu0 %v3385
      %3399 = vmatprep.subr.bf16.mxu0 0
      %3400 = vmatpush1.bf16.msra.mxu0 %v3384
      %3401 = vmatprep.subr.bf16.mxu0 0
      %3402 = vmatpush1.bf16.msra.mxu0 %v3383
      %3403 = vmatprep.subr.bf16.mxu0 0
      %3404 = vmatpush1.bf16.msra.mxu0 %v3382
      %3405 = vmatprep.subr.bf16.mxu0 0
      %3406 = vmatpush1.bf16.msra.mxu0 %v3381
      %3407 = vmatprep.subr.bf16.mxu0 0
      %3408 = vmatpush1.bf16.msra.mxu0 %v3380
      %3409 = vmatprep.subr.bf16.mxu0 0
      %3410 = vmatpush1.bf16.msra.mxu0 %v3379
      %3411 = vmatprep.subr.bf16.mxu0 0
      %3412 = vmatpush2.bf16.msra.mxu0 0
      %3413 = vmatprep.subr.bf16.mxu0 0
      %3414 = vmatpush2.bf16.msra.mxu0 0
      %3415 = vmatprep.subr.bf16.mxu0 0
      %3416 = vmatpush2.bf16.msra.mxu0 0
      %3417 = vmatprep.subr.bf16.mxu0 0
      %3418 = vmatpush2.bf16.msra.mxu0 0
      %3419 = vmatprep.subr.bf16.mxu0 0
      %3420 = vmatpush2.bf16.msra.mxu0 0
      %3421 = vmatprep.subr.bf16.mxu0 0
      %3422 = vmatpush2.bf16.msra.mxu0 0
      %3423 = vmatprep.subr.bf16.mxu0 0
      %3424 = vmatpush2.bf16.msra.mxu0 0
      %3425 = vmatprep.subr.bf16.mxu0 0
      %3426 = vmatpush2.bf16.msra.mxu0 0
      %3427 = vmatprep.mubr.bf16.mxu0 0
      %3428 = vmatmul.mubr.bf16.gmra.mxu0 %v3339
      %v3429 = vpop.f32.mrf.mxu0
      %v3430 = vadd.f32 0.0, %v3429
      %v3431 = vpop.f32.mrf.mxu0
      %v3432 = vpop.f32.mrf.mxu0
      %v3433 = vadd.f32 0.0, %v3432
      %v3434 = vpop.f32.mrf.mxu0
      %3435 = vmatprep.mubr.bf16.mxu0 0
      %3436 = vmatmul.mubr.bf16.gmra.mxu0 %v3340
      %v3437 = vpop.f32.mrf.mxu0
      %v3438 = vadd.f32 0.0, %v3437
      %v3439 = vpop.f32.mrf.mxu0
      %v3440 = vpop.f32.mrf.mxu0
      %v3441 = vadd.f32 0.0, %v3440
      %v3442 = vpop.f32.mrf.mxu0
      %3443 = vmatprep.mubr.bf16.mxu0 0
      %3444 = vmatmul.mubr.bf16.gmra.mxu0 %v3341
      %v3445 = vpop.f32.mrf.mxu0
      %v3446 = vadd.f32 0.0, %v3445
      %v3447 = vpop.f32.mrf.mxu0
      %v3448 = vpop.f32.mrf.mxu0
      %v3449 = vadd.f32 0.0, %v3448
      %v3450 = vpop.f32.mrf.mxu0
      %3451 = vmatprep.mubr.bf16.mxu0 0
      %3452 = vmatmul.mubr.bf16.gmra.mxu0 %v3342
      %v3453 = vpop.f32.mrf.mxu0
      %v3454 = vadd.f32 0.0, %v3453
      %v3455 = vpop.f32.mrf.mxu0
      %v3456 = vpop.f32.mrf.mxu0
      %v3457 = vadd.f32 0.0, %v3456
      %v3458 = vpop.f32.mrf.mxu0
      %3459 = vdwg.mxu0
      %v3460 = vadd.f32 %v3291, %v3430
      %v3461 = vadd.f32 %v3292, %v3433
      %v3462 = vadd.f32 %v3293, %v3438
      %v3463 = vadd.f32 %v3294, %v3441
      %v3464 = vadd.f32 %v3295, %v3446
      %v3465 = vadd.f32 %v3296, %v3449
      %v3466 = vadd.f32 %v3297, %v3454
      %v3467 = vadd.f32 %v3298, %v3457
      %v3468 = vld [vmem:[%s2469] sm:$0xf]
      %v3469 = vld [vmem:[%s2469 + $0x4] sm:$0x1]
      %v3470 = vld [vmem:[%s2469 + $0x8] sm:$0xf]
      %v3471 = vld [vmem:[%s2469 + $0xc] sm:$0x1]
      %v3472 = vld [vmem:[%s2469 + $0x10] sm:$0xf]
      %v3473 = vld [vmem:[%s2469 + $0x14] sm:$0x1]
      %v3474 = vld [vmem:[%s2469 + $0x18] sm:$0xf]
      %v3475 = vld [vmem:[%s2469 + $0x1c] sm:$0x1]
      %v3476 = vld [vmem:[%s2469 + $0x20] sm:$0xf]
      %v3477 = vld [vmem:[%s2469 + $0x24] sm:$0x1]
      %v3478 = vld [vmem:[%s2469 + $0x28] sm:$0xf]
      %v3479 = vld [vmem:[%s2469 + $0x2c] sm:$0x1]
      %v3480 = vld [vmem:[%s2469 + $0x30] sm:$0xf]
      %v3481 = vld [vmem:[%s2469 + $0x34] sm:$0x1]
      %v3482 = vld [vmem:[%s2469 + $0x38] sm:$0xf]
      %v3483 = vld [vmem:[%s2469 + $0x3c] sm:$0x1]
      %v3485 = vshrl.u32 %v3468, 16
      %v3487 = vrot.slane %v3485, 4
      %v3488 = vshll.u32 %v3468, 16
      %v3490 = vrot.slane %v3488, 5
      %v3491 = vor.u32 %v3487, %v3490
      %v3492 = vrot.slane %v3491, 4
      %v3494 = vshll.u32 %v3469, 16
      %v3496 = vrot.slane %v3494, 5
      %v3497 = vsel %vm401, %v3492, %v3496
      %v3499 = vshrl.u32 %v3470, 16
      %v3501 = vrot.slane %v3499, 4
      %v3502 = vshll.u32 %v3470, 16
      %v3504 = vrot.slane %v3502, 5
      %v3505 = vor.u32 %v3501, %v3504
      %v3506 = vrot.slane %v3505, 4
      %v3508 = vshll.u32 %v3471, 16
      %v3510 = vrot.slane %v3508, 5
      %v3511 = vsel %vm401, %v3506, %v3510
      %v3513 = vshrl.u32 %v3472, 16
      %v3515 = vrot.slane %v3513, 4
      %v3516 = vshll.u32 %v3472, 16
      %v3518 = vrot.slane %v3516, 5
      %v3519 = vor.u32 %v3515, %v3518
      %v3520 = vrot.slane %v3519, 4
      %v3522 = vshll.u32 %v3473, 16
      %v3524 = vrot.slane %v3522, 5
      %v3525 = vsel %vm401, %v3520, %v3524
      %v3527 = vshrl.u32 %v3474, 16
      %v3529 = vrot.slane %v3527, 4
      %v3530 = vshll.u32 %v3474, 16
      %v3532 = vrot.slane %v3530, 5
      %v3533 = vor.u32 %v3529, %v3532
      %v3534 = vrot.slane %v3533, 4
      %v3536 = vshll.u32 %v3475, 16
      %v3538 = vrot.slane %v3536, 5
      %v3539 = vsel %vm401, %v3534, %v3538
      %v3541 = vshrl.u32 %v3476, 16
      %v3543 = vrot.slane %v3541, 4
      %v3544 = vshll.u32 %v3476, 16
      %v3546 = vrot.slane %v3544, 5
      %v3547 = vor.u32 %v3543, %v3546
      %v3548 = vrot.slane %v3547, 4
      %v3550 = vshll.u32 %v3477, 16
      %v3552 = vrot.slane %v3550, 5
      %v3553 = vsel %vm401, %v3548, %v3552
      %v3555 = vshrl.u32 %v3478, 16
      %v3557 = vrot.slane %v3555, 4
      %v3558 = vshll.u32 %v3478, 16
      %v3560 = vrot.slane %v3558, 5
      %v3561 = vor.u32 %v3557, %v3560
      %v3562 = vrot.slane %v3561, 4
      %v3564 = vshll.u32 %v3479, 16
      %v3566 = vrot.slane %v3564, 5
      %v3567 = vsel %vm401, %v3562, %v3566
      %v3569 = vshrl.u32 %v3480, 16
      %v3571 = vrot.slane %v3569, 4
      %v3572 = vshll.u32 %v3480, 16
      %v3574 = vrot.slane %v3572, 5
      %v3575 = vor.u32 %v3571, %v3574
      %v3576 = vrot.slane %v3575, 4
      %v3578 = vshll.u32 %v3481, 16
      %v3580 = vrot.slane %v3578, 5
      %v3581 = vsel %vm401, %v3576, %v3580
      %v3583 = vshrl.u32 %v3482, 16
      %v3585 = vrot.slane %v3583, 4
      %v3586 = vshll.u32 %v3482, 16
      %v3588 = vrot.slane %v3586, 5
      %v3589 = vor.u32 %v3585, %v3588
      %v3590 = vrot.slane %v3589, 4
      %v3592 = vshll.u32 %v3483, 16
      %v3594 = vrot.slane %v3592, 5
      %v3595 = vsel %vm401, %v3590, %v3594
      %v3596 = vld [vmem:[%s3 + $0x100] sm:$0xf]
      %v3597 = vld [vmem:[%s3 + $0x104] sm:$0xf]
      %v3598 = vld [vmem:[%s3 + $0x108] sm:$0xf]
      %v3599 = vld [vmem:[%s3 + $0x10c] sm:$0xf]
      %v3600 = vld [vmem:[%s3 + $0x110] sm:$0xf]
      %v3601 = vld [vmem:[%s3 + $0x114] sm:$0xf]
      %v3602 = vld [vmem:[%s3 + $0x118] sm:$0xf]
      %v3603 = vld [vmem:[%s3 + $0x11c] sm:$0xf]
      %v3604 = vld [vmem:[%s3 + $0x120] sm:$0xf]
      %v3605 = vld [vmem:[%s3 + $0x124] sm:$0xf]
      %v3606 = vld [vmem:[%s3 + $0x128] sm:$0xf]
      %v3607 = vld [vmem:[%s3 + $0x12c] sm:$0xf]
      %v3608 = vld [vmem:[%s3 + $0x130] sm:$0xf]
      %v3609 = vld [vmem:[%s3 + $0x134] sm:$0xf]
      %v3610 = vld [vmem:[%s3 + $0x138] sm:$0xf]
      %v3611 = vld [vmem:[%s3 + $0x13c] sm:$0xf]
      %v3612 = vunpack.c.l.b16 %v3497
      %v3613 = vunpack.c.l.b16 %v3511
      %v3614 = vunpack.c.l.b16 %v3525
      %v3615 = vunpack.c.l.b16 %v3539
      %v3616 = vunpack.c.l.b16 %v3553
      %v3617 = vunpack.c.l.b16 %v3567
      %v3618 = vunpack.c.l.b16 %v3581
      %v3619 = vunpack.c.l.b16 %v3595
      %v3620 = vpack.c.b16 %v3613, %v3612
      %v3621 = vpack.c.b16 %v3615, %v3614
      %v3622 = vpack.c.b16 %v3617, %v3616
      %v3623 = vpack.c.b16 %v3619, %v3618
      %v3644 = vunpack.c.l.b16 %v3596
      %v3645 = vunpack.c.l.b16 %v3597
      %v3646 = vunpack.c.l.b16 %v3598
      %v3647 = vunpack.c.l.b16 %v3599
      %v3648 = vunpack.c.l.b16 %v3600
      %v3649 = vunpack.c.l.b16 %v3601
      %v3650 = vunpack.c.l.b16 %v3602
      %v3651 = vunpack.c.l.b16 %v3603
      %v3652 = vunpack.c.l.b16 %v3604
      %v3653 = vunpack.c.l.b16 %v3605
      %v3654 = vunpack.c.l.b16 %v3606
      %v3655 = vunpack.c.l.b16 %v3607
      %v3656 = vunpack.c.l.b16 %v3608
      %v3657 = vunpack.c.l.b16 %v3609
      %v3658 = vunpack.c.l.b16 %v3610
      %v3659 = vunpack.c.l.b16 %v3611
      %v3660 = vpack.c.b16 %v3645, %v3644
      %v3661 = vpack.c.b16 %v3647, %v3646
      %v3662 = vpack.c.b16 %v3649, %v3648
      %v3663 = vpack.c.b16 %v3651, %v3650
      %v3664 = vpack.c.b16 %v3653, %v3652
      %v3665 = vpack.c.b16 %v3655, %v3654
      %v3666 = vpack.c.b16 %v3657, %v3656
      %v3667 = vpack.c.b16 %v3659, %v3658
      %3676 = vmatprep.subr.bf16.mxu0 0
      %3677 = vmatpush1.bf16.msra.mxu0 %v3667
      %3678 = vmatprep.subr.bf16.mxu0 0
      %3679 = vmatpush1.bf16.msra.mxu0 %v3666
      %3680 = vmatprep.subr.bf16.mxu0 0
      %3681 = vmatpush1.bf16.msra.mxu0 %v3665
      %3682 = vmatprep.subr.bf16.mxu0 0
      %3683 = vmatpush1.bf16.msra.mxu0 %v3664
      %3684 = vmatprep.subr.bf16.mxu0 0
      %3685 = vmatpush1.bf16.msra.mxu0 %v3663
      %3686 = vmatprep.subr.bf16.mxu0 0
      %3687 = vmatpush1.bf16.msra.mxu0 %v3662
      %3688 = vmatprep.subr.bf16.mxu0 0
      %3689 = vmatpush1.bf16.msra.mxu0 %v3661
      %3690 = vmatprep.subr.bf16.mxu0 0
      %3691 = vmatpush1.bf16.msra.mxu0 %v3660
      %3692 = vmatprep.subr.bf16.mxu0 0
      %3693 = vmatpush2.bf16.msra.mxu0 0
      %3694 = vmatprep.subr.bf16.mxu0 0
      %3695 = vmatpush2.bf16.msra.mxu0 0
      %3696 = vmatprep.subr.bf16.mxu0 0
      %3697 = vmatpush2.bf16.msra.mxu0 0
      %3698 = vmatprep.subr.bf16.mxu0 0
      %3699 = vmatpush2.bf16.msra.mxu0 0
      %3700 = vmatprep.subr.bf16.mxu0 0
      %3701 = vmatpush2.bf16.msra.mxu0 0
      %3702 = vmatprep.subr.bf16.mxu0 0
      %3703 = vmatpush2.bf16.msra.mxu0 0
      %3704 = vmatprep.subr.bf16.mxu0 0
      %3705 = vmatpush2.bf16.msra.mxu0 0
      %3706 = vmatprep.subr.bf16.mxu0 0
      %3707 = vmatpush2.bf16.msra.mxu0 0
      %3708 = vmatprep.mubr.bf16.mxu0 0
      %3709 = vmatmul.mubr.bf16.gmra.mxu0 %v3620
      %v3710 = vpop.f32.mrf.mxu0
      %v3711 = vadd.f32 0.0, %v3710
      %v3712 = vpop.f32.mrf.mxu0
      %v3713 = vpop.f32.mrf.mxu0
      %v3714 = vadd.f32 0.0, %v3713
      %v3715 = vpop.f32.mrf.mxu0
      %3716 = vmatprep.mubr.bf16.mxu0 0
      %3717 = vmatmul.mubr.bf16.gmra.mxu0 %v3621
      %v3718 = vpop.f32.mrf.mxu0
      %v3719 = vadd.f32 0.0, %v3718
      %v3720 = vpop.f32.mrf.mxu0
      %v3721 = vpop.f32.mrf.mxu0
      %v3722 = vadd.f32 0.0, %v3721
      %v3723 = vpop.f32.mrf.mxu0
      %3724 = vmatprep.mubr.bf16.mxu0 0
      %3725 = vmatmul.mubr.bf16.gmra.mxu0 %v3622
      %v3726 = vpop.f32.mrf.mxu0
      %v3727 = vadd.f32 0.0, %v3726
      %v3728 = vpop.f32.mrf.mxu0
      %v3729 = vpop.f32.mrf.mxu0
      %v3730 = vadd.f32 0.0, %v3729
      %v3731 = vpop.f32.mrf.mxu0
      %3732 = vmatprep.mubr.bf16.mxu0 0
      %3733 = vmatmul.mubr.bf16.gmra.mxu0 %v3623
      %v3734 = vpop.f32.mrf.mxu0
      %v3735 = vadd.f32 0.0, %v3734
      %v3736 = vpop.f32.mrf.mxu0
      %v3737 = vpop.f32.mrf.mxu0
      %v3738 = vadd.f32 0.0, %v3737
      %v3739 = vpop.f32.mrf.mxu0
      %3740 = vdwg.mxu0
      %v3741 = vadd.f32 %v3460, %v3711
      %v3742 = vadd.f32 %v3461, %v3714
      %v3743 = vadd.f32 %v3462, %v3719
      %v3744 = vadd.f32 %v3463, %v3722
      %v3745 = vadd.f32 %v3464, %v3727
      %v3746 = vadd.f32 %v3465, %v3730
      %v3747 = vadd.f32 %v3466, %v3735
      %v3748 = vadd.f32 %v3467, %v3738
      %v3749 = vld [vmem:[%s2469] sm:$0xe]
      %v3750 = vld [vmem:[%s2469 + $0x8] sm:$0xe]
      %v3751 = vld [vmem:[%s2469 + $0x10] sm:$0xe]
      %v3752 = vld [vmem:[%s2469 + $0x18] sm:$0xe]
      %v3753 = vld [vmem:[%s2469 + $0x20] sm:$0xe]
      %v3754 = vld [vmem:[%s2469 + $0x28] sm:$0xe]
      %v3755 = vld [vmem:[%s2469 + $0x30] sm:$0xe]
      %v3756 = vld [vmem:[%s2469 + $0x38] sm:$0xe]
      %v3773 = vrot.slane %v3749, 5
      %v3774 = vrot.slane %v3773, 4
      %v3775 = vrot.slane %v3469, 5
      %v3776 = vsel %vm822, %v3774, %v3775
      %v3777 = vrot.slane %v3750, 5
      %v3778 = vrot.slane %v3777, 4
      %v3779 = vrot.slane %v3471, 5
      %v3780 = vsel %vm822, %v3778, %v3779
      %v3781 = vrot.slane %v3751, 5
      %v3782 = vrot.slane %v3781, 4
      %v3783 = vrot.slane %v3473, 5
      %v3784 = vsel %vm822, %v3782, %v3783
      %v3785 = vrot.slane %v3752, 5
      %v3786 = vrot.slane %v3785, 4
      %v3787 = vrot.slane %v3475, 5
      %v3788 = vsel %vm822, %v3786, %v3787
      %v3789 = vrot.slane %v3753, 5
      %v3790 = vrot.slane %v3789, 4
      %v3791 = vrot.slane %v3477, 5
      %v3792 = vsel %vm822, %v3790, %v3791
      %v3793 = vrot.slane %v3754, 5
      %v3794 = vrot.slane %v3793, 4
      %v3795 = vrot.slane %v3479, 5
      %v3796 = vsel %vm822, %v3794, %v3795
      %v3797 = vrot.slane %v3755, 5
      %v3798 = vrot.slane %v3797, 4
      %v3799 = vrot.slane %v3481, 5
      %v3800 = vsel %vm822, %v3798, %v3799
      %v3801 = vrot.slane %v3756, 5
      %v3802 = vrot.slane %v3801, 4
      %v3803 = vrot.slane %v3483, 5
      %v3804 = vsel %vm822, %v3802, %v3803
      %v3805 = vld [vmem:[%s3 + $0x140] sm:$0xf]
      %v3806 = vld [vmem:[%s3 + $0x144] sm:$0xf]
      %v3807 = vld [vmem:[%s3 + $0x148] sm:$0xf]
      %v3808 = vld [vmem:[%s3 + $0x14c] sm:$0xf]
      %v3809 = vld [vmem:[%s3 + $0x150] sm:$0xf]
      %v3810 = vld [vmem:[%s3 + $0x154] sm:$0xf]
      %v3811 = vld [vmem:[%s3 + $0x158] sm:$0xf]
      %v3812 = vld [vmem:[%s3 + $0x15c] sm:$0xf]
      %v3813 = vld [vmem:[%s3 + $0x160] sm:$0xf]
      %v3814 = vld [vmem:[%s3 + $0x164] sm:$0xf]
      %v3815 = vld [vmem:[%s3 + $0x168] sm:$0xf]
      %v3816 = vld [vmem:[%s3 + $0x16c] sm:$0xf]
      %v3817 = vld [vmem:[%s3 + $0x170] sm:$0xf]
      %v3818 = vld [vmem:[%s3 + $0x174] sm:$0xf]
      %v3819 = vld [vmem:[%s3 + $0x178] sm:$0xf]
      %v3820 = vld [vmem:[%s3 + $0x17c] sm:$0xf]
      %v3821 = vunpack.c.l.b16 %v3776
      %v3822 = vunpack.c.l.b16 %v3780
      %v3823 = vunpack.c.l.b16 %v3784
      %v3824 = vunpack.c.l.b16 %v3788
      %v3825 = vunpack.c.l.b16 %v3792
      %v3826 = vunpack.c.l.b16 %v3796
      %v3827 = vunpack.c.l.b16 %v3800
      %v3828 = vunpack.c.l.b16 %v3804
      %v3829 = vpack.c.b16 %v3822, %v3821
      %v3830 = vpack.c.b16 %v3824, %v3823
      %v3831 = vpack.c.b16 %v3826, %v3825
      %v3832 = vpack.c.b16 %v3828, %v3827
      %v3853 = vunpack.c.l.b16 %v3805
      %v3854 = vunpack.c.l.b16 %v3806
      %v3855 = vunpack.c.l.b16 %v3807
      %v3856 = vunpack.c.l.b16 %v3808
      %v3857 = vunpack.c.l.b16 %v3809
      %v3858 = vunpack.c.l.b16 %v3810
      %v3859 = vunpack.c.l.b16 %v3811
      %v3860 = vunpack.c.l.b16 %v3812
      %v3861 = vunpack.c.l.b16 %v3813
      %v3862 = vunpack.c.l.b16 %v3814
      %v3863 = vunpack.c.l.b16 %v3815
      %v3864 = vunpack.c.l.b16 %v3816
      %v3865 = vunpack.c.l.b16 %v3817
      %v3866 = vunpack.c.l.b16 %v3818
      %v3867 = vunpack.c.l.b16 %v3819
      %v3868 = vunpack.c.l.b16 %v3820
      %v3869 = vpack.c.b16 %v3854, %v3853
      %v3870 = vpack.c.b16 %v3856, %v3855
      %v3871 = vpack.c.b16 %v3858, %v3857
      %v3872 = vpack.c.b16 %v3860, %v3859
      %v3873 = vpack.c.b16 %v3862, %v3861
      %v3874 = vpack.c.b16 %v3864, %v3863
      %v3875 = vpack.c.b16 %v3866, %v3865
      %v3876 = vpack.c.b16 %v3868, %v3867
      %3885 = vmatprep.subr.bf16.mxu0 0
      %3886 = vmatpush1.bf16.msra.mxu0 %v3876
      %3887 = vmatprep.subr.bf16.mxu0 0
      %3888 = vmatpush1.bf16.msra.mxu0 %v3875
      %3889 = vmatprep.subr.bf16.mxu0 0
      %3890 = vmatpush1.bf16.msra.mxu0 %v3874
      %3891 = vmatprep.subr.bf16.mxu0 0
      %3892 = vmatpush1.bf16.msra.mxu0 %v3873
      %3893 = vmatprep.subr.bf16.mxu0 0
      %3894 = vmatpush1.bf16.msra.mxu0 %v3872
      %3895 = vmatprep.subr.bf16.mxu0 0
      %3896 = vmatpush1.bf16.msra.mxu0 %v3871
      %3897 = vmatprep.subr.bf16.mxu0 0
      %3898 = vmatpush1.bf16.msra.mxu0 %v3870
      %3899 = vmatprep.subr.bf16.mxu0 0
      %3900 = vmatpush1.bf16.msra.mxu0 %v3869
      %3901 = vmatprep.subr.bf16.mxu0 0
      %3902 = vmatpush2.bf16.msra.mxu0 0
      %3903 = vmatprep.subr.bf16.mxu0 0
      %3904 = vmatpush2.bf16.msra.mxu0 0
      %3905 = vmatprep.subr.bf16.mxu0 0
      %3906 = vmatpush2.bf16.msra.mxu0 0
      %3907 = vmatprep.subr.bf16.mxu0 0
      %3908 = vmatpush2.bf16.msra.mxu0 0
      %3909 = vmatprep.subr.bf16.mxu0 0
      %3910 = vmatpush2.bf16.msra.mxu0 0
      %3911 = vmatprep.subr.bf16.mxu0 0
      %3912 = vmatpush2.bf16.msra.mxu0 0
      %3913 = vmatprep.subr.bf16.mxu0 0
      %3914 = vmatpush2.bf16.msra.mxu0 0
      %3915 = vmatprep.subr.bf16.mxu0 0
      %3916 = vmatpush2.bf16.msra.mxu0 0
      %3917 = vmatprep.mubr.bf16.mxu0 0
      %3918 = vmatmul.mubr.bf16.gmra.mxu0 %v3829
      %v3919 = vpop.f32.mrf.mxu0
      %v3920 = vadd.f32 0.0, %v3919
      %v3921 = vpop.f32.mrf.mxu0
      %v3922 = vpop.f32.mrf.mxu0
      %v3923 = vadd.f32 0.0, %v3922
      %v3924 = vpop.f32.mrf.mxu0
      %3925 = vmatprep.mubr.bf16.mxu0 0
      %3926 = vmatmul.mubr.bf16.gmra.mxu0 %v3830
      %v3927 = vpop.f32.mrf.mxu0
      %v3928 = vadd.f32 0.0, %v3927
      %v3929 = vpop.f32.mrf.mxu0
      %v3930 = vpop.f32.mrf.mxu0
      %v3931 = vadd.f32 0.0, %v3930
      %v3932 = vpop.f32.mrf.mxu0
      %3933 = vmatprep.mubr.bf16.mxu0 0
      %3934 = vmatmul.mubr.bf16.gmra.mxu0 %v3831
      %v3935 = vpop.f32.mrf.mxu0
      %v3936 = vadd.f32 0.0, %v3935
      %v3937 = vpop.f32.mrf.mxu0
      %v3938 = vpop.f32.mrf.mxu0
      %v3939 = vadd.f32 0.0, %v3938
      %v3940 = vpop.f32.mrf.mxu0
      %3941 = vmatprep.mubr.bf16.mxu0 0
      %3942 = vmatmul.mubr.bf16.gmra.mxu0 %v3832
      %v3943 = vpop.f32.mrf.mxu0
      %v3944 = vadd.f32 0.0, %v3943
      %v3945 = vpop.f32.mrf.mxu0
      %v3946 = vpop.f32.mrf.mxu0
      %v3947 = vadd.f32 0.0, %v3946
      %v3948 = vpop.f32.mrf.mxu0
      %3949 = vdwg.mxu0
      %v3950 = vadd.f32 %v3741, %v3920
      %v3951 = vadd.f32 %v3742, %v3923
      %v3952 = vadd.f32 %v3743, %v3928
      %v3953 = vadd.f32 %v3744, %v3931
      %v3954 = vadd.f32 %v3745, %v3936
      %v3955 = vadd.f32 %v3746, %v3939
      %v3956 = vadd.f32 %v3747, %v3944
      %v3957 = vadd.f32 %v3748, %v3947
      %s3958 = smul.addr %s1672, 4
      %s3959 = scalar_lea.vmem [#allocation2], %s3958
      %v3960 = vld [vmem:[%s3959] sm:$0xf]
      %v3961 = vld [vmem:[%s3959 + $0x8] sm:$0xf]
      %v3962 = vld [vmem:[%s3959 + $0x10] sm:$0xf]
      %v3963 = vld [vmem:[%s3959 + $0x18] sm:$0xf]
      %v3964 = vld [vmem:[%s3959 + $0x20] sm:$0xf]
      %v3965 = vld [vmem:[%s3959 + $0x28] sm:$0xf]
      %v3966 = vld [vmem:[%s3959 + $0x30] sm:$0xf]
      %v3967 = vld [vmem:[%s3959 + $0x38] sm:$0xf]
      %v3968 = vld [vmem:[%s3 + $0x180] sm:$0xf]
      %v3969 = vld [vmem:[%s3 + $0x184] sm:$0xf]
      %v3970 = vld [vmem:[%s3 + $0x188] sm:$0xf]
      %v3971 = vld [vmem:[%s3 + $0x18c] sm:$0xf]
      %v3972 = vld [vmem:[%s3 + $0x190] sm:$0xf]
      %v3973 = vld [vmem:[%s3 + $0x194] sm:$0xf]
      %v3974 = vld [vmem:[%s3 + $0x198] sm:$0xf]
      %v3975 = vld [vmem:[%s3 + $0x19c] sm:$0xf]
      %v3976 = vld [vmem:[%s3 + $0x1a0] sm:$0xf]
      %v3977 = vld [vmem:[%s3 + $0x1a4] sm:$0xf]
      %v3978 = vld [vmem:[%s3 + $0x1a8] sm:$0xf]
      %v3979 = vld [vmem:[%s3 + $0x1ac] sm:$0xf]
      %v3980 = vld [vmem:[%s3 + $0x1b0] sm:$0xf]
      %v3981 = vld [vmem:[%s3 + $0x1b4] sm:$0xf]
      %v3982 = vld [vmem:[%s3 + $0x1b8] sm:$0xf]
      %v3983 = vld [vmem:[%s3 + $0x1bc] sm:$0xf]
      %v3992 = vunpack.c.l.b16 %v3960
      %v3993 = vunpack.c.l.b16 %v3961
      %v3994 = vunpack.c.l.b16 %v3962
      %v3995 = vunpack.c.l.b16 %v3963
      %v3996 = vunpack.c.l.b16 %v3964
      %v3997 = vunpack.c.l.b16 %v3965
      %v3998 = vunpack.c.l.b16 %v3966
      %v3999 = vunpack.c.l.b16 %v3967
      %v4000 = vpack.c.b16 %v3993, %v3992
      %v4001 = vpack.c.b16 %v3995, %v3994
      %v4002 = vpack.c.b16 %v3997, %v3996
      %v4003 = vpack.c.b16 %v3999, %v3998
      %v4024 = vunpack.c.l.b16 %v3968
      %v4025 = vunpack.c.l.b16 %v3969
      %v4026 = vunpack.c.l.b16 %v3970
      %v4027 = vunpack.c.l.b16 %v3971
      %v4028 = vunpack.c.l.b16 %v3972
      %v4029 = vunpack.c.l.b16 %v3973
      %v4030 = vunpack.c.l.b16 %v3974
      %v4031 = vunpack.c.l.b16 %v3975
      %v4032 = vunpack.c.l.b16 %v3976
      %v4033 = vunpack.c.l.b16 %v3977
      %v4034 = vunpack.c.l.b16 %v3978
      %v4035 = vunpack.c.l.b16 %v3979
      %v4036 = vunpack.c.l.b16 %v3980
      %v4037 = vunpack.c.l.b16 %v3981
      %v4038 = vunpack.c.l.b16 %v3982
      %v4039 = vunpack.c.l.b16 %v3983
      %v4040 = vpack.c.b16 %v4025, %v4024
      %v4041 = vpack.c.b16 %v4027, %v4026
      %v4042 = vpack.c.b16 %v4029, %v4028
      %v4043 = vpack.c.b16 %v4031, %v4030
      %v4044 = vpack.c.b16 %v4033, %v4032
      %v4045 = vpack.c.b16 %v4035, %v4034
      %v4046 = vpack.c.b16 %v4037, %v4036
      %v4047 = vpack.c.b16 %v4039, %v4038
      %4056 = vmatprep.subr.bf16.mxu0 0
      %4057 = vmatpush1.bf16.msra.mxu0 %v4047
      %4058 = vmatprep.subr.bf16.mxu0 0
      %4059 = vmatpush1.bf16.msra.mxu0 %v4046
      %4060 = vmatprep.subr.bf16.mxu0 0
      %4061 = vmatpush1.bf16.msra.mxu0 %v4045
      %4062 = vmatprep.subr.bf16.mxu0 0
      %4063 = vmatpush1.bf16.msra.mxu0 %v4044
      %4064 = vmatprep.subr.bf16.mxu0 0
      %4065 = vmatpush1.bf16.msra.mxu0 %v4043
      %4066 = vmatprep.subr.bf16.mxu0 0
      %4067 = vmatpush1.bf16.msra.mxu0 %v4042
      %4068 = vmatprep.subr.bf16.mxu0 0
      %4069 = vmatpush1.bf16.msra.mxu0 %v4041
      %4070 = vmatprep.subr.bf16.mxu0 0
      %4071 = vmatpush1.bf16.msra.mxu0 %v4040
      %4072 = vmatprep.subr.bf16.mxu0 0
      %4073 = vmatpush2.bf16.msra.mxu0 0
      %4074 = vmatprep.subr.bf16.mxu0 0
      %4075 = vmatpush2.bf16.msra.mxu0 0
      %4076 = vmatprep.subr.bf16.mxu0 0
      %4077 = vmatpush2.bf16.msra.mxu0 0
      %4078 = vmatprep.subr.bf16.mxu0 0
      %4079 = vmatpush2.bf16.msra.mxu0 0
      %4080 = vmatprep.subr.bf16.mxu0 0
      %4081 = vmatpush2.bf16.msra.mxu0 0
      %4082 = vmatprep.subr.bf16.mxu0 0
      %4083 = vmatpush2.bf16.msra.mxu0 0
      %4084 = vmatprep.subr.bf16.mxu0 0
      %4085 = vmatpush2.bf16.msra.mxu0 0
      %4086 = vmatprep.subr.bf16.mxu0 0
      %4087 = vmatpush2.bf16.msra.mxu0 0
      %4088 = vmatprep.mubr.bf16.mxu0 0
      %4089 = vmatmul.mubr.bf16.gmra.mxu0 %v4000
      %v4090 = vpop.f32.mrf.mxu0
      %v4091 = vadd.f32 0.0, %v4090
      %v4092 = vpop.f32.mrf.mxu0
      %v4093 = vpop.f32.mrf.mxu0
      %v4094 = vadd.f32 0.0, %v4093
      %v4095 = vpop.f32.mrf.mxu0
      %4096 = vmatprep.mubr.bf16.mxu0 0
      %4097 = vmatmul.mubr.bf16.gmra.mxu0 %v4001
      %v4098 = vpop.f32.mrf.mxu0
      %v4099 = vadd.f32 0.0, %v4098
      %v4100 = vpop.f32.mrf.mxu0
      %v4101 = vpop.f32.mrf.mxu0
      %v4102 = vadd.f32 0.0, %v4101
      %v4103 = vpop.f32.mrf.mxu0
      %4104 = vmatprep.mubr.bf16.mxu0 0
      %4105 = vmatmul.mubr.bf16.gmra.mxu0 %v4002
      %v4106 = vpop.f32.mrf.mxu0
      %v4107 = vadd.f32 0.0, %v4106
      %v4108 = vpop.f32.mrf.mxu0
      %v4109 = vpop.f32.mrf.mxu0
      %v4110 = vadd.f32 0.0, %v4109
      %v4111 = vpop.f32.mrf.mxu0
      %4112 = vmatprep.mubr.bf16.mxu0 0
      %4113 = vmatmul.mubr.bf16.gmra.mxu0 %v4003
      %v4114 = vpop.f32.mrf.mxu0
      %v4115 = vadd.f32 0.0, %v4114
      %v4116 = vpop.f32.mrf.mxu0
      %v4117 = vpop.f32.mrf.mxu0
      %v4118 = vadd.f32 0.0, %v4117
      %v4119 = vpop.f32.mrf.mxu0
      %4120 = vdwg.mxu0
      %v4121 = vadd.f32 %v3950, %v4091
      %v4122 = vadd.f32 %v3951, %v4094
      %v4123 = vadd.f32 %v3952, %v4099
      %v4124 = vadd.f32 %v3953, %v4102
      %v4125 = vadd.f32 %v3954, %v4107
      %v4126 = vadd.f32 %v3955, %v4110
      %v4127 = vadd.f32 %v3956, %v4115
      %v4128 = vadd.f32 %v3957, %v4118
      %v4129 = vld [vmem:[%s3959] sm:$0xf]
      %v4130 = vld [vmem:[%s3959 + $0x4] sm:$0x1]
      %v4131 = vld [vmem:[%s3959 + $0x8] sm:$0xf]
      %v4132 = vld [vmem:[%s3959 + $0xc] sm:$0x1]
      %v4133 = vld [vmem:[%s3959 + $0x10] sm:$0xf]
      %v4134 = vld [vmem:[%s3959 + $0x14] sm:$0x1]
      %v4135 = vld [vmem:[%s3959 + $0x18] sm:$0xf]
      %v4136 = vld [vmem:[%s3959 + $0x1c] sm:$0x1]
      %v4137 = vld [vmem:[%s3959 + $0x20] sm:$0xf]
      %v4138 = vld [vmem:[%s3959 + $0x24] sm:$0x1]
      %v4139 = vld [vmem:[%s3959 + $0x28] sm:$0xf]
      %v4140 = vld [vmem:[%s3959 + $0x2c] sm:$0x1]
      %v4141 = vld [vmem:[%s3959 + $0x30] sm:$0xf]
      %v4142 = vld [vmem:[%s3959 + $0x34] sm:$0x1]
      %v4143 = vld [vmem:[%s3959 + $0x38] sm:$0xf]
      %v4144 = vld [vmem:[%s3959 + $0x3c] sm:$0x1]
      %v4146 = vshrl.u32 %v4129, 16
      %v4148 = vrot.slane %v4146, 4
      %v4149 = vshll.u32 %v4129, 16
      %v4151 = vrot.slane %v4149, 5
      %v4152 = vor.u32 %v4148, %v4151
      %v4153 = vrot.slane %v4152, 4
      %v4155 = vshll.u32 %v4130, 16
      %v4157 = vrot.slane %v4155, 5
      %v4158 = vsel %vm401, %v4153, %v4157
      %v4160 = vshrl.u32 %v4131, 16
      %v4162 = vrot.slane %v4160, 4
      %v4163 = vshll.u32 %v4131, 16
      %v4165 = vrot.slane %v4163, 5
      %v4166 = vor.u32 %v4162, %v4165
      %v4167 = vrot.slane %v4166, 4
      %v4169 = vshll.u32 %v4132, 16
      %v4171 = vrot.slane %v4169, 5
      %v4172 = vsel %vm401, %v4167, %v4171
      %v4174 = vshrl.u32 %v4133, 16
      %v4176 = vrot.slane %v4174, 4
      %v4177 = vshll.u32 %v4133, 16
      %v4179 = vrot.slane %v4177, 5
      %v4180 = vor.u32 %v4176, %v4179
      %v4181 = vrot.slane %v4180, 4
      %v4183 = vshll.u32 %v4134, 16
      %v4185 = vrot.slane %v4183, 5
      %v4186 = vsel %vm401, %v4181, %v4185
      %v4188 = vshrl.u32 %v4135, 16
      %v4190 = vrot.slane %v4188, 4
      %v4191 = vshll.u32 %v4135, 16
      %v4193 = vrot.slane %v4191, 5
      %v4194 = vor.u32 %v4190, %v4193
      %v4195 = vrot.slane %v4194, 4
      %v4197 = vshll.u32 %v4136, 16
      %v4199 = vrot.slane %v4197, 5
      %v4200 = vsel %vm401, %v4195, %v4199
      %v4202 = vshrl.u32 %v4137, 16
      %v4204 = vrot.slane %v4202, 4
      %v4205 = vshll.u32 %v4137, 16
      %v4207 = vrot.slane %v4205, 5
      %v4208 = vor.u32 %v4204, %v4207
      %v4209 = vrot.slane %v4208, 4
      %v4211 = vshll.u32 %v4138, 16
      %v4213 = vrot.slane %v4211, 5
      %v4214 = vsel %vm401, %v4209, %v4213
      %v4216 = vshrl.u32 %v4139, 16
      %v4218 = vrot.slane %v4216, 4
      %v4219 = vshll.u32 %v4139, 16
      %v4221 = vrot.slane %v4219, 5
      %v4222 = vor.u32 %v4218, %v4221
      %v4223 = vrot.slane %v4222, 4
      %v4225 = vshll.u32 %v4140, 16
      %v4227 = vrot.slane %v4225, 5
      %v4228 = vsel %vm401, %v4223, %v4227
      %v4230 = vshrl.u32 %v4141, 16
      %v4232 = vrot.slane %v4230, 4
      %v4233 = vshll.u32 %v4141, 16
      %v4235 = vrot.slane %v4233, 5
      %v4236 = vor.u32 %v4232, %v4235
      %v4237 = vrot.slane %v4236, 4
      %v4239 = vshll.u32 %v4142, 16
      %v4241 = vrot.slane %v4239, 5
      %v4242 = vsel %vm401, %v4237, %v4241
      %v4244 = vshrl.u32 %v4143, 16
      %v4246 = vrot.slane %v4244, 4
      %v4247 = vshll.u32 %v4143, 16
      %v4249 = vrot.slane %v4247, 5
      %v4250 = vor.u32 %v4246, %v4249
      %v4251 = vrot.slane %v4250, 4
      %v4253 = vshll.u32 %v4144, 16
      %v4255 = vrot.slane %v4253, 5
      %v4256 = vsel %vm401, %v4251, %v4255
      %v4257 = vld [vmem:[%s3 + $0x1c0] sm:$0xf]
      %v4258 = vld [vmem:[%s3 + $0x1c4] sm:$0xf]
      %v4259 = vld [vmem:[%s3 + $0x1c8] sm:$0xf]
      %v4260 = vld [vmem:[%s3 + $0x1cc] sm:$0xf]
      %v4261 = vld [vmem:[%s3 + $0x1d0] sm:$0xf]
      %v4262 = vld [vmem:[%s3 + $0x1d4] sm:$0xf]
      %v4263 = vld [vmem:[%s3 + $0x1d8] sm:$0xf]
      %v4264 = vld [vmem:[%s3 + $0x1dc] sm:$0xf]
      %v4265 = vld [vmem:[%s3 + $0x1e0] sm:$0xf]
      %v4266 = vld [vmem:[%s3 + $0x1e4] sm:$0xf]
      %v4267 = vld [vmem:[%s3 + $0x1e8] sm:$0xf]
      %v4268 = vld [vmem:[%s3 + $0x1ec] sm:$0xf]
      %v4269 = vld [vmem:[%s3 + $0x1f0] sm:$0xf]
      %v4270 = vld [vmem:[%s3 + $0x1f4] sm:$0xf]
      %v4271 = vld [vmem:[%s3 + $0x1f8] sm:$0xf]
      %v4272 = vld [vmem:[%s3 + $0x1fc] sm:$0xf]
      %v4273 = vunpack.c.l.b16 %v4158
      %v4274 = vunpack.c.l.b16 %v4172
      %v4275 = vunpack.c.l.b16 %v4186
      %v4276 = vunpack.c.l.b16 %v4200
      %v4277 = vunpack.c.l.b16 %v4214
      %v4278 = vunpack.c.l.b16 %v4228
      %v4279 = vunpack.c.l.b16 %v4242
      %v4280 = vunpack.c.l.b16 %v4256
      %v4281 = vpack.c.b16 %v4274, %v4273
      %v4282 = vpack.c.b16 %v4276, %v4275
      %v4283 = vpack.c.b16 %v4278, %v4277
      %v4284 = vpack.c.b16 %v4280, %v4279
      %v4305 = vunpack.c.l.b16 %v4257
      %v4306 = vunpack.c.l.b16 %v4258
      %v4307 = vunpack.c.l.b16 %v4259
      %v4308 = vunpack.c.l.b16 %v4260
      %v4309 = vunpack.c.l.b16 %v4261
      %v4310 = vunpack.c.l.b16 %v4262
      %v4311 = vunpack.c.l.b16 %v4263
      %v4312 = vunpack.c.l.b16 %v4264
      %v4313 = vunpack.c.l.b16 %v4265
      %v4314 = vunpack.c.l.b16 %v4266
      %v4315 = vunpack.c.l.b16 %v4267
      %v4316 = vunpack.c.l.b16 %v4268
      %v4317 = vunpack.c.l.b16 %v4269
      %v4318 = vunpack.c.l.b16 %v4270
      %v4319 = vunpack.c.l.b16 %v4271
      %v4320 = vunpack.c.l.b16 %v4272
      %v4321 = vpack.c.b16 %v4306, %v4305
      %v4322 = vpack.c.b16 %v4308, %v4307
      %v4323 = vpack.c.b16 %v4310, %v4309
      %v4324 = vpack.c.b16 %v4312, %v4311
      %v4325 = vpack.c.b16 %v4314, %v4313
      %v4326 = vpack.c.b16 %v4316, %v4315
      %v4327 = vpack.c.b16 %v4318, %v4317
      %v4328 = vpack.c.b16 %v4320, %v4319
      %4337 = vmatprep.subr.bf16.mxu0 0
      %4338 = vmatpush1.bf16.msra.mxu0 %v4328
      %4339 = vmatprep.subr.bf16.mxu0 0
      %4340 = vmatpush1.bf16.msra.mxu0 %v4327
      %4341 = vmatprep.subr.bf16.mxu0 0
      %4342 = vmatpush1.bf16.msra.mxu0 %v4326
      %4343 = vmatprep.subr.bf16.mxu0 0
      %4344 = vmatpush1.bf16.msra.mxu0 %v4325
      %4345 = vmatprep.subr.bf16.mxu0 0
      %4346 = vmatpush1.bf16.msra.mxu0 %v4324
      %4347 = vmatprep.subr.bf16.mxu0 0
      %4348 = vmatpush1.bf16.msra.mxu0 %v4323
      %4349 = vmatprep.subr.bf16.mxu0 0
      %4350 = vmatpush1.bf16.msra.mxu0 %v4322
      %4351 = vmatprep.subr.bf16.mxu0 0
      %4352 = vmatpush1.bf16.msra.mxu0 %v4321
      %4353 = vmatprep.subr.bf16.mxu0 0
      %4354 = vmatpush2.bf16.msra.mxu0 0
      %4355 = vmatprep.subr.bf16.mxu0 0
      %4356 = vmatpush2.bf16.msra.mxu0 0
      %4357 = vmatprep.subr.bf16.mxu0 0
      %4358 = vmatpush2.bf16.msra.mxu0 0
      %4359 = vmatprep.subr.bf16.mxu0 0
      %4360 = vmatpush2.bf16.msra.mxu0 0
      %4361 = vmatprep.subr.bf16.mxu0 0
      %4362 = vmatpush2.bf16.msra.mxu0 0
      %4363 = vmatprep.subr.bf16.mxu0 0
      %4364 = vmatpush2.bf16.msra.mxu0 0
      %4365 = vmatprep.subr.bf16.mxu0 0
      %4366 = vmatpush2.bf16.msra.mxu0 0
      %4367 = vmatprep.subr.bf16.mxu0 0
      %4368 = vmatpush2.bf16.msra.mxu0 0
      %4369 = vmatprep.mubr.bf16.mxu0 0
      %4370 = vmatmul.mubr.bf16.gmra.mxu0 %v4281
      %v4371 = vpop.f32.mrf.mxu0
      %v4372 = vadd.f32 0.0, %v4371
      %v4373 = vpop.f32.mrf.mxu0
      %v4374 = vpop.f32.mrf.mxu0
      %v4375 = vadd.f32 0.0, %v4374
      %v4376 = vpop.f32.mrf.mxu0
      %4377 = vmatprep.mubr.bf16.mxu0 0
      %4378 = vmatmul.mubr.bf16.gmra.mxu0 %v4282
      %v4379 = vpop.f32.mrf.mxu0
      %v4380 = vadd.f32 0.0, %v4379
      %v4381 = vpop.f32.mrf.mxu0
      %v4382 = vpop.f32.mrf.mxu0
      %v4383 = vadd.f32 0.0, %v4382
      %v4384 = vpop.f32.mrf.mxu0
      %4385 = vmatprep.mubr.bf16.mxu0 0
      %4386 = vmatmul.mubr.bf16.gmra.mxu0 %v4283
      %v4387 = vpop.f32.mrf.mxu0
      %v4388 = vadd.f32 0.0, %v4387
      %v4389 = vpop.f32.mrf.mxu0
      %v4390 = vpop.f32.mrf.mxu0
      %v4391 = vadd.f32 0.0, %v4390
      %v4392 = vpop.f32.mrf.mxu0
      %4393 = vmatprep.mubr.bf16.mxu0 0
      %4394 = vmatmul.mubr.bf16.gmra.mxu0 %v4284
      %v4395 = vpop.f32.mrf.mxu0
      %v4396 = vadd.f32 0.0, %v4395
      %v4397 = vpop.f32.mrf.mxu0
      %v4398 = vpop.f32.mrf.mxu0
      %v4399 = vadd.f32 0.0, %v4398
      %v4400 = vpop.f32.mrf.mxu0
      %4401 = vdwg.mxu0
      %v4402 = vadd.f32 %v4121, %v4372
      %v4403 = vadd.f32 %v4122, %v4375
      %v4404 = vadd.f32 %v4123, %v4380
      %v4405 = vadd.f32 %v4124, %v4383
      %v4406 = vadd.f32 %v4125, %v4388
      %v4407 = vadd.f32 %v4126, %v4391
      %v4408 = vadd.f32 %v4127, %v4396
      %v4409 = vadd.f32 %v4128, %v4399
      %v4410 = vld [vmem:[%s3959] sm:$0xe]
      %v4411 = vld [vmem:[%s3959 + $0x8] sm:$0xe]
      %v4412 = vld [vmem:[%s3959 + $0x10] sm:$0xe]
      %v4413 = vld [vmem:[%s3959 + $0x18] sm:$0xe]
      %v4414 = vld [vmem:[%s3959 + $0x20] sm:$0xe]
      %v4415 = vld [vmem:[%s3959 + $0x28] sm:$0xe]
      %v4416 = vld [vmem:[%s3959 + $0x30] sm:$0xe]
      %v4417 = vld [vmem:[%s3959 + $0x38] sm:$0xe]
      %v4434 = vrot.slane %v4410, 5
      %v4435 = vrot.slane %v4434, 4
      %v4436 = vrot.slane %v4130, 5
      %v4437 = vsel %vm822, %v4435, %v4436
      %v4438 = vrot.slane %v4411, 5
      %v4439 = vrot.slane %v4438, 4
      %v4440 = vrot.slane %v4132, 5
      %v4441 = vsel %vm822, %v4439, %v4440
      %v4442 = vrot.slane %v4412, 5
      %v4443 = vrot.slane %v4442, 4
      %v4444 = vrot.slane %v4134, 5
      %v4445 = vsel %vm822, %v4443, %v4444
      %v4446 = vrot.slane %v4413, 5
      %v4447 = vrot.slane %v4446, 4
      %v4448 = vrot.slane %v4136, 5
      %v4449 = vsel %vm822, %v4447, %v4448
      %v4450 = vrot.slane %v4414, 5
      %v4451 = vrot.slane %v4450, 4
      %v4452 = vrot.slane %v4138, 5
      %v4453 = vsel %vm822, %v4451, %v4452
      %v4454 = vrot.slane %v4415, 5
      %v4455 = vrot.slane %v4454, 4
      %v4456 = vrot.slane %v4140, 5
      %v4457 = vsel %vm822, %v4455, %v4456
      %v4458 = vrot.slane %v4416, 5
      %v4459 = vrot.slane %v4458, 4
      %v4460 = vrot.slane %v4142, 5
      %v4461 = vsel %vm822, %v4459, %v4460
      %v4462 = vrot.slane %v4417, 5
      %v4463 = vrot.slane %v4462, 4
      %v4464 = vrot.slane %v4144, 5
      %v4465 = vsel %vm822, %v4463, %v4464
      %v4466 = vld [vmem:[%s3 + $0x200] sm:$0xf]
      %v4467 = vld [vmem:[%s3 + $0x204] sm:$0xf]
      %v4468 = vld [vmem:[%s3 + $0x208] sm:$0xf]
      %v4469 = vld [vmem:[%s3 + $0x20c] sm:$0xf]
      %v4470 = vld [vmem:[%s3 + $0x210] sm:$0xf]
      %v4471 = vld [vmem:[%s3 + $0x214] sm:$0xf]
      %v4472 = vld [vmem:[%s3 + $0x218] sm:$0xf]
      %v4473 = vld [vmem:[%s3 + $0x21c] sm:$0xf]
      %v4474 = vld [vmem:[%s3 + $0x220] sm:$0xf]
      %v4475 = vld [vmem:[%s3 + $0x224] sm:$0xf]
      %v4476 = vld [vmem:[%s3 + $0x228] sm:$0xf]
      %v4477 = vld [vmem:[%s3 + $0x22c] sm:$0xf]
      %v4478 = vld [vmem:[%s3 + $0x230] sm:$0xf]
      %v4479 = vld [vmem:[%s3 + $0x234] sm:$0xf]
      %v4480 = vld [vmem:[%s3 + $0x238] sm:$0xf]
      %v4481 = vld [vmem:[%s3 + $0x23c] sm:$0xf]
      %v4482 = vunpack.c.l.b16 %v4437
      %v4483 = vunpack.c.l.b16 %v4441
      %v4484 = vunpack.c.l.b16 %v4445
      %v4485 = vunpack.c.l.b16 %v4449
      %v4486 = vunpack.c.l.b16 %v4453
      %v4487 = vunpack.c.l.b16 %v4457
      %v4488 = vunpack.c.l.b16 %v4461
      %v4489 = vunpack.c.l.b16 %v4465
      %v4490 = vpack.c.b16 %v4483, %v4482
      %v4491 = vpack.c.b16 %v4485, %v4484
      %v4492 = vpack.c.b16 %v4487, %v4486
      %v4493 = vpack.c.b16 %v4489, %v4488
      %v4514 = vunpack.c.l.b16 %v4466
      %v4515 = vunpack.c.l.b16 %v4467
      %v4516 = vunpack.c.l.b16 %v4468
      %v4517 = vunpack.c.l.b16 %v4469
      %v4518 = vunpack.c.l.b16 %v4470
      %v4519 = vunpack.c.l.b16 %v4471
      %v4520 = vunpack.c.l.b16 %v4472
      %v4521 = vunpack.c.l.b16 %v4473
      %v4522 = vunpack.c.l.b16 %v4474
      %v4523 = vunpack.c.l.b16 %v4475
      %v4524 = vunpack.c.l.b16 %v4476
      %v4525 = vunpack.c.l.b16 %v4477
      %v4526 = vunpack.c.l.b16 %v4478
      %v4527 = vunpack.c.l.b16 %v4479
      %v4528 = vunpack.c.l.b16 %v4480
      %v4529 = vunpack.c.l.b16 %v4481
      %v4530 = vpack.c.b16 %v4515, %v4514
      %v4531 = vpack.c.b16 %v4517, %v4516
      %v4532 = vpack.c.b16 %v4519, %v4518
      %v4533 = vpack.c.b16 %v4521, %v4520
      %v4534 = vpack.c.b16 %v4523, %v4522
      %v4535 = vpack.c.b16 %v4525, %v4524
      %v4536 = vpack.c.b16 %v4527, %v4526
      %v4537 = vpack.c.b16 %v4529, %v4528
      %4546 = vmatprep.subr.bf16.mxu0 0
      %4547 = vmatpush1.bf16.msra.mxu0 %v4537
      %4548 = vmatprep.subr.bf16.mxu0 0
      %4549 = vmatpush1.bf16.msra.mxu0 %v4536
      %4550 = vmatprep.subr.bf16.mxu0 0
      %4551 = vmatpush1.bf16.msra.mxu0 %v4535
      %4552 = vmatprep.subr.bf16.mxu0 0
      %4553 = vmatpush1.bf16.msra.mxu0 %v4534
      %4554 = vmatprep.subr.bf16.mxu0 0
      %4555 = vmatpush1.bf16.msra.mxu0 %v4533
      %4556 = vmatprep.subr.bf16.mxu0 0
      %4557 = vmatpush1.bf16.msra.mxu0 %v4532
      %4558 = vmatprep.subr.bf16.mxu0 0
      %4559 = vmatpush1.bf16.msra.mxu0 %v4531
      %4560 = vmatprep.subr.bf16.mxu0 0
      %4561 = vmatpush1.bf16.msra.mxu0 %v4530
      %4562 = vmatprep.subr.bf16.mxu0 0
      %4563 = vmatpush2.bf16.msra.mxu0 0
      %4564 = vmatprep.subr.bf16.mxu0 0
      %4565 = vmatpush2.bf16.msra.mxu0 0
      %4566 = vmatprep.subr.bf16.mxu0 0
      %4567 = vmatpush2.bf16.msra.mxu0 0
      %4568 = vmatprep.subr.bf16.mxu0 0
      %4569 = vmatpush2.bf16.msra.mxu0 0
      %4570 = vmatprep.subr.bf16.mxu0 0
      %4571 = vmatpush2.bf16.msra.mxu0 0
      %4572 = vmatprep.subr.bf16.mxu0 0
      %4573 = vmatpush2.bf16.msra.mxu0 0
      %4574 = vmatprep.subr.bf16.mxu0 0
      %4575 = vmatpush2.bf16.msra.mxu0 0
      %4576 = vmatprep.subr.bf16.mxu0 0
      %4577 = vmatpush2.bf16.msra.mxu0 0
      %4578 = vmatprep.mubr.bf16.mxu0 0
      %4579 = vmatmul.mubr.bf16.gmra.mxu0 %v4490
      %v4580 = vpop.f32.mrf.mxu0
      %v4581 = vadd.f32 0.0, %v4580
      %v4582 = vpop.f32.mrf.mxu0
      %v4583 = vpop.f32.mrf.mxu0
      %v4584 = vadd.f32 0.0, %v4583
      %v4585 = vpop.f32.mrf.mxu0
      %4586 = vmatprep.mubr.bf16.mxu0 0
      %4587 = vmatmul.mubr.bf16.gmra.mxu0 %v4491
      %v4588 = vpop.f32.mrf.mxu0
      %v4589 = vadd.f32 0.0, %v4588
      %v4590 = vpop.f32.mrf.mxu0
      %v4591 = vpop.f32.mrf.mxu0
      %v4592 = vadd.f32 0.0, %v4591
      %v4593 = vpop.f32.mrf.mxu0
      %4594 = vmatprep.mubr.bf16.mxu0 0
      %4595 = vmatmul.mubr.bf16.gmra.mxu0 %v4492
      %v4596 = vpop.f32.mrf.mxu0
      %v4597 = vadd.f32 0.0, %v4596
      %v4598 = vpop.f32.mrf.mxu0
      %v4599 = vpop.f32.mrf.mxu0
      %v4600 = vadd.f32 0.0, %v4599
      %v4601 = vpop.f32.mrf.mxu0
      %4602 = vmatprep.mubr.bf16.mxu0 0
      %4603 = vmatmul.mubr.bf16.gmra.mxu0 %v4493
      %v4604 = vpop.f32.mrf.mxu0
      %v4605 = vadd.f32 0.0, %v4604
      %v4606 = vpop.f32.mrf.mxu0
      %v4607 = vpop.f32.mrf.mxu0
      %v4608 = vadd.f32 0.0, %v4607
      %v4609 = vpop.f32.mrf.mxu0
      %4610 = vdwg.mxu0
      %v4611 = vadd.f32 %v4402, %v4581
      %v4612 = vadd.f32 %v4403, %v4584
      %v4613 = vadd.f32 %v4404, %v4589
      %v4614 = vadd.f32 %v4405, %v4592
      %v4615 = vadd.f32 %v4406, %v4597
      %v4616 = vadd.f32 %v4407, %v4600
      %v4617 = vadd.f32 %v4408, %v4605
      %v4618 = vadd.f32 %v4409, %v4608
      %v4620 = vlaneseq
      %v4621 = vshrl.u32 %v4620, 7
      %v4622 = vsub.s32 0, %v4621
      %v4623 = vrot.slane %v227, %v4622
      %v4625 = vadd.f32 %v4611, %v4623
      %v4626 = vadd.f32 %v4612, %v4623
      %v4627 = vadd.f32 %v4613, %v4623
      %v4628 = vadd.f32 %v4614, %v4623
      %v4629 = vadd.f32 %v4615, %v4623
      %v4630 = vadd.f32 %v4616, %v4623
      %v4631 = vadd.f32 %v4617, %v4623
      %v4632 = vadd.f32 %v4618, %v4623
      %v4633 = vadd.f32 %v4625, %v2654
      %v4634 = vadd.f32 %v4626, %v2655
      %v4635 = vadd.f32 %v4627, %v2656
      %v4636 = vadd.f32 %v4628, %v2657
      %v4637 = vadd.f32 %v4629, %v2658
      %v4638 = vadd.f32 %v4630, %v2659
      %v4639 = vadd.f32 %v4631, %v2660
      %v4640 = vadd.f32 %v4632, %v2661
      %v4641 = vpack.c.bf16 %v4633, %v4633
      %v4642 = vpack.c.bf16 %v4634, %v4634
      %v4643 = vpack.c.bf16 %v4635, %v4635
      %v4644 = vpack.c.bf16 %v4636, %v4636
      %v4645 = vpack.c.bf16 %v4637, %v4637
      %v4646 = vpack.c.bf16 %v4638, %v4638
      %v4647 = vpack.c.bf16 %v4639, %v4639
      %v4648 = vpack.c.bf16 %v4640, %v4640
      %v4657 = vunpack.c.l.b16 %v4641
      %v4658 = vunpack.c.l.b16 %v4642
      %v4659 = vunpack.c.l.b16 %v4643
      %v4660 = vunpack.c.l.b16 %v4644
      %v4661 = vunpack.c.l.b16 %v4645
      %v4662 = vunpack.c.l.b16 %v4646
      %v4663 = vunpack.c.l.b16 %v4647
      %v4664 = vunpack.c.l.b16 %v4648
      %v4665 = vpack.c.b16 %v4657, %v4657
      %v4666 = vpack.c.b16 %v4658, %v4658
      %v4667 = vpack.c.b16 %v4659, %v4659
      %v4668 = vpack.c.b16 %v4660, %v4660
      %v4669 = vpack.c.b16 %v4661, %v4661
      %v4670 = vpack.c.b16 %v4662, %v4662
      %v4671 = vpack.c.b16 %v4663, %v4663
      %v4672 = vpack.c.b16 %v4664, %v4664
      %v4674 = vshrl.u32 %v4665, 16
      %v4676 = vrot.slane %v4674, 7
      %v4677 = vshll.u32 %v4665, 16
      %v4679 = vor.u32 %v4676, %v4677
      %v4680 = vrot.slane %v4676, 4
      %v4682 = vshrl.u32 %v4666, 16
      %v4684 = vrot.slane %v4682, 7
      %v4685 = vshll.u32 %v4666, 16
      %v4687 = vor.u32 %v4684, %v4685
      %v4688 = vrot.slane %v4684, 4
      %v4690 = vshrl.u32 %v4667, 16
      %v4692 = vrot.slane %v4690, 7
      %v4693 = vshll.u32 %v4667, 16
      %v4695 = vor.u32 %v4692, %v4693
      %v4696 = vrot.slane %v4692, 4
      %v4698 = vshrl.u32 %v4668, 16
      %v4700 = vrot.slane %v4698, 7
      %v4701 = vshll.u32 %v4668, 16
      %v4703 = vor.u32 %v4700, %v4701
      %v4704 = vrot.slane %v4700, 4
      %v4706 = vshrl.u32 %v4669, 16
      %v4708 = vrot.slane %v4706, 7
      %v4709 = vshll.u32 %v4669, 16
      %v4711 = vor.u32 %v4708, %v4709
      %v4712 = vrot.slane %v4708, 4
      %v4714 = vshrl.u32 %v4670, 16
      %v4716 = vrot.slane %v4714, 7
      %v4717 = vshll.u32 %v4670, 16
      %v4719 = vor.u32 %v4716, %v4717
      %v4720 = vrot.slane %v4716, 4
      %v4722 = vshrl.u32 %v4671, 16
      %v4724 = vrot.slane %v4722, 7
      %v4725 = vshll.u32 %v4671, 16
      %v4727 = vor.u32 %v4724, %v4725
      %v4728 = vrot.slane %v4724, 4
      %v4730 = vshrl.u32 %v4672, 16
      %v4732 = vrot.slane %v4730, 7
      %v4733 = vshll.u32 %v4672, 16
      %v4735 = vor.u32 %v4732, %v4733
      %v4736 = vrot.slane %v4732, 4
      %s4753 = smul.addr %s1009, 4
      %s4754 = scalar_lea.vmem %s224, %s4753
      %v4755 = vld [vmem:[%s4754] sm:$0xf]
      %v4756 = vsel %vm268, %v4679, %v4755
      %4757 = vst [vmem:[%s4754] sm:$0xf] %v4756
      %v4758 = vld [vmem:[%s4754 + $0x4] sm:$0x1]
      %v4759 = vsel %vm235, %v4680, %v4758
      %4760 = vst [vmem:[%s4754 + $0x4] sm:$0x1] %v4759
      %v4761 = vld [vmem:[%s4754 + $0x8] sm:$0xf]
      %v4762 = vsel %vm268, %v4687, %v4761
      %4763 = vst [vmem:[%s4754 + $0x8] sm:$0xf] %v4762
      %v4764 = vld [vmem:[%s4754 + $0xc] sm:$0x1]
      %v4765 = vsel %vm235, %v4688, %v4764
      %4766 = vst [vmem:[%s4754 + $0xc] sm:$0x1] %v4765
      %v4767 = vld [vmem:[%s4754 + $0x10] sm:$0xf]
      %v4768 = vsel %vm268, %v4695, %v4767
      %4769 = vst [vmem:[%s4754 + $0x10] sm:$0xf] %v4768
      %v4770 = vld [vmem:[%s4754 + $0x14] sm:$0x1]
      %v4771 = vsel %vm235, %v4696, %v4770
      %4772 = vst [vmem:[%s4754 + $0x14] sm:$0x1] %v4771
      %v4773 = vld [vmem:[%s4754 + $0x18] sm:$0xf]
      %v4774 = vsel %vm268, %v4703, %v4773
      %4775 = vst [vmem:[%s4754 + $0x18] sm:$0xf] %v4774
      %v4776 = vld [vmem:[%s4754 + $0x1c] sm:$0x1]
      %v4777 = vsel %vm235, %v4704, %v4776
      %4778 = vst [vmem:[%s4754 + $0x1c] sm:$0x1] %v4777
      %v4779 = vld [vmem:[%s4754 + $0x20] sm:$0xf]
      %v4780 = vsel %vm268, %v4711, %v4779
      %4781 = vst [vmem:[%s4754 + $0x20] sm:$0xf] %v4780
      %v4782 = vld [vmem:[%s4754 + $0x24] sm:$0x1]
      %v4783 = vsel %vm235, %v4712, %v4782
      %4784 = vst [vmem:[%s4754 + $0x24] sm:$0x1] %v4783
      %v4785 = vld [vmem:[%s4754 + $0x28] sm:$0xf]
      %v4786 = vsel %vm268, %v4719, %v4785
      %4787 = vst [vmem:[%s4754 + $0x28] sm:$0xf] %v4786
      %v4788 = vld [vmem:[%s4754 + $0x2c] sm:$0x1]
      %v4789 = vsel %vm235, %v4720, %v4788
      %4790 = vst [vmem:[%s4754 + $0x2c] sm:$0x1] %v4789
      %v4791 = vld [vmem:[%s4754 + $0x30] sm:$0xf]
      %v4792 = vsel %vm268, %v4727, %v4791
      %4793 = vst [vmem:[%s4754 + $0x30] sm:$0xf] %v4792
      %v4794 = vld [vmem:[%s4754 + $0x34] sm:$0x1]
      %v4795 = vsel %vm235, %v4728, %v4794
      %4796 = vst [vmem:[%s4754 + $0x34] sm:$0x1] %v4795
      %v4797 = vld [vmem:[%s4754 + $0x38] sm:$0xf]
      %v4798 = vsel %vm268, %v4735, %v4797
      %4799 = vst [vmem:[%s4754 + $0x38] sm:$0xf] %v4798
      %v4800 = vld [vmem:[%s4754 + $0x3c] sm:$0x1]
      %v4801 = vsel %vm235, %v4736, %v4800
      %4802 = vst [vmem:[%s4754 + $0x3c] sm:$0x1] %v4801
      %p4803 = scmp.lt.s32.totalorder %s16, 1
      %s4804 = scalar_select %p4803, %s16, 1
      %s4805 = smul.addr %s4804, 20
      %s4806 = smul.addr %s4805, 4
      %s4807 = scalar_lea.vmem %s5, %s4806
      // Predicated region
      $region41: #{extractor_forward.5} parent=39 // pred_check
        %p4808 = pneg %p144
      $region42: #{extractor_forward.5} parent=39 // pred_check_branch
        %4810 = sbr.rel (%p4808) target = $region44
      $region43: #{extractor_forward.5} parent=39 // pred_region
        _
      $region44: #{extractor_forward.5} parent=39 // pred_fallthru
        _
    $region40: #{extractor_forward.5} parent=5 // pred_fallthru
      _
    %p4811 = scmp.le.s32.totalorder 2, %s11
    // Predicated region
    $region45: #{extractor_forward.5} parent=5 // pred_check
      %p4812 = pneg %p4811
    $region46: #{extractor_forward.5} parent=5 // pred_check_branch
      %4814 = sbr.rel (%p4812) target = $region48
    $region47: #{extractor_forward.5} parent=5 // pred_region
      %s4815 = ssub.s32 %s11, 2
      // Predicated region
      $region49: #{extractor_forward.5} parent=47 // pred_check
        %p4816 = pneg %p150
      $region50: #{extractor_forward.5} parent=47 // pred_check_branch
        %4818 = sbr.rel (%p4816) target = $region52
      $region51: #{extractor_forward.5} parent=47 // pred_region
        %p4819 = scmp.lt.s32.totalorder %s17, 1
        %s4820 = scalar_select %p4819, %s17, 1
        %s4821 = smul.addr %s4820, 20
        %s4822 = smul.addr %s4821, 4
        %s4823 = scalar_lea.vmem %s5, %s4822
      $region52: #{extractor_forward.5} parent=47 // pred_fallthru
        _
    $region48: #{extractor_forward.5} parent=5 // pred_fallthru
      _
  $region6: #{extractor_forward.5} parent=0 // loop_footer
    %s15 = sadd.s32 1, %s11
  $region7: #{extractor_forward.5} parent=0 // loop_footer_branch
    %10 = sbr.rel target = $region3
  $region8: #{extractor_forward.5} parent=0 // loop_exit
    _

</llo_original>
